<compile_context>
chip_gen: v5e
topology: v5e:2x2
jax: 0.10.0
libtpu: 0.0.40
codegen_flags: <defaults>
</compile_context>

<pallas_src>
import functools

import jax
import jax.numpy as jnp
from jax.experimental import pallas as pl
from jax.experimental.pallas import tpu as pltpu


# ----------------------------- fused Pallas kernel -----------------------------


def _aggre_kernel(x_ref, w_ref, b_ref, o_ref, pad_ref, col_ref,
                  *, H, W, dila, padl, stride, B):
    """B batch elements of aggre_module, fully fused.

    x_ref  : (B, C, H*W)      activations, spatial flattened on the lane axis
    w_ref  : (5, 2C, 9C)      packed conv weights; slot 2 stacks [w21 ; w_merge_a]
    b_ref  : (5, C, 1)        biases [b11, b1d, b21, b2d, b_merge]
    o_ref  : (B, C, H*W)
    pad_ref: (C, B*stride)    per-image zero-haloed source scratch (VMEM)
    col_ref: (9C, B*H*W)      im2col scratch (VMEM), batch stacked on lanes
    """
    C = x_ref.shape[1]
    HW = H * W
    NHW = B * HW
    f32 = jnp.float32

    # ---- per-step setup ------------------------------------------------------
    # Zero only the halo strips; the [padl, padl+HW) centre of each image slab
    # is fully rewritten by every conv before any read.  Done unconditionally so
    # each TensorCore's private scratch is initialised (megacore-safe).
    zero_strip = jnp.zeros((C, padl), f32)
    for b in range(B):
        base = b * stride
        pad_ref[:, base:base + padl] = zero_strip
        pad_ref[:, base + padl + HW:base + padl + HW + padl] = zero_strip

    # In-image column of every flattened pixel (HW is a multiple of W, so a
    # plain mod-W is valid across the whole batch-stacked lane axis).
    pos = jax.lax.broadcasted_iota(jnp.int32, (1, NHW), 1)
    if (W & (W - 1)) == 0:                      # power-of-two width: cheap bit-and
        ww = jnp.bitwise_and(pos, W - 1)
    else:                                       # generic: exact f32 floor-divide
        pf = pos.astype(f32)
        ww = (pf - jnp.float32(W) * jnp.floor(pf / jnp.float32(W))).astype(jnp.int32)
    # Hoisted row-wrap masks, one per distinct lane shift.
    wrap_mask = {dx: (ww >= -dx) & (ww < W - dx)
                 for dx in sorted({-1, 1, -dila, dila})}

    # Taps per col store: full 8-sublane slabs whenever C divides 8.
    group = 8 // C if (C < 8 and 8 % C == 0) else 1

    def conv3x3(src, slot, d, rows):
        """SAME 3x3 conv (dilation d): src (C, NHW) -> (rows, NHW), no bias."""
        for b in range(B):                       # lane-aligned centre stores
            pad_ref[:, b * stride + padl:b * stride + padl + HW] = (
                src[:, b * HW:(b + 1) * HW])

        def make_tap(t):
            ky, kx = divmod(t, 3)
            dy = (ky - 1) * d
            dx = (kx - 1) * d
            off = padl + dy * W + dx
            pieces = [pad_ref[:, b * stride + off:b * stride + off + HW]
                      for b in range(B)]
            tap = pieces[0] if B == 1 else jnp.concatenate(pieces, axis=1)
            if dx != 0:
                # zero columns whose source pixel would wrap across a row edge of
                # the flat layout; out-of-image rows are already zero via the halo.
                tap = jnp.where(wrap_mask[dx], tap, 0.0)
            return tap

        t = 0
        while t < 9:
            g = min(group, 9 - t)
            blk = make_tap(t) if g == 1 else jnp.concatenate(
                [make_tap(t + i) for i in range(g)], axis=0)
            col_ref[t * C:(t + g) * C, :] = blk.astype(col_ref.dtype)
            t += g

        return jnp.dot(w_ref[slot, :rows, :], col_ref[...],
                       preferred_element_type=f32)

    # Batch stacked on the lane axis: (C, NHW)
    x = x_ref[0] if B == 1 else jnp.concatenate(
        [x_ref[b] for b in range(B)], axis=1)

    # ms_module0 #1: la = relu(conv1(x)); a1 = relu(dilated(x - la) + la)
    la1 = jnp.maximum(conv3x3(x, 0, 1, C) + b_ref[0], 0.0)
    a1 = jnp.maximum(conv3x3(x - la1, 1, dila, C) + b_ref[1] + la1, 0.0)

    # ms_module0 #2 + first half of the merge conv, sharing a1's d=1 im2col.
    both = conv3x3(a1, 2, 1, 2 * C)       # rows 0:C -> conv1(a1); C:2C -> wma * a1
    la2 = jnp.maximum(both[:C] + b_ref[2], 0.0)
    m_a = both[C:2 * C]
    a2 = jnp.maximum(conv3x3(a1 - la2, 3, dila, C) + b_ref[3] + la2, 0.0)

    # merge conv over concat([a1, a2], channels); the concat is never built.
    m = jnp.maximum(m_a + conv3x3(a2, 4, 1, C) + b_ref[4], 0.0)
    for b in range(B):
        o_ref[b] = m[:, b * HW:(b + 1) * HW]


# ------------------------------- Pallas wrapper --------------------------------


def _pack_w(w_hwio):
    """(3, 3, Cin, Cout) HWIO conv weight -> (Cout, 9*Cin) matmul weight.

    Row order matches the kernel's im2col rows: (ky*3 + kx)*Cin + ci.
    """
    kh, kw, cin, cout = w_hwio.shape
    return jnp.transpose(w_hwio.reshape(kh * kw * cin, cout))


def _images_per_step(N, C, HW):
    """How many batch images are lane-stacked into one grid step.

    Single-TC chips (v5e/v6e): fold as much of the batch as VMEM comfortably
    allows (fewer serial steps, wider matmul N, stationary weights amortised).
    v7x (2 TensorCores): keep >= 2 parallel grid steps so both cores work.
    """
    kind = ""
    try:
        devs = jax.devices()
        if devs:
            kind = devs[0].device_kind.lower()
    except Exception:
        pass
    bytes_per_image = 4 * HW * (9 * C + 6 * C)      # col + pad + io double-buffers
    cap = max(1, (8 << 20) // max(1, bytes_per_image))
    if "v7" in kind and N >= 2:
        cap = min(cap, max(1, N // 2))
    cap = min(cap, N)
    best = 1
    for d in range(1, cap + 1):
        if N % d == 0:
            best = d
    return best


def aggre_module_apply(x_nchw, params, dila=3, im2col_dtype=jnp.float32):
    # im2col_dtype=jnp.bfloat16 would halve col traffic and feed the MXU at its
    # native bf16 rate on v6e/v7x (residual/ReLU math stays f32 either way); it
    # is left at f32 here to hold the strict 2e-3 correctness check below.
    N, C, H, W = x_nchw.shape
    HW = H * W
    x_flat = x_nchw.reshape(N, C, HW)           # free reshape, NCHW is contiguous

    B = _images_per_step(N, C, HW)
    steps = N // B

    # Halo big enough for the largest tap shift; lane-aligned slab per image.
    max_shift = max(1, dila) * (W + 1)
    padl = ((max_shift + 127) // 128) * 128
    stride = ((HW + 2 * padl + 127) // 128) * 128

    # One packed weight operand.  Slot 2 stacks [m2.conv1 ; merge(a1-half)] so
    # the kernel reuses a single d=1 im2col of a1 for both.
    mw = params["merge_w"]                      # (3, 3, 2C, C)
    w_all = jnp.zeros((5, 2 * C, 9 * C), im2col_dtype)
    w_all = w_all.at[0, :C].set(_pack_w(params["m1"]["w1"]).astype(im2col_dtype))
    w_all = w_all.at[1, :C].set(_pack_w(params["m1"]["wd"]).astype(im2col_dtype))
    w_all = w_all.at[2, :C].set(_pack_w(params["m2"]["w1"]).astype(im2col_dtype))
    w_all = w_all.at[2, C:].set(_pack_w(mw[:, :, :C, :]).astype(im2col_dtype))
    w_all = w_all.at[3, :C].set(_pack_w(params["m2"]["wd"]).astype(im2col_dtype))
    w_all = w_all.at[4, :C].set(_pack_w(mw[:, :, C:, :]).astype(im2col_dtype))

    # One bias operand.
    b_all = jnp.stack([params["m1"]["b1"], params["m1"]["bd"],
                       params["m2"]["b1"], params["m2"]["bd"],
                       params["merge_b"]], axis=0).reshape(5, C, 1)

    kern = functools.partial(_aggre_kernel, H=H, W=W, dila=dila,
                             padl=padl, stride=stride, B=B)

    flops_per_conv = 2 * 9 * HW * C * C
    out = pl.pallas_call(
        kern,
        out_shape=jax.ShapeDtypeStruct((N, C, HW), jnp.float32),
        grid=(steps,),
        in_specs=[pl.BlockSpec((B, C, HW), lambda n: (n, 0, 0)),
                  pl.BlockSpec((5, 2 * C, 9 * C), lambda n: (0, 0, 0)),
                  pl.BlockSpec((5, C, 1), lambda n: (0, 0, 0))],
        out_specs=pl.BlockSpec((B, C, HW), lambda n: (n, 0, 0)),
        scratch_shapes=[
            pltpu.VMEM((C, B * stride), jnp.float32),   # zero-haloed sources
            pltpu.VMEM((9 * C, B * HW), im2col_dtype),  # im2col matrix
        ],
        compiler_params=pltpu.CompilerParams(dimension_semantics=("parallel",)),
        cost_estimate=pl.CostEstimate(
            flops=N * 6 * flops_per_conv,
            transcendentals=0,
            bytes_accessed=4 * (2 * N * C * HW + 5 * 2 * C * 9 * C + 5 * C)),
    )(x_flat, w_all, b_all)
    # TODO(synk): for large H*W on v7x (64 MiB VMEM) add row-block tiling over the
    # flat HW axis (>=512-lane blocks, dila*W halo) and set vmem_limit_bytes.
    return out.reshape(N, C, H, W)


# ----------------------------- pure-JAX reference ------------------------------


def _conv_ref(x, w, b, dilation=1):
    y = jax.lax.conv_general_dilated(
        x, w, window_strides=(1, 1),
        padding=[(dilation, dilation), (dilation, dilation)],
        rhs_dilation=(dilation, dilation),
        dimension_numbers=("NCHW", "HWIO", "NCHW"))
    return y + b.reshape(1, -1, 1, 1)


def _ms_ref(x, p, dila=3):
    la = jax.nn.relu(_conv_ref(x, p["w1"], p["b1"], 1))
    return jax.nn.relu(_conv_ref(x - la, p["wd"], p["bd"], dila) + la)


def _aggre_ref(x, params, dila=3):
    a1 = _ms_ref(x, params["m1"], dila)
    a2 = _ms_ref(a1, params["m2"], dila)
    m1 = jnp.concatenate([a1, a2], axis=1)
    return jax.nn.relu(_conv_ref(m1, params["merge_w"], params["merge_b"], 1))


# -------------------------------- parameter init --------------------------------


def _init_conv(key, cin, cout):
    # deterministic, PyTorch-Conv2d-like uniform(-1/sqrt(fan_in), 1/sqrt(fan_in))
    kw, kb = jax.random.split(key)
    bound = 1.0 / jnp.sqrt(jnp.float32(cin * 9))
    w = jax.random.uniform(kw, (3, 3, cin, cout), jnp.float32, -bound, bound)
    b = jax.random.uniform(kb, (cout,), jnp.float32, -bound, bound)
    return w, b


def init_aggre_params(key, in_ch):
    keys = jax.random.split(key, 5)
    m1_w1, m1_b1 = _init_conv(keys[0], in_ch, in_ch)
    m1_wd, m1_bd = _init_conv(keys[1], in_ch, in_ch)
    m2_w1, m2_b1 = _init_conv(keys[2], in_ch, in_ch)
    m2_wd, m2_bd = _init_conv(keys[3], in_ch, in_ch)
    mw, mb = _init_conv(keys[4], 2 * in_ch, in_ch)
    return {
        "m1": {"w1": m1_w1, "b1": m1_b1, "wd": m1_wd, "bd": m1_bd},
        "m2": {"w1": m2_w1, "b1": m2_b1, "wd": m2_wd, "bd": m2_bd},
        "merge_w": mw, "merge_b": mb,
    }


# -------------------------------------- main -------------------------------------

if __name__ == "__main__":
    key = jax.random.PRNGKey(0)
    k_x, k_p = jax.random.split(key)

    N, C, H, W = 2, 4, 16, 16
    x = jax.random.normal(k_x, (N, C, H, W), jnp.float32)   # PyTorch-style NCHW

    params = init_aggre_params(k_p, C)

    fwd = jax.jit(lambda xx: aggre_module_apply(xx, params))
    out = jax.block_until_ready(fwd(x))

    assert out.shape == (N, C, H, W), out.shape

    ref = _aggre_ref(x, params)
    err = float(jnp.max(jnp.abs(out - ref)))
    assert jnp.allclose(out, ref, atol=2e-3, rtol=2e-3), err

    print("KERNEL_OK")
</pallas_src>

<mosaic_0001>
module attributes {stable_mosaic.version = 11 : i64} {
  func.func @_aggre_kernel(%arg0: i32, %arg1: memref<2x4x256xf32, #tpu.memory_space<vmem>>, %arg2: memref<5x8x36xf32, #tpu.memory_space<vmem>>, %arg3: memref<5x4x1xf32, #tpu.memory_space<vmem>>, %arg4: memref<2x4x256xf32, #tpu.memory_space<vmem>>, %arg5: memref<4x1024xf32, #tpu.memory_space<vmem>>, %arg6: memref<36x512xf32, #tpu.memory_space<vmem>>) attributes {dimension_semantics = [#tpu.dimension_semantics<parallel>], iteration_bounds = array<i64: 1>, scalar_prefetch = 0 : i64, scratch_operands = 2 : i64, tpu.core_type = #tpu.core_type<tc>, window_params = [{transform_indices = @transform_0, window_bounds = array<i64: 2, 4, 256>}, {pipeline_mode = #tpu.pipeline_mode<synchronous>, transform_indices = @transform_1, window_bounds = array<i64: 5, 8, 36>}, {pipeline_mode = #tpu.pipeline_mode<synchronous>, transform_indices = @transform_2, window_bounds = array<i64: 5, 4, 1>}, {transform_indices = @transform_3, window_bounds = array<i64: 2, 4, 256>}]} {
    %cst = arith.constant 0.000000e+00 : f32
    %0 = vector.broadcast %cst : f32 to vector<4x128xf32>
    %c0 = arith.constant 0 : index
    %c0_0 = arith.constant 0 : index
    %1 = vector.load %arg5[%c0, %c0_0] : memref<4x1024xf32, #tpu.memory_space<vmem>>, vector<4x128xf32>
    tpu.vector_store %arg5[%c0, %c0_0], %0 {strides = array<i32>} : memref<4x1024xf32, #tpu.memory_space<vmem>>, vector<4x128xf32>,
    %c0_1 = arith.constant 0 : index
    %c384 = arith.constant 384 : index
    %2 = vector.load %arg5[%c0_1, %c384] : memref<4x1024xf32, #tpu.memory_space<vmem>>, vector<4x128xf32>
    tpu.vector_store %arg5[%c0_1, %c384], %0 {strides = array<i32>} : memref<4x1024xf32, #tpu.memory_space<vmem>>, vector<4x128xf32>,
    %c0_2 = arith.constant 0 : index
    %c512 = arith.constant 512 : index
    %3 = vector.load %arg5[%c0_2, %c512] : memref<4x1024xf32, #tpu.memory_space<vmem>>, vector<4x128xf32>
    tpu.vector_store %arg5[%c0_2, %c512], %0 {strides = array<i32>} : memref<4x1024xf32, #tpu.memory_space<vmem>>, vector<4x128xf32>,
    %c0_3 = arith.constant 0 : index
    %c896 = arith.constant 896 : index
    %4 = vector.load %arg5[%c0_3, %c896] : memref<4x1024xf32, #tpu.memory_space<vmem>>, vector<4x128xf32>
    tpu.vector_store %arg5[%c0_3, %c896], %0 {strides = array<i32>} : memref<4x1024xf32, #tpu.memory_space<vmem>>, vector<4x128xf32>,
    %5 = tpu.iota {dimensions = array<i32: 1>} : vector<1x512xi32>
    %c15_i32 = arith.constant 15 : i32
    %6 = vector.broadcast %c15_i32 : i32 to vector<1x512xi32>
    %7 = arith.andi %5, %6 : vector<1x512xi32>
    %c3_i32 = arith.constant 3 : i32
    %8 = vector.broadcast %c3_i32 : i32 to vector<1x512xi32>
    %9 = arith.cmpi sge, %7, %8 : vector<1x512xi32>
    %c19_i32 = arith.constant 19 : i32
    %10 = vector.broadcast %c19_i32 : i32 to vector<1x512xi32>
    %11 = arith.cmpi slt, %7, %10 : vector<1x512xi32>
    %12 = arith.andi %9, %11 : vector<1x512xi1>
    %c1_i32 = arith.constant 1 : i32
    %13 = vector.broadcast %c1_i32 : i32 to vector<1x512xi32>
    %14 = arith.cmpi sge, %7, %13 : vector<1x512xi32>
    %c17_i32 = arith.constant 17 : i32
    %15 = vector.broadcast %c17_i32 : i32 to vector<1x512xi32>
    %16 = arith.cmpi slt, %7, %15 : vector<1x512xi32>
    %17 = arith.andi %14, %16 : vector<1x512xi1>
    %c-1_i32 = arith.constant -1 : i32
    %18 = vector.broadcast %c-1_i32 : i32 to vector<1x512xi32>
    %19 = arith.cmpi sge, %7, %18 : vector<1x512xi32>
    %c15_i32_4 = arith.constant 15 : i32
    %20 = vector.broadcast %c15_i32_4 : i32 to vector<1x512xi32>
    %21 = arith.cmpi slt, %7, %20 : vector<1x512xi32>
    %22 = arith.andi %19, %21 : vector<1x512xi1>
    %c-3_i32 = arith.constant -3 : i32
    %23 = vector.broadcast %c-3_i32 : i32 to vector<1x512xi32>
    %24 = arith.cmpi sge, %7, %23 : vector<1x512xi32>
    %c13_i32 = arith.constant 13 : i32
    %25 = vector.broadcast %c13_i32 : i32 to vector<1x512xi32>
    %26 = arith.cmpi slt, %7, %25 : vector<1x512xi32>
    %27 = arith.andi %24, %26 : vector<1x512xi1>
    %c0_5 = arith.constant 0 : index
    %c0_6 = arith.constant 0 : index
    %c0_7 = arith.constant 0 : index
    %28 = vector.load %arg1[%c0_5, %c0_6, %c0_7] : memref<2x4x256xf32, #tpu.memory_space<vmem>>, vector<1x4x256xf32>
    %29 = vector.shape_cast %28 : vector<1x4x256xf32> to vector<4x256xf32>
    %c1 = arith.constant 1 : index
    %c0_8 = arith.constant 0 : index
    %c0_9 = arith.constant 0 : index
    %30 = vector.load %arg1[%c1, %c0_8, %c0_9] : memref<2x4x256xf32, #tpu.memory_space<vmem>>, vector<1x4x256xf32>
    %31 = vector.shape_cast %30 : vector<1x4x256xf32> to vector<4x256xf32>
    %32 = tpu.concatenate %29, %31 in 1 : vector<4x256xf32>, vector<4x256xf32> -> vector<4x512xf32>
    %33 = vector.extract_strided_slice %32 {offsets = [0, 0], sizes = [4, 256], strides = [1, 1]} : vector<4x512xf32> to vector<4x256xf32>
    %c0_10 = arith.constant 0 : index
    %c128 = arith.constant 128 : index
    %34 = vector.load %arg5[%c0_10, %c128] : memref<4x1024xf32, #tpu.memory_space<vmem>>, vector<4x256xf32>
    tpu.vector_store %arg5[%c0_10, %c128], %33 {strides = array<i32>} : memref<4x1024xf32, #tpu.memory_space<vmem>>, vector<4x256xf32>,
    %35 = vector.extract_strided_slice %32 {offsets = [0, 256], sizes = [4, 256], strides = [1, 1]} : vector<4x512xf32> to vector<4x256xf32>
    %c0_11 = arith.constant 0 : index
    %c640 = arith.constant 640 : index
    %36 = vector.load %arg5[%c0_11, %c640] : memref<4x1024xf32, #tpu.memory_space<vmem>>, vector<4x256xf32>
    tpu.vector_store %arg5[%c0_11, %c640], %35 {strides = array<i32>} : memref<4x1024xf32, #tpu.memory_space<vmem>>, vector<4x256xf32>,
    %c0_12 = arith.constant 0 : index
    %c111 = arith.constant 111 : index
    %37 = vector.load %arg5[%c0_12, %c111] : memref<4x1024xf32, #tpu.memory_space<vmem>>, vector<4x256xf32>
    %c0_13 = arith.constant 0 : index
    %c623 = arith.constant 623 : index
    %38 = vector.load %arg5[%c0_13, %c623] : memref<4x1024xf32, #tpu.memory_space<vmem>>, vector<4x256xf32>
    %39 = tpu.concatenate %37, %38 in 1 : vector<4x256xf32>, vector<4x256xf32> -> vector<4x512xf32>
    %cst_14 = arith.constant 0.000000e+00 : f32
    %40 = vector.shape_cast %17 : vector<1x512xi1> to vector<1x512xi1>
    %41 = vector.broadcast %40 : vector<1x512xi1> to vector<4x512xi1>
    %42 = vector.broadcast %cst_14 : f32 to vector<4x512xf32>
    %43 = arith.select %41, %39, %42 : vector<4x512xi1>, vector<4x512xf32>
    %c0_15 = arith.constant 0 : index
    %c112 = arith.constant 112 : index
    %44 = vector.load %arg5[%c0_15, %c112] : memref<4x1024xf32, #tpu.memory_space<vmem>>, vector<4x256xf32>
    %c0_16 = arith.constant 0 : index
    %c624 = arith.constant 624 : index
    %45 = vector.load %arg5[%c0_16, %c624] : memref<4x1024xf32, #tpu.memory_space<vmem>>, vector<4x256xf32>
    %46 = tpu.concatenate %44, %45 in 1 : vector<4x256xf32>, vector<4x256xf32> -> vector<4x512xf32>
    %47 = tpu.concatenate %43, %46 in 0 : vector<4x512xf32>, vector<4x512xf32> -> vector<8x512xf32>
    %c0_17 = arith.constant 0 : index
    %c0_18 = arith.constant 0 : index
    %48 = vector.load %arg6[%c0_17, %c0_18] : memref<36x512xf32, #tpu.memory_space<vmem>>, vector<8x512xf32>
    tpu.vector_store %arg6[%c0_17, %c0_18], %47 {strides = array<i32>} : memref<36x512xf32, #tpu.memory_space<vmem>>, vector<8x512xf32>,
    %c0_19 = arith.constant 0 : index
    %c113 = arith.constant 113 : index
    %49 = vector.load %arg5[%c0_19, %c113] : memref<4x1024xf32, #tpu.memory_space<vmem>>, vector<4x256xf32>
    %c0_20 = arith.constant 0 : index
    %c625 = arith.constant 625 : index
    %50 = vector.load %arg5[%c0_20, %c625] : memref<4x1024xf32, #tpu.memory_space<vmem>>, vector<4x256xf32>
    %51 = tpu.concatenate %49, %50 in 1 : vector<4x256xf32>, vector<4x256xf32> -> vector<4x512xf32>
    %cst_21 = arith.constant 0.000000e+00 : f32
    %52 = vector.shape_cast %22 : vector<1x512xi1> to vector<1x512xi1>
    %53 = vector.broadcast %52 : vector<1x512xi1> to vector<4x512xi1>
    %54 = vector.broadcast %cst_21 : f32 to vector<4x512xf32>
    %55 = arith.select %53, %51, %54 : vector<4x512xi1>, vector<4x512xf32>
    %c0_22 = arith.constant 0 : index
    %c127 = arith.constant 127 : index
    %56 = vector.load %arg5[%c0_22, %c127] : memref<4x1024xf32, #tpu.memory_space<vmem>>, vector<4x256xf32>
    %c0_23 = arith.constant 0 : index
    %c639 = arith.constant 639 : index
    %57 = vector.load %arg5[%c0_23, %c639] : memref<4x1024xf32, #tpu.memory_space<vmem>>, vector<4x256xf32>
    %58 = tpu.concatenate %56, %57 in 1 : vector<4x256xf32>, vector<4x256xf32> -> vector<4x512xf32>
    %cst_24 = arith.constant 0.000000e+00 : f32
    %59 = vector.shape_cast %17 : vector<1x512xi1> to vector<1x512xi1>
    %60 = vector.broadcast %59 : vector<1x512xi1> to vector<4x512xi1>
    %61 = vector.broadcast %cst_24 : f32 to vector<4x512xf32>
    %62 = arith.select %60, %58, %61 : vector<4x512xi1>, vector<4x512xf32>
    %63 = tpu.concatenate %55, %62 in 0 : vector<4x512xf32>, vector<4x512xf32> -> vector<8x512xf32>
    %c8 = arith.constant 8 : index
    %c0_25 = arith.constant 0 : index
    %64 = vector.load %arg6[%c8, %c0_25] : memref<36x512xf32, #tpu.memory_space<vmem>>, vector<8x512xf32>
    tpu.vector_store %arg6[%c8, %c0_25], %63 {strides = array<i32>} : memref<36x512xf32, #tpu.memory_space<vmem>>, vector<8x512xf32>,
    %c0_26 = arith.constant 0 : index
    %c128_27 = arith.constant 128 : index
    %65 = vector.load %arg5[%c0_26, %c128_27] : memref<4x1024xf32, #tpu.memory_space<vmem>>, vector<4x256xf32>
    %c0_28 = arith.constant 0 : index
    %c640_29 = arith.constant 640 : index
    %66 = vector.load %arg5[%c0_28, %c640_29] : memref<4x1024xf32, #tpu.memory_space<vmem>>, vector<4x256xf32>
    %67 = tpu.concatenate %65, %66 in 1 : vector<4x256xf32>, vector<4x256xf32> -> vector<4x512xf32>
    %c0_30 = arith.constant 0 : index
    %c129 = arith.constant 129 : index
    %68 = vector.load %arg5[%c0_30, %c129] : memref<4x1024xf32, #tpu.memory_space<vmem>>, vector<4x256xf32>
    %c0_31 = arith.constant 0 : index
    %c641 = arith.constant 641 : index
    %69 = vector.load %arg5[%c0_31, %c641] : memref<4x1024xf32, #tpu.memory_space<vmem>>, vector<4x256xf32>
    %70 = tpu.concatenate %68, %69 in 1 : vector<4x256xf32>, vector<4x256xf32> -> vector<4x512xf32>
    %cst_32 = arith.constant 0.000000e+00 : f32
    %71 = vector.shape_cast %22 : vector<1x512xi1> to vector<1x512xi1>
    %72 = vector.broadcast %71 : vector<1x512xi1> to vector<4x512xi1>
    %73 = vector.broadcast %cst_32 : f32 to vector<4x512xf32>
    %74 = arith.select %72, %70, %73 : vector<4x512xi1>, vector<4x512xf32>
    %75 = tpu.concatenate %67, %74 in 0 : vector<4x512xf32>, vector<4x512xf32> -> vector<8x512xf32>
    %c16 = arith.constant 16 : index
    %c0_33 = arith.constant 0 : index
    %76 = vector.load %arg6[%c16, %c0_33] : memref<36x512xf32, #tpu.memory_space<vmem>>, vector<8x512xf32>
    tpu.vector_store %arg6[%c16, %c0_33], %75 {strides = array<i32>} : memref<36x512xf32, #tpu.memory_space<vmem>>, vector<8x512xf32>,
    %c0_34 = arith.constant 0 : index
    %c143 = arith.constant 143 : index
    %77 = vector.load %arg5[%c0_34, %c143] : memref<4x1024xf32, #tpu.memory_space<vmem>>, vector<4x256xf32>
    %c0_35 = arith.constant 0 : index
    %c655 = arith.constant 655 : index
    %78 = vector.load %arg5[%c0_35, %c655] : memref<4x1024xf32, #tpu.memory_space<vmem>>, vector<4x256xf32>
    %79 = tpu.concatenate %77, %78 in 1 : vector<4x256xf32>, vector<4x256xf32> -> vector<4x512xf32>
    %cst_36 = arith.constant 0.000000e+00 : f32
    %80 = vector.shape_cast %17 : vector<1x512xi1> to vector<1x512xi1>
    %81 = vector.broadcast %80 : vector<1x512xi1> to vector<4x512xi1>
    %82 = vector.broadcast %cst_36 : f32 to vector<4x512xf32>
    %83 = arith.select %81, %79, %82 : vector<4x512xi1>, vector<4x512xf32>
    %c0_37 = arith.constant 0 : index
    %c144 = arith.constant 144 : index
    %84 = vector.load %arg5[%c0_37, %c144] : memref<4x1024xf32, #tpu.memory_space<vmem>>, vector<4x256xf32>
    %c0_38 = arith.constant 0 : index
    %c656 = arith.constant 656 : index
    %85 = vector.load %arg5[%c0_38, %c656] : memref<4x1024xf32, #tpu.memory_space<vmem>>, vector<4x256xf32>
    %86 = tpu.concatenate %84, %85 in 1 : vector<4x256xf32>, vector<4x256xf32> -> vector<4x512xf32>
    %87 = tpu.concatenate %83, %86 in 0 : vector<4x512xf32>, vector<4x512xf32> -> vector<8x512xf32>
    %c24 = arith.constant 24 : index
    %c0_39 = arith.constant 0 : index
    %88 = vector.load %arg6[%c24, %c0_39] : memref<36x512xf32, #tpu.memory_space<vmem>>, vector<8x512xf32>
    tpu.vector_store %arg6[%c24, %c0_39], %87 {strides = array<i32>} : memref<36x512xf32, #tpu.memory_space<vmem>>, vector<8x512xf32>,
    %c0_40 = arith.constant 0 : index
    %c145 = arith.constant 145 : index
    %89 = vector.load %arg5[%c0_40, %c145] : memref<4x1024xf32, #tpu.memory_space<vmem>>, vector<4x256xf32>
    %c0_41 = arith.constant 0 : index
    %c657 = arith.constant 657 : index
    %90 = vector.load %arg5[%c0_41, %c657] : memref<4x1024xf32, #tpu.memory_space<vmem>>, vector<4x256xf32>
    %91 = tpu.concatenate %89, %90 in 1 : vector<4x256xf32>, vector<4x256xf32> -> vector<4x512xf32>
    %cst_42 = arith.constant 0.000000e+00 : f32
    %92 = vector.shape_cast %22 : vector<1x512xi1> to vector<1x512xi1>
    %93 = vector.broadcast %92 : vector<1x512xi1> to vector<4x512xi1>
    %94 = vector.broadcast %cst_42 : f32 to vector<4x512xf32>
    %95 = arith.select %93, %91, %94 : vector<4x512xi1>, vector<4x512xf32>
    %c32 = arith.constant 32 : index
    %c0_43 = arith.constant 0 : index
    %96 = vector.load %arg6[%c32, %c0_43] : memref<36x512xf32, #tpu.memory_space<vmem>>, vector<4x512xf32>
    tpu.vector_store %arg6[%c32, %c0_43], %95 {strides = array<i32>} : memref<36x512xf32, #tpu.memory_space<vmem>>, vector<4x512xf32>,
    %c0_44 = arith.constant 0 : index
    %c0_45 = arith.constant 0 : index
    %c0_46 = arith.constant 0 : index
    %97 = vector.load %arg2[%c0_44, %c0_45, %c0_46] : memref<5x8x36xf32, #tpu.memory_space<vmem>>, vector<1x4x36xf32>
    %98 = vector.shape_cast %97 : vector<1x4x36xf32> to vector<4x36xf32>
    %c0_47 = arith.constant 0 : index
    %c0_48 = arith.constant 0 : index
    %99 = vector.load %arg6[%c0_47, %c0_48] : memref<36x512xf32, #tpu.memory_space<vmem>>, vector<36x512xf32>
    %cst_49 = arith.constant dense<0.000000e+00> : vector<4x512xf32>
    %100 = tpu.matmul %98, %99, %cst_49 {dimension_numbers = #tpu.dot_dimension_numbers<[1], [0], [0], [1], [0, 0, 1, 1], [], []>} : vector<4x36xf32>, vector<36x512xf32>, vector<4x512xf32> -> vector<4x512xf32>
    %c0_50 = arith.constant 0 : index
    %c0_51 = arith.constant 0 : index
    %c0_52 = arith.constant 0 : index
    %101 = vector.load %arg3[%c0_50, %c0_51, %c0_52] : memref<5x4x1xf32, #tpu.memory_space<vmem>>, vector<1x4x1xf32>
    %102 = vector.shape_cast %101 : vector<1x4x1xf32> to vector<4x1xf32>
    %103 = vector.broadcast %102 : vector<4x1xf32> to vector<4x512xf32>
    %104 = arith.addf %100, %103 : vector<4x512xf32>
    %cst_53 = arith.constant 0.000000e+00 : f32
    %105 = vector.broadcast %cst_53 : f32 to vector<4x512xf32>
    %106 = arith.maximumf %104, %105 : vector<4x512xf32>
    %107 = arith.subf %32, %106 : vector<4x512xf32>
    %108 = vector.extract_strided_slice %107 {offsets = [0, 0], sizes = [4, 256], strides = [1, 1]} : vector<4x512xf32> to vector<4x256xf32>
    %c0_54 = arith.constant 0 : index
    %c128_55 = arith.constant 128 : index
    %109 = vector.load %arg5[%c0_54, %c128_55] : memref<4x1024xf32, #tpu.memory_space<vmem>>, vector<4x256xf32>
    tpu.vector_store %arg5[%c0_54, %c128_55], %108 {strides = array<i32>} : memref<4x1024xf32, #tpu.memory_space<vmem>>, vector<4x256xf32>,
    %110 = vector.extract_strided_slice %107 {offsets = [0, 256], sizes = [4, 256], strides = [1, 1]} : vector<4x512xf32> to vector<4x256xf32>
    %c0_56 = arith.constant 0 : index
    %c640_57 = arith.constant 640 : index
    %111 = vector.load %arg5[%c0_56, %c640_57] : memref<4x1024xf32, #tpu.memory_space<vmem>>, vector<4x256xf32>
    tpu.vector_store %arg5[%c0_56, %c640_57], %110 {strides = array<i32>} : memref<4x1024xf32, #tpu.memory_space<vmem>>, vector<4x256xf32>,
    %c0_58 = arith.constant 0 : index
    %c77 = arith.constant 77 : index
    %112 = vector.load %arg5[%c0_58, %c77] : memref<4x1024xf32, #tpu.memory_space<vmem>>, vector<4x256xf32>
    %c0_59 = arith.constant 0 : index
    %c589 = arith.constant 589 : index
    %113 = vector.load %arg5[%c0_59, %c589] : memref<4x1024xf32, #tpu.memory_space<vmem>>, vector<4x256xf32>
    %114 = tpu.concatenate %112, %113 in 1 : vector<4x256xf32>, vector<4x256xf32> -> vector<4x512xf32>
    %cst_60 = arith.constant 0.000000e+00 : f32
    %115 = vector.shape_cast %12 : vector<1x512xi1> to vector<1x512xi1>
    %116 = vector.broadcast %115 : vector<1x512xi1> to vector<4x512xi1>
    %117 = vector.broadcast %cst_60 : f32 to vector<4x512xf32>
    %118 = arith.select %116, %114, %117 : vector<4x512xi1>, vector<4x512xf32>
    %c0_61 = arith.constant 0 : index
    %c80 = arith.constant 80 : index
    %119 = vector.load %arg5[%c0_61, %c80] : memref<4x1024xf32, #tpu.memory_space<vmem>>, vector<4x256xf32>
    %c0_62 = arith.constant 0 : index
    %c592 = arith.constant 592 : index
    %120 = vector.load %arg5[%c0_62, %c592] : memref<4x1024xf32, #tpu.memory_space<vmem>>, vector<4x256xf32>
    %121 = tpu.concatenate %119, %120 in 1 : vector<4x256xf32>, vector<4x256xf32> -> vector<4x512xf32>
    %122 = tpu.concatenate %118, %121 in 0 : vector<4x512xf32>, vector<4x512xf32> -> vector<8x512xf32>
    %c0_63 = arith.constant 0 : index
    %c0_64 = arith.constant 0 : index
    %123 = vector.load %arg6[%c0_63, %c0_64] : memref<36x512xf32, #tpu.memory_space<vmem>>, vector<8x512xf32>
    tpu.vector_store %arg6[%c0_63, %c0_64], %122 {strides = array<i32>} : memref<36x512xf32, #tpu.memory_space<vmem>>, vector<8x512xf32>,
    %c0_65 = arith.constant 0 : index
    %c83 = arith.constant 83 : index
    %124 = vector.load %arg5[%c0_65, %c83] : memref<4x1024xf32, #tpu.memory_space<vmem>>, vector<4x256xf32>
    %c0_66 = arith.constant 0 : index
    %c595 = arith.constant 595 : index
    %125 = vector.load %arg5[%c0_66, %c595] : memref<4x1024xf32, #tpu.memory_space<vmem>>, vector<4x256xf32>
    %126 = tpu.concatenate %124, %125 in 1 : vector<4x256xf32>, vector<4x256xf32> -> vector<4x512xf32>
    %cst_67 = arith.constant 0.000000e+00 : f32
    %127 = vector.shape_cast %27 : vector<1x512xi1> to vector<1x512xi1>
    %128 = vector.broadcast %127 : vector<1x512xi1> to vector<4x512xi1>
    %129 = vector.broadcast %cst_67 : f32 to vector<4x512xf32>
    %130 = arith.select %128, %126, %129 : vector<4x512xi1>, vector<4x512xf32>
    %c0_68 = arith.constant 0 : index
    %c125 = arith.constant 125 : index
    %131 = vector.load %arg5[%c0_68, %c125] : memref<4x1024xf32, #tpu.memory_space<vmem>>, vector<4x256xf32>
    %c0_69 = arith.constant 0 : index
    %c637 = arith.constant 637 : index
    %132 = vector.load %arg5[%c0_69, %c637] : memref<4x1024xf32, #tpu.memory_space<vmem>>, vector<4x256xf32>
    %133 = tpu.concatenate %131, %132 in 1 : vector<4x256xf32>, vector<4x256xf32> -> vector<4x512xf32>
    %cst_70 = arith.constant 0.000000e+00 : f32
    %134 = vector.shape_cast %12 : vector<1x512xi1> to vector<1x512xi1>
    %135 = vector.broadcast %134 : vector<1x512xi1> to vector<4x512xi1>
    %136 = vector.broadcast %cst_70 : f32 to vector<4x512xf32>
    %137 = arith.select %135, %133, %136 : vector<4x512xi1>, vector<4x512xf32>
    %138 = tpu.concatenate %130, %137 in 0 : vector<4x512xf32>, vector<4x512xf32> -> vector<8x512xf32>
    %c8_71 = arith.constant 8 : index
    %c0_72 = arith.constant 0 : index
    %139 = vector.load %arg6[%c8_71, %c0_72] : memref<36x512xf32, #tpu.memory_space<vmem>>, vector<8x512xf32>
    tpu.vector_store %arg6[%c8_71, %c0_72], %138 {strides = array<i32>} : memref<36x512xf32, #tpu.memory_space<vmem>>, vector<8x512xf32>,
    %c0_73 = arith.constant 0 : index
    %c128_74 = arith.constant 128 : index
    %140 = vector.load %arg5[%c0_73, %c128_74] : memref<4x1024xf32, #tpu.memory_space<vmem>>, vector<4x256xf32>
    %c0_75 = arith.constant 0 : index
    %c640_76 = arith.constant 640 : index
    %141 = vector.load %arg5[%c0_75, %c640_76] : memref<4x1024xf32, #tpu.memory_space<vmem>>, vector<4x256xf32>
    %142 = tpu.concatenate %140, %141 in 1 : vector<4x256xf32>, vector<4x256xf32> -> vector<4x512xf32>
    %c0_77 = arith.constant 0 : index
    %c131 = arith.constant 131 : index
    %143 = vector.load %arg5[%c0_77, %c131] : memref<4x1024xf32, #tpu.memory_space<vmem>>, vector<4x256xf32>
    %c0_78 = arith.constant 0 : index
    %c643 = arith.constant 643 : index
    %144 = vector.load %arg5[%c0_78, %c643] : memref<4x1024xf32, #tpu.memory_space<vmem>>, vector<4x256xf32>
    %145 = tpu.concatenate %143, %144 in 1 : vector<4x256xf32>, vector<4x256xf32> -> vector<4x512xf32>
    %cst_79 = arith.constant 0.000000e+00 : f32
    %146 = vector.shape_cast %27 : vector<1x512xi1> to vector<1x512xi1>
    %147 = vector.broadcast %146 : vector<1x512xi1> to vector<4x512xi1>
    %148 = vector.broadcast %cst_79 : f32 to vector<4x512xf32>
    %149 = arith.select %147, %145, %148 : vector<4x512xi1>, vector<4x512xf32>
    %150 = tpu.concatenate %142, %149 in 0 : vector<4x512xf32>, vector<4x512xf32> -> vector<8x512xf32>
    %c16_80 = arith.constant 16 : index
    %c0_81 = arith.constant 0 : index
    %151 = vector.load %arg6[%c16_80, %c0_81] : memref<36x512xf32, #tpu.memory_space<vmem>>, vector<8x512xf32>
    tpu.vector_store %arg6[%c16_80, %c0_81], %150 {strides = array<i32>} : memref<36x512xf32, #tpu.memory_space<vmem>>, vector<8x512xf32>,
    %c0_82 = arith.constant 0 : index
    %c173 = arith.constant 173 : index
    %152 = vector.load %arg5[%c0_82, %c173] : memref<4x1024xf32, #tpu.memory_space<vmem>>, vector<4x256xf32>
    %c0_83 = arith.constant 0 : index
    %c685 = arith.constant 685 : index
    %153 = vector.load %arg5[%c0_83, %c685] : memref<4x1024xf32, #tpu.memory_space<vmem>>, vector<4x256xf32>
    %154 = tpu.concatenate %152, %153 in 1 : vector<4x256xf32>, vector<4x256xf32> -> vector<4x512xf32>
    %cst_84 = arith.constant 0.000000e+00 : f32
    %155 = vector.shape_cast %12 : vector<1x512xi1> to vector<1x512xi1>
    %156 = vector.broadcast %155 : vector<1x512xi1> to vector<4x512xi1>
    %157 = vector.broadcast %cst_84 : f32 to vector<4x512xf32>
    %158 = arith.select %156, %154, %157 : vector<4x512xi1>, vector<4x512xf32>
    %c0_85 = arith.constant 0 : index
    %c176 = arith.constant 176 : index
    %159 = vector.load %arg5[%c0_85, %c176] : memref<4x1024xf32, #tpu.memory_space<vmem>>, vector<4x256xf32>
    %c0_86 = arith.constant 0 : index
    %c688 = arith.constant 688 : index
    %160 = vector.load %arg5[%c0_86, %c688] : memref<4x1024xf32, #tpu.memory_space<vmem>>, vector<4x256xf32>
    %161 = tpu.concatenate %159, %160 in 1 : vector<4x256xf32>, vector<4x256xf32> -> vector<4x512xf32>
    %162 = tpu.concatenate %158, %161 in 0 : vector<4x512xf32>, vector<4x512xf32> -> vector<8x512xf32>
    %c24_87 = arith.constant 24 : index
    %c0_88 = arith.constant 0 : index
    %163 = vector.load %arg6[%c24_87, %c0_88] : memref<36x512xf32, #tpu.memory_space<vmem>>, vector<8x512xf32>
    tpu.vector_store %arg6[%c24_87, %c0_88], %162 {strides = array<i32>} : memref<36x512xf32, #tpu.memory_space<vmem>>, vector<8x512xf32>,
    %c0_89 = arith.constant 0 : index
    %c179 = arith.constant 179 : index
    %164 = vector.load %arg5[%c0_89, %c179] : memref<4x1024xf32, #tpu.memory_space<vmem>>, vector<4x256xf32>
    %c0_90 = arith.constant 0 : index
    %c691 = arith.constant 691 : index
    %165 = vector.load %arg5[%c0_90, %c691] : memref<4x1024xf32, #tpu.memory_space<vmem>>, vector<4x256xf32>
    %166 = tpu.concatenate %164, %165 in 1 : vector<4x256xf32>, vector<4x256xf32> -> vector<4x512xf32>
    %cst_91 = arith.constant 0.000000e+00 : f32
    %167 = vector.shape_cast %27 : vector<1x512xi1> to vector<1x512xi1>
    %168 = vector.broadcast %167 : vector<1x512xi1> to vector<4x512xi1>
    %169 = vector.broadcast %cst_91 : f32 to vector<4x512xf32>
    %170 = arith.select %168, %166, %169 : vector<4x512xi1>, vector<4x512xf32>
    %c32_92 = arith.constant 32 : index
    %c0_93 = arith.constant 0 : index
    %171 = vector.load %arg6[%c32_92, %c0_93] : memref<36x512xf32, #tpu.memory_space<vmem>>, vector<4x512xf32>
    tpu.vector_store %arg6[%c32_92, %c0_93], %170 {strides = array<i32>} : memref<36x512xf32, #tpu.memory_space<vmem>>, vector<4x512xf32>,
    %c1_94 = arith.constant 1 : index
    %c0_95 = arith.constant 0 : index
    %c0_96 = arith.constant 0 : index
    %172 = vector.load %arg2[%c1_94, %c0_95, %c0_96] : memref<5x8x36xf32, #tpu.memory_space<vmem>>, vector<1x4x36xf32>
    %173 = vector.shape_cast %172 : vector<1x4x36xf32> to vector<4x36xf32>
    %c0_97 = arith.constant 0 : index
    %c0_98 = arith.constant 0 : index
    %174 = vector.load %arg6[%c0_97, %c0_98] : memref<36x512xf32, #tpu.memory_space<vmem>>, vector<36x512xf32>
    %cst_99 = arith.constant dense<0.000000e+00> : vector<4x512xf32>
    %175 = tpu.matmul %173, %174, %cst_99 {dimension_numbers = #tpu.dot_dimension_numbers<[1], [0], [0], [1], [0, 0, 1, 1], [], []>} : vector<4x36xf32>, vector<36x512xf32>, vector<4x512xf32> -> vector<4x512xf32>
    %c1_100 = arith.constant 1 : index
    %c0_101 = arith.constant 0 : index
    %c0_102 = arith.constant 0 : index
    %176 = vector.load %arg3[%c1_100, %c0_101, %c0_102] : memref<5x4x1xf32, #tpu.memory_space<vmem>>, vector<1x4x1xf32>
    %177 = vector.shape_cast %176 : vector<1x4x1xf32> to vector<4x1xf32>
    %178 = vector.broadcast %177 : vector<4x1xf32> to vector<4x512xf32>
    %179 = arith.addf %175, %178 : vector<4x512xf32>
    %180 = arith.addf %179, %106 : vector<4x512xf32>
    %cst_103 = arith.constant 0.000000e+00 : f32
    %181 = vector.broadcast %cst_103 : f32 to vector<4x512xf32>
    %182 = arith.maximumf %180, %181 : vector<4x512xf32>
    %183 = vector.extract_strided_slice %182 {offsets = [0, 0], sizes = [4, 256], strides = [1, 1]} : vector<4x512xf32> to vector<4x256xf32>
    %c0_104 = arith.constant 0 : index
    %c128_105 = arith.constant 128 : index
    %184 = vector.load %arg5[%c0_104, %c128_105] : memref<4x1024xf32, #tpu.memory_space<vmem>>, vector<4x256xf32>
    tpu.vector_store %arg5[%c0_104, %c128_105], %183 {strides = array<i32>} : memref<4x1024xf32, #tpu.memory_space<vmem>>, vector<4x256xf32>,
    %185 = vector.extract_strided_slice %182 {offsets = [0, 256], sizes = [4, 256], strides = [1, 1]} : vector<4x512xf32> to vector<4x256xf32>
    %c0_106 = arith.constant 0 : index
    %c640_107 = arith.constant 640 : index
    %186 = vector.load %arg5[%c0_106, %c640_107] : memref<4x1024xf32, #tpu.memory_space<vmem>>, vector<4x256xf32>
    tpu.vector_store %arg5[%c0_106, %c640_107], %185 {strides = array<i32>} : memref<4x1024xf32, #tpu.memory_space<vmem>>, vector<4x256xf32>,
    %c0_108 = arith.constant 0 : index
    %c111_109 = arith.constant 111 : index
    %187 = vector.load %arg5[%c0_108, %c111_109] : memref<4x1024xf32, #tpu.memory_space<vmem>>, vector<4x256xf32>
    %c0_110 = arith.constant 0 : index
    %c623_111 = arith.constant 623 : index
    %188 = vector.load %arg5[%c0_110, %c623_111] : memref<4x1024xf32, #tpu.memory_space<vmem>>, vector<4x256xf32>
    %189 = tpu.concatenate %187, %188 in 1 : vector<4x256xf32>, vector<4x256xf32> -> vector<4x512xf32>
    %cst_112 = arith.constant 0.000000e+00 : f32
    %190 = vector.shape_cast %17 : vector<1x512xi1> to vector<1x512xi1>
    %191 = vector.broadcast %190 : vector<1x512xi1> to vector<4x512xi1>
    %192 = vector.broadcast %cst_112 : f32 to vector<4x512xf32>
    %193 = arith.select %191, %189, %192 : vector<4x512xi1>, vector<4x512xf32>
    %c0_113 = arith.constant 0 : index
    %c112_114 = arith.constant 112 : index
    %194 = vector.load %arg5[%c0_113, %c112_114] : memref<4x1024xf32, #tpu.memory_space<vmem>>, vector<4x256xf32>
    %c0_115 = arith.constant 0 : index
    %c624_116 = arith.constant 624 : index
    %195 = vector.load %arg5[%c0_115, %c624_116] : memref<4x1024xf32, #tpu.memory_space<vmem>>, vector<4x256xf32>
    %196 = tpu.concatenate %194, %195 in 1 : vector<4x256xf32>, vector<4x256xf32> -> vector<4x512xf32>
    %197 = tpu.concatenate %193, %196 in 0 : vector<4x512xf32>, vector<4x512xf32> -> vector<8x512xf32>
    %c0_117 = arith.constant 0 : index
    %c0_118 = arith.constant 0 : index
    %198 = vector.load %arg6[%c0_117, %c0_118] : memref<36x512xf32, #tpu.memory_space<vmem>>, vector<8x512xf32>
    tpu.vector_store %arg6[%c0_117, %c0_118], %197 {strides = array<i32>} : memref<36x512xf32, #tpu.memory_space<vmem>>, vector<8x512xf32>,
    %c0_119 = arith.constant 0 : index
    %c113_120 = arith.constant 113 : index
    %199 = vector.load %arg5[%c0_119, %c113_120] : memref<4x1024xf32, #tpu.memory_space<vmem>>, vector<4x256xf32>
    %c0_121 = arith.constant 0 : index
    %c625_122 = arith.constant 625 : index
    %200 = vector.load %arg5[%c0_121, %c625_122] : memref<4x1024xf32, #tpu.memory_space<vmem>>, vector<4x256xf32>
    %201 = tpu.concatenate %199, %200 in 1 : vector<4x256xf32>, vector<4x256xf32> -> vector<4x512xf32>
    %cst_123 = arith.constant 0.000000e+00 : f32
    %202 = vector.shape_cast %22 : vector<1x512xi1> to vector<1x512xi1>
    %203 = vector.broadcast %202 : vector<1x512xi1> to vector<4x512xi1>
    %204 = vector.broadcast %cst_123 : f32 to vector<4x512xf32>
    %205 = arith.select %203, %201, %204 : vector<4x512xi1>, vector<4x512xf32>
    %c0_124 = arith.constant 0 : index
    %c127_125 = arith.constant 127 : index
    %206 = vector.load %arg5[%c0_124, %c127_125] : memref<4x1024xf32, #tpu.memory_space<vmem>>, vector<4x256xf32>
    %c0_126 = arith.constant 0 : index
    %c639_127 = arith.constant 639 : index
    %207 = vector.load %arg5[%c0_126, %c639_127] : memref<4x1024xf32, #tpu.memory_space<vmem>>, vector<4x256xf32>
    %208 = tpu.concatenate %206, %207 in 1 : vector<4x256xf32>, vector<4x256xf32> -> vector<4x512xf32>
    %cst_128 = arith.constant 0.000000e+00 : f32
    %209 = vector.shape_cast %17 : vector<1x512xi1> to vector<1x512xi1>
    %210 = vector.broadcast %209 : vector<1x512xi1> to vector<4x512xi1>
    %211 = vector.broadcast %cst_128 : f32 to vector<4x512xf32>
    %212 = arith.select %210, %208, %211 : vector<4x512xi1>, vector<4x512xf32>
    %213 = tpu.concatenate %205, %212 in 0 : vector<4x512xf32>, vector<4x512xf32> -> vector<8x512xf32>
    %c8_129 = arith.constant 8 : index
    %c0_130 = arith.constant 0 : index
    %214 = vector.load %arg6[%c8_129, %c0_130] : memref<36x512xf32, #tpu.memory_space<vmem>>, vector<8x512xf32>
    tpu.vector_store %arg6[%c8_129, %c0_130], %213 {strides = array<i32>} : memref<36x512xf32, #tpu.memory_space<vmem>>, vector<8x512xf32>,
    %c0_131 = arith.constant 0 : index
    %c128_132 = arith.constant 128 : index
    %215 = vector.load %arg5[%c0_131, %c128_132] : memref<4x1024xf32, #tpu.memory_space<vmem>>, vector<4x256xf32>
    %c0_133 = arith.constant 0 : index
    %c640_134 = arith.constant 640 : index
    %216 = vector.load %arg5[%c0_133, %c640_134] : memref<4x1024xf32, #tpu.memory_space<vmem>>, vector<4x256xf32>
    %217 = tpu.concatenate %215, %216 in 1 : vector<4x256xf32>, vector<4x256xf32> -> vector<4x512xf32>
    %c0_135 = arith.constant 0 : index
    %c129_136 = arith.constant 129 : index
    %218 = vector.load %arg5[%c0_135, %c129_136] : memref<4x1024xf32, #tpu.memory_space<vmem>>, vector<4x256xf32>
    %c0_137 = arith.constant 0 : index
    %c641_138 = arith.constant 641 : index
    %219 = vector.load %arg5[%c0_137, %c641_138] : memref<4x1024xf32, #tpu.memory_space<vmem>>, vector<4x256xf32>
    %220 = tpu.concatenate %218, %219 in 1 : vector<4x256xf32>, vector<4x256xf32> -> vector<4x512xf32>
    %cst_139 = arith.constant 0.000000e+00 : f32
    %221 = vector.shape_cast %22 : vector<1x512xi1> to vector<1x512xi1>
    %222 = vector.broadcast %221 : vector<1x512xi1> to vector<4x512xi1>
    %223 = vector.broadcast %cst_139 : f32 to vector<4x512xf32>
    %224 = arith.select %222, %220, %223 : vector<4x512xi1>, vector<4x512xf32>
    %225 = tpu.concatenate %217, %224 in 0 : vector<4x512xf32>, vector<4x512xf32> -> vector<8x512xf32>
    %c16_140 = arith.constant 16 : index
    %c0_141 = arith.constant 0 : index
    %226 = vector.load %arg6[%c16_140, %c0_141] : memref<36x512xf32, #tpu.memory_space<vmem>>, vector<8x512xf32>
    tpu.vector_store %arg6[%c16_140, %c0_141], %225 {strides = array<i32>} : memref<36x512xf32, #tpu.memory_space<vmem>>, vector<8x512xf32>,
    %c0_142 = arith.constant 0 : index
    %c143_143 = arith.constant 143 : index
    %227 = vector.load %arg5[%c0_142, %c143_143] : memref<4x1024xf32, #tpu.memory_space<vmem>>, vector<4x256xf32>
    %c0_144 = arith.constant 0 : index
    %c655_145 = arith.constant 655 : index
    %228 = vector.load %arg5[%c0_144, %c655_145] : memref<4x1024xf32, #tpu.memory_space<vmem>>, vector<4x256xf32>
    %229 = tpu.concatenate %227, %228 in 1 : vector<4x256xf32>, vector<4x256xf32> -> vector<4x512xf32>
    %cst_146 = arith.constant 0.000000e+00 : f32
    %230 = vector.shape_cast %17 : vector<1x512xi1> to vector<1x512xi1>
    %231 = vector.broadcast %230 : vector<1x512xi1> to vector<4x512xi1>
    %232 = vector.broadcast %cst_146 : f32 to vector<4x512xf32>
    %233 = arith.select %231, %229, %232 : vector<4x512xi1>, vector<4x512xf32>
    %c0_147 = arith.constant 0 : index
    %c144_148 = arith.constant 144 : index
    %234 = vector.load %arg5[%c0_147, %c144_148] : memref<4x1024xf32, #tpu.memory_space<vmem>>, vector<4x256xf32>
    %c0_149 = arith.constant 0 : index
    %c656_150 = arith.constant 656 : index
    %235 = vector.load %arg5[%c0_149, %c656_150] : memref<4x1024xf32, #tpu.memory_space<vmem>>, vector<4x256xf32>
    %236 = tpu.concatenate %234, %235 in 1 : vector<4x256xf32>, vector<4x256xf32> -> vector<4x512xf32>
    %237 = tpu.concatenate %233, %236 in 0 : vector<4x512xf32>, vector<4x512xf32> -> vector<8x512xf32>
    %c24_151 = arith.constant 24 : index
    %c0_152 = arith.constant 0 : index
    %238 = vector.load %arg6[%c24_151, %c0_152] : memref<36x512xf32, #tpu.memory_space<vmem>>, vector<8x512xf32>
    tpu.vector_store %arg6[%c24_151, %c0_152], %237 {strides = array<i32>} : memref<36x512xf32, #tpu.memory_space<vmem>>, vector<8x512xf32>,
    %c0_153 = arith.constant 0 : index
    %c145_154 = arith.constant 145 : index
    %239 = vector.load %arg5[%c0_153, %c145_154] : memref<4x1024xf32, #tpu.memory_space<vmem>>, vector<4x256xf32>
    %c0_155 = arith.constant 0 : index
    %c657_156 = arith.constant 657 : index
    %240 = vector.load %arg5[%c0_155, %c657_156] : memref<4x1024xf32, #tpu.memory_space<vmem>>, vector<4x256xf32>
    %241 = tpu.concatenate %239, %240 in 1 : vector<4x256xf32>, vector<4x256xf32> -> vector<4x512xf32>
    %cst_157 = arith.constant 0.000000e+00 : f32
    %242 = vector.shape_cast %22 : vector<1x512xi1> to vector<1x512xi1>
    %243 = vector.broadcast %242 : vector<1x512xi1> to vector<4x512xi1>
    %244 = vector.broadcast %cst_157 : f32 to vector<4x512xf32>
    %245 = arith.select %243, %241, %244 : vector<4x512xi1>, vector<4x512xf32>
    %c32_158 = arith.constant 32 : index
    %c0_159 = arith.constant 0 : index
    %246 = vector.load %arg6[%c32_158, %c0_159] : memref<36x512xf32, #tpu.memory_space<vmem>>, vector<4x512xf32>
    tpu.vector_store %arg6[%c32_158, %c0_159], %245 {strides = array<i32>} : memref<36x512xf32, #tpu.memory_space<vmem>>, vector<4x512xf32>,
    %c2 = arith.constant 2 : index
    %c0_160 = arith.constant 0 : index
    %c0_161 = arith.constant 0 : index
    %247 = vector.load %arg2[%c2, %c0_160, %c0_161] : memref<5x8x36xf32, #tpu.memory_space<vmem>>, vector<1x8x36xf32>
    %248 = vector.shape_cast %247 : vector<1x8x36xf32> to vector<8x36xf32>
    %c0_162 = arith.constant 0 : index
    %c0_163 = arith.constant 0 : index
    %249 = vector.load %arg6[%c0_162, %c0_163] : memref<36x512xf32, #tpu.memory_space<vmem>>, vector<36x512xf32>
    %cst_164 = arith.constant dense<0.000000e+00> : vector<8x512xf32>
    %250 = tpu.matmul %248, %249, %cst_164 {dimension_numbers = #tpu.dot_dimension_numbers<[1], [0], [0], [1], [0, 0, 1, 1], [], []>} : vector<8x36xf32>, vector<36x512xf32>, vector<8x512xf32> -> vector<8x512xf32>
    %251 = vector.extract_strided_slice %250 {offsets = [0, 0], sizes = [4, 512], strides = [1, 1]} : vector<8x512xf32> to vector<4x512xf32>
    %c2_165 = arith.constant 2 : index
    %c0_166 = arith.constant 0 : index
    %c0_167 = arith.constant 0 : index
    %252 = vector.load %arg3[%c2_165, %c0_166, %c0_167] : memref<5x4x1xf32, #tpu.memory_space<vmem>>, vector<1x4x1xf32>
    %253 = vector.shape_cast %252 : vector<1x4x1xf32> to vector<4x1xf32>
    %254 = vector.broadcast %253 : vector<4x1xf32> to vector<4x512xf32>
    %255 = arith.addf %251, %254 : vector<4x512xf32>
    %cst_168 = arith.constant 0.000000e+00 : f32
    %256 = vector.broadcast %cst_168 : f32 to vector<4x512xf32>
    %257 = arith.maximumf %255, %256 : vector<4x512xf32>
    %258 = vector.extract_strided_slice %250 {offsets = [4, 0], sizes = [4, 512], strides = [1, 1]} : vector<8x512xf32> to vector<4x512xf32>
    %259 = arith.subf %182, %257 : vector<4x512xf32>
    %260 = vector.extract_strided_slice %259 {offsets = [0, 0], sizes = [4, 256], strides = [1, 1]} : vector<4x512xf32> to vector<4x256xf32>
    %c0_169 = arith.constant 0 : index
    %c128_170 = arith.constant 128 : index
    %261 = vector.load %arg5[%c0_169, %c128_170] : memref<4x1024xf32, #tpu.memory_space<vmem>>, vector<4x256xf32>
    tpu.vector_store %arg5[%c0_169, %c128_170], %260 {strides = array<i32>} : memref<4x1024xf32, #tpu.memory_space<vmem>>, vector<4x256xf32>,
    %262 = vector.extract_strided_slice %259 {offsets = [0, 256], sizes = [4, 256], strides = [1, 1]} : vector<4x512xf32> to vector<4x256xf32>
    %c0_171 = arith.constant 0 : index
    %c640_172 = arith.constant 640 : index
    %263 = vector.load %arg5[%c0_171, %c640_172] : memref<4x1024xf32, #tpu.memory_space<vmem>>, vector<4x256xf32>
    tpu.vector_store %arg5[%c0_171, %c640_172], %262 {strides = array<i32>} : memref<4x1024xf32, #tpu.memory_space<vmem>>, vector<4x256xf32>,
    %c0_173 = arith.constant 0 : index
    %c77_174 = arith.constant 77 : index
    %264 = vector.load %arg5[%c0_173, %c77_174] : memref<4x1024xf32, #tpu.memory_space<vmem>>, vector<4x256xf32>
    %c0_175 = arith.constant 0 : index
    %c589_176 = arith.constant 589 : index
    %265 = vector.load %arg5[%c0_175, %c589_176] : memref<4x1024xf32, #tpu.memory_space<vmem>>, vector<4x256xf32>
    %266 = tpu.concatenate %264, %265 in 1 : vector<4x256xf32>, vector<4x256xf32> -> vector<4x512xf32>
    %cst_177 = arith.constant 0.000000e+00 : f32
    %267 = vector.shape_cast %12 : vector<1x512xi1> to vector<1x512xi1>
    %268 = vector.broadcast %267 : vector<1x512xi1> to vector<4x512xi1>
    %269 = vector.broadcast %cst_177 : f32 to vector<4x512xf32>
    %270 = arith.select %268, %266, %269 : vector<4x512xi1>, vector<4x512xf32>
    %c0_178 = arith.constant 0 : index
    %c80_179 = arith.constant 80 : index
    %271 = vector.load %arg5[%c0_178, %c80_179] : memref<4x1024xf32, #tpu.memory_space<vmem>>, vector<4x256xf32>
    %c0_180 = arith.constant 0 : index
    %c592_181 = arith.constant 592 : index
    %272 = vector.load %arg5[%c0_180, %c592_181] : memref<4x1024xf32, #tpu.memory_space<vmem>>, vector<4x256xf32>
    %273 = tpu.concatenate %271, %272 in 1 : vector<4x256xf32>, vector<4x256xf32> -> vector<4x512xf32>
    %274 = tpu.concatenate %270, %273 in 0 : vector<4x512xf32>, vector<4x512xf32> -> vector<8x512xf32>
    %c0_182 = arith.constant 0 : index
    %c0_183 = arith.constant 0 : index
    %275 = vector.load %arg6[%c0_182, %c0_183] : memref<36x512xf32, #tpu.memory_space<vmem>>, vector<8x512xf32>
    tpu.vector_store %arg6[%c0_182, %c0_183], %274 {strides = array<i32>} : memref<36x512xf32, #tpu.memory_space<vmem>>, vector<8x512xf32>,
    %c0_184 = arith.constant 0 : index
    %c83_185 = arith.constant 83 : index
    %276 = vector.load %arg5[%c0_184, %c83_185] : memref<4x1024xf32, #tpu.memory_space<vmem>>, vector<4x256xf32>
    %c0_186 = arith.constant 0 : index
    %c595_187 = arith.constant 595 : index
    %277 = vector.load %arg5[%c0_186, %c595_187] : memref<4x1024xf32, #tpu.memory_space<vmem>>, vector<4x256xf32>
    %278 = tpu.concatenate %276, %277 in 1 : vector<4x256xf32>, vector<4x256xf32> -> vector<4x512xf32>
    %cst_188 = arith.constant 0.000000e+00 : f32
    %279 = vector.shape_cast %27 : vector<1x512xi1> to vector<1x512xi1>
    %280 = vector.broadcast %279 : vector<1x512xi1> to vector<4x512xi1>
    %281 = vector.broadcast %cst_188 : f32 to vector<4x512xf32>
    %282 = arith.select %280, %278, %281 : vector<4x512xi1>, vector<4x512xf32>
    %c0_189 = arith.constant 0 : index
    %c125_190 = arith.constant 125 : index
    %283 = vector.load %arg5[%c0_189, %c125_190] : memref<4x1024xf32, #tpu.memory_space<vmem>>, vector<4x256xf32>
    %c0_191 = arith.constant 0 : index
    %c637_192 = arith.constant 637 : index
    %284 = vector.load %arg5[%c0_191, %c637_192] : memref<4x1024xf32, #tpu.memory_space<vmem>>, vector<4x256xf32>
    %285 = tpu.concatenate %283, %284 in 1 : vector<4x256xf32>, vector<4x256xf32> -> vector<4x512xf32>
    %cst_193 = arith.constant 0.000000e+00 : f32
    %286 = vector.shape_cast %12 : vector<1x512xi1> to vector<1x512xi1>
    %287 = vector.broadcast %286 : vector<1x512xi1> to vector<4x512xi1>
    %288 = vector.broadcast %cst_193 : f32 to vector<4x512xf32>
    %289 = arith.select %287, %285, %288 : vector<4x512xi1>, vector<4x512xf32>
    %290 = tpu.concatenate %282, %289 in 0 : vector<4x512xf32>, vector<4x512xf32> -> vector<8x512xf32>
    %c8_194 = arith.constant 8 : index
    %c0_195 = arith.constant 0 : index
    %291 = vector.load %arg6[%c8_194, %c0_195] : memref<36x512xf32, #tpu.memory_space<vmem>>, vector<8x512xf32>
    tpu.vector_store %arg6[%c8_194, %c0_195], %290 {strides = array<i32>} : memref<36x512xf32, #tpu.memory_space<vmem>>, vector<8x512xf32>,
    %c0_196 = arith.constant 0 : index
    %c128_197 = arith.constant 128 : index
    %292 = vector.load %arg5[%c0_196, %c128_197] : memref<4x1024xf32, #tpu.memory_space<vmem>>, vector<4x256xf32>
    %c0_198 = arith.constant 0 : index
    %c640_199 = arith.constant 640 : index
    %293 = vector.load %arg5[%c0_198, %c640_199] : memref<4x1024xf32, #tpu.memory_space<vmem>>, vector<4x256xf32>
    %294 = tpu.concatenate %292, %293 in 1 : vector<4x256xf32>, vector<4x256xf32> -> vector<4x512xf32>
    %c0_200 = arith.constant 0 : index
    %c131_201 = arith.constant 131 : index
    %295 = vector.load %arg5[%c0_200, %c131_201] : memref<4x1024xf32, #tpu.memory_space<vmem>>, vector<4x256xf32>
    %c0_202 = arith.constant 0 : index
    %c643_203 = arith.constant 643 : index
    %296 = vector.load %arg5[%c0_202, %c643_203] : memref<4x1024xf32, #tpu.memory_space<vmem>>, vector<4x256xf32>
    %297 = tpu.concatenate %295, %296 in 1 : vector<4x256xf32>, vector<4x256xf32> -> vector<4x512xf32>
    %cst_204 = arith.constant 0.000000e+00 : f32
    %298 = vector.shape_cast %27 : vector<1x512xi1> to vector<1x512xi1>
    %299 = vector.broadcast %298 : vector<1x512xi1> to vector<4x512xi1>
    %300 = vector.broadcast %cst_204 : f32 to vector<4x512xf32>
    %301 = arith.select %299, %297, %300 : vector<4x512xi1>, vector<4x512xf32>
    %302 = tpu.concatenate %294, %301 in 0 : vector<4x512xf32>, vector<4x512xf32> -> vector<8x512xf32>
    %c16_205 = arith.constant 16 : index
    %c0_206 = arith.constant 0 : index
    %303 = vector.load %arg6[%c16_205, %c0_206] : memref<36x512xf32, #tpu.memory_space<vmem>>, vector<8x512xf32>
    tpu.vector_store %arg6[%c16_205, %c0_206], %302 {strides = array<i32>} : memref<36x512xf32, #tpu.memory_space<vmem>>, vector<8x512xf32>,
    %c0_207 = arith.constant 0 : index
    %c173_208 = arith.constant 173 : index
    %304 = vector.load %arg5[%c0_207, %c173_208] : memref<4x1024xf32, #tpu.memory_space<vmem>>, vector<4x256xf32>
    %c0_209 = arith.constant 0 : index
    %c685_210 = arith.constant 685 : index
    %305 = vector.load %arg5[%c0_209, %c685_210] : memref<4x1024xf32, #tpu.memory_space<vmem>>, vector<4x256xf32>
    %306 = tpu.concatenate %304, %305 in 1 : vector<4x256xf32>, vector<4x256xf32> -> vector<4x512xf32>
    %cst_211 = arith.constant 0.000000e+00 : f32
    %307 = vector.shape_cast %12 : vector<1x512xi1> to vector<1x512xi1>
    %308 = vector.broadcast %307 : vector<1x512xi1> to vector<4x512xi1>
    %309 = vector.broadcast %cst_211 : f32 to vector<4x512xf32>
    %310 = arith.select %308, %306, %309 : vector<4x512xi1>, vector<4x512xf32>
    %c0_212 = arith.constant 0 : index
    %c176_213 = arith.constant 176 : index
    %311 = vector.load %arg5[%c0_212, %c176_213] : memref<4x1024xf32, #tpu.memory_space<vmem>>, vector<4x256xf32>
    %c0_214 = arith.constant 0 : index
    %c688_215 = arith.constant 688 : index
    %312 = vector.load %arg5[%c0_214, %c688_215] : memref<4x1024xf32, #tpu.memory_space<vmem>>, vector<4x256xf32>
    %313 = tpu.concatenate %311, %312 in 1 : vector<4x256xf32>, vector<4x256xf32> -> vector<4x512xf32>
    %314 = tpu.concatenate %310, %313 in 0 : vector<4x512xf32>, vector<4x512xf32> -> vector<8x512xf32>
    %c24_216 = arith.constant 24 : index
    %c0_217 = arith.constant 0 : index
    %315 = vector.load %arg6[%c24_216, %c0_217] : memref<36x512xf32, #tpu.memory_space<vmem>>, vector<8x512xf32>
    tpu.vector_store %arg6[%c24_216, %c0_217], %314 {strides = array<i32>} : memref<36x512xf32, #tpu.memory_space<vmem>>, vector<8x512xf32>,
    %c0_218 = arith.constant 0 : index
    %c179_219 = arith.constant 179 : index
    %316 = vector.load %arg5[%c0_218, %c179_219] : memref<4x1024xf32, #tpu.memory_space<vmem>>, vector<4x256xf32>
    %c0_220 = arith.constant 0 : index
    %c691_221 = arith.constant 691 : index
    %317 = vector.load %arg5[%c0_220, %c691_221] : memref<4x1024xf32, #tpu.memory_space<vmem>>, vector<4x256xf32>
    %318 = tpu.concatenate %316, %317 in 1 : vector<4x256xf32>, vector<4x256xf32> -> vector<4x512xf32>
    %cst_222 = arith.constant 0.000000e+00 : f32
    %319 = vector.shape_cast %27 : vector<1x512xi1> to vector<1x512xi1>
    %320 = vector.broadcast %319 : vector<1x512xi1> to vector<4x512xi1>
    %321 = vector.broadcast %cst_222 : f32 to vector<4x512xf32>
    %322 = arith.select %320, %318, %321 : vector<4x512xi1>, vector<4x512xf32>
    %c32_223 = arith.constant 32 : index
    %c0_224 = arith.constant 0 : index
    %323 = vector.load %arg6[%c32_223, %c0_224] : memref<36x512xf32, #tpu.memory_space<vmem>>, vector<4x512xf32>
    tpu.vector_store %arg6[%c32_223, %c0_224], %322 {strides = array<i32>} : memref<36x512xf32, #tpu.memory_space<vmem>>, vector<4x512xf32>,
    %c3 = arith.constant 3 : index
    %c0_225 = arith.constant 0 : index
    %c0_226 = arith.constant 0 : index
    %324 = vector.load %arg2[%c3, %c0_225, %c0_226] : memref<5x8x36xf32, #tpu.memory_space<vmem>>, vector<1x4x36xf32>
    %325 = vector.shape_cast %324 : vector<1x4x36xf32> to vector<4x36xf32>
    %c0_227 = arith.constant 0 : index
    %c0_228 = arith.constant 0 : index
    %326 = vector.load %arg6[%c0_227, %c0_228] : memref<36x512xf32, #tpu.memory_space<vmem>>, vector<36x512xf32>
    %cst_229 = arith.constant dense<0.000000e+00> : vector<4x512xf32>
    %327 = tpu.matmul %325, %326, %cst_229 {dimension_numbers = #tpu.dot_dimension_numbers<[1], [0], [0], [1], [0, 0, 1, 1], [], []>} : vector<4x36xf32>, vector<36x512xf32>, vector<4x512xf32> -> vector<4x512xf32>
    %c3_230 = arith.constant 3 : index
    %c0_231 = arith.constant 0 : index
    %c0_232 = arith.constant 0 : index
    %328 = vector.load %arg3[%c3_230, %c0_231, %c0_232] : memref<5x4x1xf32, #tpu.memory_space<vmem>>, vector<1x4x1xf32>
    %329 = vector.shape_cast %328 : vector<1x4x1xf32> to vector<4x1xf32>
    %330 = vector.broadcast %329 : vector<4x1xf32> to vector<4x512xf32>
    %331 = arith.addf %327, %330 : vector<4x512xf32>
    %332 = arith.addf %331, %257 : vector<4x512xf32>
    %cst_233 = arith.constant 0.000000e+00 : f32
    %333 = vector.broadcast %cst_233 : f32 to vector<4x512xf32>
    %334 = arith.maximumf %332, %333 : vector<4x512xf32>
    %335 = vector.extract_strided_slice %334 {offsets = [0, 0], sizes = [4, 256], strides = [1, 1]} : vector<4x512xf32> to vector<4x256xf32>
    %c0_234 = arith.constant 0 : index
    %c128_235 = arith.constant 128 : index
    %336 = vector.load %arg5[%c0_234, %c128_235] : memref<4x1024xf32, #tpu.memory_space<vmem>>, vector<4x256xf32>
    tpu.vector_store %arg5[%c0_234, %c128_235], %335 {strides = array<i32>} : memref<4x1024xf32, #tpu.memory_space<vmem>>, vector<4x256xf32>,
    %337 = vector.extract_strided_slice %334 {offsets = [0, 256], sizes = [4, 256], strides = [1, 1]} : vector<4x512xf32> to vector<4x256xf32>
    %c0_236 = arith.constant 0 : index
    %c640_237 = arith.constant 640 : index
    %338 = vector.load %arg5[%c0_236, %c640_237] : memref<4x1024xf32, #tpu.memory_space<vmem>>, vector<4x256xf32>
    tpu.vector_store %arg5[%c0_236, %c640_237], %337 {strides = array<i32>} : memref<4x1024xf32, #tpu.memory_space<vmem>>, vector<4x256xf32>,
    %c0_238 = arith.constant 0 : index
    %c111_239 = arith.constant 111 : index
    %339 = vector.load %arg5[%c0_238, %c111_239] : memref<4x1024xf32, #tpu.memory_space<vmem>>, vector<4x256xf32>
    %c0_240 = arith.constant 0 : index
    %c623_241 = arith.constant 623 : index
    %340 = vector.load %arg5[%c0_240, %c623_241] : memref<4x1024xf32, #tpu.memory_space<vmem>>, vector<4x256xf32>
    %341 = tpu.concatenate %339, %340 in 1 : vector<4x256xf32>, vector<4x256xf32> -> vector<4x512xf32>
    %cst_242 = arith.constant 0.000000e+00 : f32
    %342 = vector.shape_cast %17 : vector<1x512xi1> to vector<1x512xi1>
    %343 = vector.broadcast %342 : vector<1x512xi1> to vector<4x512xi1>
    %344 = vector.broadcast %cst_242 : f32 to vector<4x512xf32>
    %345 = arith.select %343, %341, %344 : vector<4x512xi1>, vector<4x512xf32>
    %c0_243 = arith.constant 0 : index
    %c112_244 = arith.constant 112 : index
    %346 = vector.load %arg5[%c0_243, %c112_244] : memref<4x1024xf32, #tpu.memory_space<vmem>>, vector<4x256xf32>
    %c0_245 = arith.constant 0 : index
    %c624_246 = arith.constant 624 : index
    %347 = vector.load %arg5[%c0_245, %c624_246] : memref<4x1024xf32, #tpu.memory_space<vmem>>, vector<4x256xf32>
    %348 = tpu.concatenate %346, %347 in 1 : vector<4x256xf32>, vector<4x256xf32> -> vector<4x512xf32>
    %349 = tpu.concatenate %345, %348 in 0 : vector<4x512xf32>, vector<4x512xf32> -> vector<8x512xf32>
    %c0_247 = arith.constant 0 : index
    %c0_248 = arith.constant 0 : index
    %350 = vector.load %arg6[%c0_247, %c0_248] : memref<36x512xf32, #tpu.memory_space<vmem>>, vector<8x512xf32>
    tpu.vector_store %arg6[%c0_247, %c0_248], %349 {strides = array<i32>} : memref<36x512xf32, #tpu.memory_space<vmem>>, vector<8x512xf32>,
    %c0_249 = arith.constant 0 : index
    %c113_250 = arith.constant 113 : index
    %351 = vector.load %arg5[%c0_249, %c113_250] : memref<4x1024xf32, #tpu.memory_space<vmem>>, vector<4x256xf32>
    %c0_251 = arith.constant 0 : index
    %c625_252 = arith.constant 625 : index
    %352 = vector.load %arg5[%c0_251, %c625_252] : memref<4x1024xf32, #tpu.memory_space<vmem>>, vector<4x256xf32>
    %353 = tpu.concatenate %351, %352 in 1 : vector<4x256xf32>, vector<4x256xf32> -> vector<4x512xf32>
    %cst_253 = arith.constant 0.000000e+00 : f32
    %354 = vector.shape_cast %22 : vector<1x512xi1> to vector<1x512xi1>
    %355 = vector.broadcast %354 : vector<1x512xi1> to vector<4x512xi1>
    %356 = vector.broadcast %cst_253 : f32 to vector<4x512xf32>
    %357 = arith.select %355, %353, %356 : vector<4x512xi1>, vector<4x512xf32>
    %c0_254 = arith.constant 0 : index
    %c127_255 = arith.constant 127 : index
    %358 = vector.load %arg5[%c0_254, %c127_255] : memref<4x1024xf32, #tpu.memory_space<vmem>>, vector<4x256xf32>
    %c0_256 = arith.constant 0 : index
    %c639_257 = arith.constant 639 : index
    %359 = vector.load %arg5[%c0_256, %c639_257] : memref<4x1024xf32, #tpu.memory_space<vmem>>, vector<4x256xf32>
    %360 = tpu.concatenate %358, %359 in 1 : vector<4x256xf32>, vector<4x256xf32> -> vector<4x512xf32>
    %cst_258 = arith.constant 0.000000e+00 : f32
    %361 = vector.shape_cast %17 : vector<1x512xi1> to vector<1x512xi1>
    %362 = vector.broadcast %361 : vector<1x512xi1> to vector<4x512xi1>
    %363 = vector.broadcast %cst_258 : f32 to vector<4x512xf32>
    %364 = arith.select %362, %360, %363 : vector<4x512xi1>, vector<4x512xf32>
    %365 = tpu.concatenate %357, %364 in 0 : vector<4x512xf32>, vector<4x512xf32> -> vector<8x512xf32>
    %c8_259 = arith.constant 8 : index
    %c0_260 = arith.constant 0 : index
    %366 = vector.load %arg6[%c8_259, %c0_260] : memref<36x512xf32, #tpu.memory_space<vmem>>, vector<8x512xf32>
    tpu.vector_store %arg6[%c8_259, %c0_260], %365 {strides = array<i32>} : memref<36x512xf32, #tpu.memory_space<vmem>>, vector<8x512xf32>,
    %c0_261 = arith.constant 0 : index
    %c128_262 = arith.constant 128 : index
    %367 = vector.load %arg5[%c0_261, %c128_262] : memref<4x1024xf32, #tpu.memory_space<vmem>>, vector<4x256xf32>
    %c0_263 = arith.constant 0 : index
    %c640_264 = arith.constant 640 : index
    %368 = vector.load %arg5[%c0_263, %c640_264] : memref<4x1024xf32, #tpu.memory_space<vmem>>, vector<4x256xf32>
    %369 = tpu.concatenate %367, %368 in 1 : vector<4x256xf32>, vector<4x256xf32> -> vector<4x512xf32>
    %c0_265 = arith.constant 0 : index
    %c129_266 = arith.constant 129 : index
    %370 = vector.load %arg5[%c0_265, %c129_266] : memref<4x1024xf32, #tpu.memory_space<vmem>>, vector<4x256xf32>
    %c0_267 = arith.constant 0 : index
    %c641_268 = arith.constant 641 : index
    %371 = vector.load %arg5[%c0_267, %c641_268] : memref<4x1024xf32, #tpu.memory_space<vmem>>, vector<4x256xf32>
    %372 = tpu.concatenate %370, %371 in 1 : vector<4x256xf32>, vector<4x256xf32> -> vector<4x512xf32>
    %cst_269 = arith.constant 0.000000e+00 : f32
    %373 = vector.shape_cast %22 : vector<1x512xi1> to vector<1x512xi1>
    %374 = vector.broadcast %373 : vector<1x512xi1> to vector<4x512xi1>
    %375 = vector.broadcast %cst_269 : f32 to vector<4x512xf32>
    %376 = arith.select %374, %372, %375 : vector<4x512xi1>, vector<4x512xf32>
    %377 = tpu.concatenate %369, %376 in 0 : vector<4x512xf32>, vector<4x512xf32> -> vector<8x512xf32>
    %c16_270 = arith.constant 16 : index
    %c0_271 = arith.constant 0 : index
    %378 = vector.load %arg6[%c16_270, %c0_271] : memref<36x512xf32, #tpu.memory_space<vmem>>, vector<8x512xf32>
    tpu.vector_store %arg6[%c16_270, %c0_271], %377 {strides = array<i32>} : memref<36x512xf32, #tpu.memory_space<vmem>>, vector<8x512xf32>,
    %c0_272 = arith.constant 0 : index
    %c143_273 = arith.constant 143 : index
    %379 = vector.load %arg5[%c0_272, %c143_273] : memref<4x1024xf32, #tpu.memory_space<vmem>>, vector<4x256xf32>
    %c0_274 = arith.constant 0 : index
    %c655_275 = arith.constant 655 : index
    %380 = vector.load %arg5[%c0_274, %c655_275] : memref<4x1024xf32, #tpu.memory_space<vmem>>, vector<4x256xf32>
    %381 = tpu.concatenate %379, %380 in 1 : vector<4x256xf32>, vector<4x256xf32> -> vector<4x512xf32>
    %cst_276 = arith.constant 0.000000e+00 : f32
    %382 = vector.shape_cast %17 : vector<1x512xi1> to vector<1x512xi1>
    %383 = vector.broadcast %382 : vector<1x512xi1> to vector<4x512xi1>
    %384 = vector.broadcast %cst_276 : f32 to vector<4x512xf32>
    %385 = arith.select %383, %381, %384 : vector<4x512xi1>, vector<4x512xf32>
    %c0_277 = arith.constant 0 : index
    %c144_278 = arith.constant 144 : index
    %386 = vector.load %arg5[%c0_277, %c144_278] : memref<4x1024xf32, #tpu.memory_space<vmem>>, vector<4x256xf32>
    %c0_279 = arith.constant 0 : index
    %c656_280 = arith.constant 656 : index
    %387 = vector.load %arg5[%c0_279, %c656_280] : memref<4x1024xf32, #tpu.memory_space<vmem>>, vector<4x256xf32>
    %388 = tpu.concatenate %386, %387 in 1 : vector<4x256xf32>, vector<4x256xf32> -> vector<4x512xf32>
    %389 = tpu.concatenate %385, %388 in 0 : vector<4x512xf32>, vector<4x512xf32> -> vector<8x512xf32>
    %c24_281 = arith.constant 24 : index
    %c0_282 = arith.constant 0 : index
    %390 = vector.load %arg6[%c24_281, %c0_282] : memref<36x512xf32, #tpu.memory_space<vmem>>, vector<8x512xf32>
    tpu.vector_store %arg6[%c24_281, %c0_282], %389 {strides = array<i32>} : memref<36x512xf32, #tpu.memory_space<vmem>>, vector<8x512xf32>,
    %c0_283 = arith.constant 0 : index
    %c145_284 = arith.constant 145 : index
    %391 = vector.load %arg5[%c0_283, %c145_284] : memref<4x1024xf32, #tpu.memory_space<vmem>>, vector<4x256xf32>
    %c0_285 = arith.constant 0 : index
    %c657_286 = arith.constant 657 : index
    %392 = vector.load %arg5[%c0_285, %c657_286] : memref<4x1024xf32, #tpu.memory_space<vmem>>, vector<4x256xf32>
    %393 = tpu.concatenate %391, %392 in 1 : vector<4x256xf32>, vector<4x256xf32> -> vector<4x512xf32>
    %cst_287 = arith.constant 0.000000e+00 : f32
    %394 = vector.shape_cast %22 : vector<1x512xi1> to vector<1x512xi1>
    %395 = vector.broadcast %394 : vector<1x512xi1> to vector<4x512xi1>
    %396 = vector.broadcast %cst_287 : f32 to vector<4x512xf32>
    %397 = arith.select %395, %393, %396 : vector<4x512xi1>, vector<4x512xf32>
    %c32_288 = arith.constant 32 : index
    %c0_289 = arith.constant 0 : index
    %398 = vector.load %arg6[%c32_288, %c0_289] : memref<36x512xf32, #tpu.memory_space<vmem>>, vector<4x512xf32>
    tpu.vector_store %arg6[%c32_288, %c0_289], %397 {strides = array<i32>} : memref<36x512xf32, #tpu.memory_space<vmem>>, vector<4x512xf32>,
    %c4 = arith.constant 4 : index
    %c0_290 = arith.constant 0 : index
    %c0_291 = arith.constant 0 : index
    %399 = vector.load %arg2[%c4, %c0_290, %c0_291] : memref<5x8x36xf32, #tpu.memory_space<vmem>>, vector<1x4x36xf32>
    %400 = vector.shape_cast %399 : vector<1x4x36xf32> to vector<4x36xf32>
    %c0_292 = arith.constant 0 : index
    %c0_293 = arith.constant 0 : index
    %401 = vector.load %arg6[%c0_292, %c0_293] : memref<36x512xf32, #tpu.memory_space<vmem>>, vector<36x512xf32>
    %cst_294 = arith.constant dense<0.000000e+00> : vector<4x512xf32>
    %402 = tpu.matmul %400, %401, %cst_294 {dimension_numbers = #tpu.dot_dimension_numbers<[1], [0], [0], [1], [0, 0, 1, 1], [], []>} : vector<4x36xf32>, vector<36x512xf32>, vector<4x512xf32> -> vector<4x512xf32>
    %403 = arith.addf %258, %402 : vector<4x512xf32>
    %c4_295 = arith.constant 4 : index
    %c0_296 = arith.constant 0 : index
    %c0_297 = arith.constant 0 : index
    %404 = vector.load %arg3[%c4_295, %c0_296, %c0_297] : memref<5x4x1xf32, #tpu.memory_space<vmem>>, vector<1x4x1xf32>
    %405 = vector.shape_cast %404 : vector<1x4x1xf32> to vector<4x1xf32>
    %406 = vector.broadcast %405 : vector<4x1xf32> to vector<4x512xf32>
    %407 = arith.addf %403, %406 : vector<4x512xf32>
    %cst_298 = arith.constant 0.000000e+00 : f32
    %408 = vector.broadcast %cst_298 : f32 to vector<4x512xf32>
    %409 = arith.maximumf %407, %408 : vector<4x512xf32>
    %410 = vector.extract_strided_slice %409 {offsets = [0, 0], sizes = [4, 256], strides = [1, 1]} : vector<4x512xf32> to vector<4x256xf32>
    %c0_299 = arith.constant 0 : index
    %c0_300 = arith.constant 0 : index
    %c0_301 = arith.constant 0 : index
    %411 = vector.load %arg4[%c0_299, %c0_300, %c0_301] : memref<2x4x256xf32, #tpu.memory_space<vmem>>, vector<1x4x256xf32>
    %412 = vector.shape_cast %411 : vector<1x4x256xf32> to vector<4x256xf32>
    %413 = vector.shape_cast %410 : vector<4x256xf32> to vector<1x4x256xf32>
    tpu.vector_store %arg4[%c0_299, %c0_300, %c0_301], %413 {strides = array<i32>} : memref<2x4x256xf32, #tpu.memory_space<vmem>>, vector<1x4x256xf32>,
    %414 = vector.extract_strided_slice %409 {offsets = [0, 256], sizes = [4, 256], strides = [1, 1]} : vector<4x512xf32> to vector<4x256xf32>
    %c1_302 = arith.constant 1 : index
    %c0_303 = arith.constant 0 : index
    %c0_304 = arith.constant 0 : index
    %415 = vector.load %arg4[%c1_302, %c0_303, %c0_304] : memref<2x4x256xf32, #tpu.memory_space<vmem>>, vector<1x4x256xf32>
    %416 = vector.shape_cast %415 : vector<1x4x256xf32> to vector<4x256xf32>
    %417 = vector.shape_cast %414 : vector<4x256xf32> to vector<1x4x256xf32>
    tpu.vector_store %arg4[%c1_302, %c0_303, %c0_304], %417 {strides = array<i32>} : memref<2x4x256xf32, #tpu.memory_space<vmem>>, vector<1x4x256xf32>,
    return
  }
  func.func @transform_0(%arg0: i32) -> (i32, i32, i32) {
    %c0_i32 = arith.constant 0 : i32
    %c0_i32_0 = arith.constant 0 : i32
    %c0_i32_1 = arith.constant 0 : i32
    return %arg0, %c0_i32, %c0_i32_0 : i32, i32, i32
  }
  func.func @transform_1(%arg0: i32) -> (i32, i32, i32) {
    %c0_i32 = arith.constant 0 : i32
    %c0_i32_0 = arith.constant 0 : i32
    %c0_i32_1 = arith.constant 0 : i32
    %c0_i32_2 = arith.constant 0 : i32
    return %c0_i32, %c0_i32_0, %c0_i32_1 : i32, i32, i32
  }
  func.func @transform_2(%arg0: i32) -> (i32, i32, i32) {
    %c0_i32 = arith.constant 0 : i32
    %c0_i32_0 = arith.constant 0 : i32
    %c0_i32_1 = arith.constant 0 : i32
    %c0_i32_2 = arith.constant 0 : i32
    return %c0_i32, %c0_i32_0, %c0_i32_1 : i32, i32, i32
  }
  func.func @transform_3(%arg0: i32) -> (i32, i32, i32) {
    %c0_i32 = arith.constant 0 : i32
    %c0_i32_0 = arith.constant 0 : i32
    %c0_i32_1 = arith.constant 0 : i32
    return %arg0, %c0_i32, %c0_i32_0 : i32, i32, i32
  }
}

</mosaic_0001>

<llo_original>
// kernel: _lambda_.1
$region0: #{_lambda_.1}
  #allocation0 [shape = 'u32[]', space=smem, size = 0x4, offset = 0x4, fixed_abs, tag = 'smem constant byte address 0x4 - core index']
  #allocation1 [shape = 'u32[72,128]{1,0:T(1,128)}', space=vmem, size = 0x9000, scoped, tag = 'internal scratch']
  #allocation2 [shape = 'f32[4,1024]{1,0:T(4,128)}', space=vmem, size = 0x4000, scoped, tag = 'scratch operand']
  #allocation3 [shape = 'f32[36,512]{1,0:T(8,128)}', space=vmem, size = 0x14000, scoped, tag = 'scratch operand']
  %s0 = inlined_call_operand.vmem [shape: f32[2,4,256], index: 0, kind: input, shape index: {}]
  %s1 = inlined_call_operand.vmem [shape: f32[5,8,36], index: 1, kind: input, shape index: {}]
  %s2 = inlined_call_operand.vmem [shape: f32[5,4,1], index: 2, kind: input, shape index: {}]
  %s3 = inlined_call_operand.vmem [shape: f32[2,4,256], index: 3, kind: output, shape index: {}]
  %s4 = sld [smem:[#allocation0]]
  $region22: #{_lambda_.1} parent=0
    _
  %s6 = ssub.s32 1, %s4
  %s7 = scalar_select 0, %s6, %s4
  // Predicated region
  $region2: #{_lambda_.1} parent=0 // pred_check
    _
  $region3: #{_lambda_.1} parent=0 // pred_check_branch
    %9 = sbr.rel (0) target = $region5
  $region4: #{_lambda_.1} parent=0 // pred_region
    _
  $region5: #{_lambda_.1} parent=0 // pred_fallthru
    _
  // Predicated region
  $region6: #{_lambda_.1} parent=0 // pred_check
    _
  $region7: #{_lambda_.1} parent=0 // pred_check_branch
    %11 = sbr.rel (0) target = $region9
  $region8: #{_lambda_.1} parent=0 // pred_region
    _
  $region9: #{_lambda_.1} parent=0 // pred_fallthru
    _
  // Predicated region
  $region10: #{_lambda_.1} parent=0 // pred_check
    _
  $region11: #{_lambda_.1} parent=0 // pred_check_branch
    %13 = sbr.rel (0) target = $region13
  $region12: #{_lambda_.1} parent=0 // pred_region
    _
  $region13: #{_lambda_.1} parent=0 // pred_fallthru
    _
  %14 = vst [vmem:[#allocation2] sm:$0xf] 0.0
  %15 = vst [vmem:[#allocation2 + $0xc] sm:$0xf] 0.0
  %16 = vst [vmem:[#allocation2 + $0x10] sm:$0xf] 0.0
  %17 = vst [vmem:[#allocation2 + $0x1c] sm:$0xf] 0.0
  %v18 = vlaneseq
  %v19 = vand.u32 %v18, 127
  %v20 = vadd.s32 %v19, 128
  %v21 = vadd.s32 %v19, 256
  %v22 = vadd.s32 %v19, 384
  %v23 = vand.u32 %v19, 15
  %v24 = vand.u32 %v20, 15
  %v25 = vand.u32 %v21, 15
  %v26 = vand.u32 %v22, 15
  %vm27 = vcmp.ge.s32.totalorder %v23, 3
  %vm28 = vcmp.ge.s32.totalorder %v24, 3
  %vm29 = vcmp.ge.s32.totalorder %v25, 3
  %vm30 = vcmp.ge.s32.totalorder %v26, 3
  %vm31 = vcmp.lt.s32.totalorder %v23, 19
  %vm32 = vcmp.lt.s32.totalorder %v24, 19
  %vm33 = vcmp.lt.s32.totalorder %v25, 19
  %vm34 = vcmp.lt.s32.totalorder %v26, 19
  %vm35 = vmand %vm27, %vm31
  %vm36 = vmand %vm28, %vm32
  %vm37 = vmand %vm29, %vm33
  %vm38 = vmand %vm30, %vm34
  %vm39 = vcmp.ge.s32.totalorder %v23, 1
  %vm40 = vcmp.ge.s32.totalorder %v24, 1
  %vm41 = vcmp.ge.s32.totalorder %v25, 1
  %vm42 = vcmp.ge.s32.totalorder %v26, 1
  %vm43 = vcmp.lt.s32.totalorder %v23, 17
  %vm44 = vcmp.lt.s32.totalorder %v24, 17
  %vm45 = vcmp.lt.s32.totalorder %v25, 17
  %vm46 = vcmp.lt.s32.totalorder %v26, 17
  %vm47 = vmand %vm39, %vm43
  %vm48 = vmand %vm40, %vm44
  %vm49 = vmand %vm41, %vm45
  %vm50 = vmand %vm42, %vm46
  %vm51 = vcmp.ge.s32.totalorder %v23, 4294967295
  %vm52 = vcmp.ge.s32.totalorder %v24, 4294967295
  %vm53 = vcmp.ge.s32.totalorder %v25, 4294967295
  %vm54 = vcmp.ge.s32.totalorder %v26, 4294967295
  %vm55 = vcmp.lt.s32.totalorder %v23, 15
  %vm56 = vcmp.lt.s32.totalorder %v24, 15
  %vm57 = vcmp.lt.s32.totalorder %v25, 15
  %vm58 = vcmp.lt.s32.totalorder %v26, 15
  %vm59 = vmand %vm51, %vm55
  %vm60 = vmand %vm52, %vm56
  %vm61 = vmand %vm53, %vm57
  %vm62 = vmand %vm54, %vm58
  %vm63 = vcmp.ge.s32.totalorder %v23, 4294967293
  %vm64 = vcmp.ge.s32.totalorder %v24, 4294967293
  %vm65 = vcmp.ge.s32.totalorder %v25, 4294967293
  %vm66 = vcmp.ge.s32.totalorder %v26, 4294967293
  %vm67 = vcmp.lt.s32.totalorder %v23, 13
  %vm68 = vcmp.lt.s32.totalorder %v24, 13
  %vm69 = vcmp.lt.s32.totalorder %v25, 13
  %vm70 = vcmp.lt.s32.totalorder %v26, 13
  %vm71 = vmand %vm63, %vm67
  %vm72 = vmand %vm64, %vm68
  %vm73 = vmand %vm65, %vm69
  %vm74 = vmand %vm66, %vm70
  %v75 = vld [vmem:[%s0] sm:$0xff]
  %s76 = scalar_lea.vmem %s0, 8
  %v77 = vld [vmem:[%s76] sm:$0xff]
  %79 = vst [vmem:[#allocation1] ss:$2 sm:$0xff] %v75
  %v80 = vld.sshfl [vmem:[#allocation1] sm:$0xff pattern:$0x75316420]
  %v81 = vld.sshfl [vmem:[#allocation1 + $0x8] sm:$0xff pattern:$0x75316420]
  %85 = vst [vmem:[#allocation1] ss:$2 sm:$0xff] %v77
  %v86 = vld.sshfl [vmem:[#allocation1] sm:$0xff pattern:$0x75316420]
  %v87 = vld.sshfl [vmem:[#allocation1 + $0x8] sm:$0xff pattern:$0x75316420]
  %v90 = vrot.slane %v81, 4
  %vm91 = vcmask 1043456
  %v92 = vsel %vm91, %v80, %v90
  %94 = vst [vmem:[#allocation2 + $0x4] sm:$0xff] %v92
  %v95 = vrot.slane %v87, 4
  %v96 = vsel %vm91, %v86, %v95
  %98 = vst [vmem:[#allocation2 + $0x14] sm:$0xff] %v96
  %v99 = vld [vmem:[#allocation2] sm:$0xff]
  %v100 = vld [vmem:[#allocation2 + $0x8] sm:$0xf]
  %v101 = vld [vmem:[#allocation2 + $0x10] sm:$0xff]
  %v102 = vld [vmem:[#allocation2 + $0x18] sm:$0xf]
  %105 = vst [vmem:[#allocation1] ss:$2 sm:$0xff] %v99
  %s106 = scalar_lea.vmem [#allocation1], 16
  %107 = vst [vmem:[%s106] ss:$2 sm:$0xff] %v100
  %v108 = vld.sshfl [vmem:[#allocation1] sm:$0xff pattern:$0x75316420]
  %v109 = vld.sshfl [vmem:[#allocation1 + $0x8] sm:$0xff pattern:$0x75316420]
  %v110 = vld.sshfl [vmem:[#allocation1 + $0x10] sm:$0xff pattern:$0x75316420]
  %111 = vrot.lane.b32.xlu0 %v108, 17
  %v112 = vpop.permute.xlu0 %111
  %113 = vrot.lane.b32.xlu0 %v109, 17
  %v114 = vpop.permute.xlu0 %113
  %115 = vrot.lane.b32.xlu0 %v110, 17
  %v116 = vpop.permute.xlu0 %115
  %vm117 = vcmask 138240
  %v118 = vsel %vm117, %v112, %v114
  %v119 = vsel %vm117, %v114, %v116
  %124 = vst [vmem:[#allocation1] ss:$2 sm:$0xff] %v101
  %s125 = scalar_lea.vmem [#allocation1], 16
  %126 = vst [vmem:[%s125] ss:$2 sm:$0xff] %v102
  %v127 = vld.sshfl [vmem:[#allocation1] sm:$0xff pattern:$0x75316420]
  %v128 = vld.sshfl [vmem:[#allocation1 + $0x8] sm:$0xff pattern:$0x75316420]
  %v129 = vld.sshfl [vmem:[#allocation1 + $0x10] sm:$0xff pattern:$0x75316420]
  %130 = vrot.lane.b32.xlu0 %v127, 17
  %v131 = vpop.permute.xlu0 %130
  %132 = vrot.lane.b32.xlu0 %v128, 17
  %v133 = vpop.permute.xlu0 %132
  %134 = vrot.lane.b32.xlu0 %v129, 17
  %v135 = vpop.permute.xlu0 %134
  %v136 = vsel %vm117, %v131, %v133
  %v137 = vsel %vm117, %v133, %v135
  %v140 = vsel %vm47, 1, 0
  %v141 = vsel %vm48, 1, 0
  %v142 = vsel %vm49, 1, 0
  %v143 = vsel %vm50, 1, 0
  %vm144 = vcmp.eq.s32.totalorder %v140, 1
  %vm145 = vcmp.eq.s32.totalorder %v141, 1
  %vm146 = vcmp.eq.s32.totalorder %v142, 1
  %vm147 = vcmp.eq.s32.totalorder %v143, 1
  %v148 = vsel %vm144, %v118, 0.0
  %v149 = vsel %vm145, %v119, 0.0
  %v150 = vsel %vm146, %v136, 0.0
  %v151 = vsel %vm147, %v137, 0.0
  %v152 = vld [vmem:[#allocation2] sm:$0xff]
  %v153 = vld [vmem:[#allocation2 + $0x8] sm:$0xf]
  %v154 = vld [vmem:[#allocation2 + $0x10] sm:$0xff]
  %v155 = vld [vmem:[#allocation2 + $0x18] sm:$0xf]
  %158 = vst [vmem:[#allocation1] ss:$2 sm:$0xff] %v152
  %s159 = scalar_lea.vmem [#allocation1], 16
  %160 = vst [vmem:[%s159] ss:$2 sm:$0xff] %v153
  %v161 = vld.sshfl [vmem:[#allocation1] sm:$0xff pattern:$0x75316420]
  %v162 = vld.sshfl [vmem:[#allocation1 + $0x8] sm:$0xff pattern:$0x75316420]
  %v163 = vld.sshfl [vmem:[#allocation1 + $0x10] sm:$0xff pattern:$0x75316420]
  %164 = vrot.lane.b32.xlu0 %v161, 16
  %v165 = vpop.permute.xlu0 %164
  %166 = vrot.lane.b32.xlu0 %v162, 16
  %v167 = vpop.permute.xlu0 %166
  %168 = vrot.lane.b32.xlu0 %v163, 16
  %v169 = vpop.permute.xlu0 %168
  %vm170 = vcmask 130048
  %v171 = vsel %vm170, %v165, %v167
  %v172 = vsel %vm170, %v167, %v169
  %175 = vst [vmem:[#allocation1] ss:$2 sm:$0xff] %v154
  %s176 = scalar_lea.vmem [#allocation1], 16
  %177 = vst [vmem:[%s176] ss:$2 sm:$0xff] %v155
  %v178 = vld.sshfl [vmem:[#allocation1] sm:$0xff pattern:$0x75316420]
  %v179 = vld.sshfl [vmem:[#allocation1 + $0x8] sm:$0xff pattern:$0x75316420]
  %v180 = vld.sshfl [vmem:[#allocation1 + $0x10] sm:$0xff pattern:$0x75316420]
  %181 = vrot.lane.b32.xlu0 %v178, 16
  %v182 = vpop.permute.xlu0 %181
  %183 = vrot.lane.b32.xlu0 %v179, 16
  %v184 = vpop.permute.xlu0 %183
  %185 = vrot.lane.b32.xlu0 %v180, 16
  %v186 = vpop.permute.xlu0 %185
  %v187 = vsel %vm170, %v182, %v184
  %v188 = vsel %vm170, %v184, %v186
  %v189 = vrot.slane %v171, 4
  %v190 = vrot.slane %v172, 4
  %v191 = vrot.slane %v187, 4
  %v192 = vrot.slane %v188, 4
  %v197 = vsel %vm91, %v148, %v189
  %v198 = vsel %vm91, %v149, %v190
  %v199 = vsel %vm91, %v150, %v191
  %v200 = vsel %vm91, %v151, %v192
  %201 = vst [vmem:[#allocation3] sm:$0xff] %v197
  %202 = vst [vmem:[#allocation3 + $0x8] sm:$0xff] %v198
  %203 = vst [vmem:[#allocation3 + $0x10] sm:$0xff] %v199
  %204 = vst [vmem:[#allocation3 + $0x18] sm:$0xff] %v200
  %v205 = vld [vmem:[#allocation2] sm:$0xff]
  %v206 = vld [vmem:[#allocation2 + $0x8] sm:$0xf]
  %v207 = vld [vmem:[#allocation2 + $0x10] sm:$0xff]
  %v208 = vld [vmem:[#allocation2 + $0x18] sm:$0xf]
  %211 = vst [vmem:[#allocation1] ss:$2 sm:$0xff] %v205
  %s212 = scalar_lea.vmem [#allocation1], 16
  %213 = vst [vmem:[%s212] ss:$2 sm:$0xff] %v206
  %v214 = vld.sshfl [vmem:[#allocation1] sm:$0xff pattern:$0x75316420]
  %v215 = vld.sshfl [vmem:[#allocation1 + $0x8] sm:$0xff pattern:$0x75316420]
  %v216 = vld.sshfl [vmem:[#allocation1 + $0x10] sm:$0xff pattern:$0x75316420]
  %217 = vrot.lane.b32.xlu0 %v214, 15
  %v218 = vpop.permute.xlu0 %217
  %219 = vrot.lane.b32.xlu0 %v215, 15
  %v220 = vpop.permute.xlu0 %219
  %221 = vrot.lane.b32.xlu0 %v216, 15
  %v222 = vpop.permute.xlu0 %221
  %vm223 = vcmask 121856
  %v224 = vsel %vm223, %v218, %v220
  %v225 = vsel %vm223, %v220, %v222
  %230 = vst [vmem:[#allocation1] ss:$2 sm:$0xff] %v207
  %s231 = scalar_lea.vmem [#allocation1], 16
  %232 = vst [vmem:[%s231] ss:$2 sm:$0xff] %v208
  %v233 = vld.sshfl [vmem:[#allocation1] sm:$0xff pattern:$0x75316420]
  %v234 = vld.sshfl [vmem:[#allocation1 + $0x8] sm:$0xff pattern:$0x75316420]
  %v235 = vld.sshfl [vmem:[#allocation1 + $0x10] sm:$0xff pattern:$0x75316420]
  %236 = vrot.lane.b32.xlu0 %v233, 15
  %v237 = vpop.permute.xlu0 %236
  %238 = vrot.lane.b32.xlu0 %v234, 15
  %v239 = vpop.permute.xlu0 %238
  %240 = vrot.lane.b32.xlu0 %v235, 15
  %v241 = vpop.permute.xlu0 %240
  %v242 = vsel %vm223, %v237, %v239
  %v243 = vsel %vm223, %v239, %v241
  %v246 = vsel %vm59, 1, 0
  %v247 = vsel %vm60, 1, 0
  %v248 = vsel %vm61, 1, 0
  %v249 = vsel %vm62, 1, 0
  %vm250 = vcmp.eq.s32.totalorder %v246, 1
  %vm251 = vcmp.eq.s32.totalorder %v247, 1
  %vm252 = vcmp.eq.s32.totalorder %v248, 1
  %vm253 = vcmp.eq.s32.totalorder %v249, 1
  %v254 = vsel %vm250, %v224, 0.0
  %v255 = vsel %vm251, %v225, 0.0
  %v256 = vsel %vm252, %v242, 0.0
  %v257 = vsel %vm253, %v243, 0.0
  %v258 = vld [vmem:[#allocation2] sm:$0xff]
  %v259 = vld [vmem:[#allocation2 + $0x8] sm:$0xf]
  %v260 = vld [vmem:[#allocation2 + $0x10] sm:$0xff]
  %v261 = vld [vmem:[#allocation2 + $0x18] sm:$0xf]
  %264 = vst [vmem:[#allocation1] ss:$2 sm:$0xff] %v258
  %s265 = scalar_lea.vmem [#allocation1], 16
  %266 = vst [vmem:[%s265] ss:$2 sm:$0xff] %v259
  %v267 = vld.sshfl [vmem:[#allocation1] sm:$0xff pattern:$0x75316420]
  %v268 = vld.sshfl [vmem:[#allocation1 + $0x8] sm:$0xff pattern:$0x75316420]
  %v269 = vld.sshfl [vmem:[#allocation1 + $0x10] sm:$0xff pattern:$0x75316420]
  %270 = vrot.lane.b32.xlu0 %v267, 1
  %v271 = vpop.permute.xlu0 %270
  %272 = vrot.lane.b32.xlu0 %v268, 1
  %v273 = vpop.permute.xlu0 %272
  %274 = vrot.lane.b32.xlu0 %v269, 1
  %v275 = vpop.permute.xlu0 %274
  %vm276 = vcmask 7168
  %v277 = vsel %vm276, %v271, %v273
  %v278 = vsel %vm276, %v273, %v275
  %283 = vst [vmem:[#allocation1] ss:$2 sm:$0xff] %v260
  %s284 = scalar_lea.vmem [#allocation1], 16
  %285 = vst [vmem:[%s284] ss:$2 sm:$0xff] %v261
  %v286 = vld.sshfl [vmem:[#allocation1] sm:$0xff pattern:$0x75316420]
  %v287 = vld.sshfl [vmem:[#allocation1 + $0x8] sm:$0xff pattern:$0x75316420]
  %v288 = vld.sshfl [vmem:[#allocation1 + $0x10] sm:$0xff pattern:$0x75316420]
  %289 = vrot.lane.b32.xlu0 %v286, 1
  %v290 = vpop.permute.xlu0 %289
  %291 = vrot.lane.b32.xlu0 %v287, 1
  %v292 = vpop.permute.xlu0 %291
  %293 = vrot.lane.b32.xlu0 %v288, 1
  %v294 = vpop.permute.xlu0 %293
  %v295 = vsel %vm276, %v290, %v292
  %v296 = vsel %vm276, %v292, %v294
  %v299 = vsel %vm144, %v277, 0.0
  %v300 = vsel %vm145, %v278, 0.0
  %v301 = vsel %vm146, %v295, 0.0
  %v302 = vsel %vm147, %v296, 0.0
  %v307 = vrot.slane %v299, 4
  %v308 = vrot.slane %v300, 4
  %v309 = vrot.slane %v301, 4
  %v310 = vrot.slane %v302, 4
  %v315 = vsel %vm91, %v254, %v307
  %v316 = vsel %vm91, %v255, %v308
  %v317 = vsel %vm91, %v256, %v309
  %v318 = vsel %vm91, %v257, %v310
  %319 = vst [vmem:[#allocation3 + $0x20] sm:$0xff] %v315
  %320 = vst [vmem:[#allocation3 + $0x28] sm:$0xff] %v316
  %321 = vst [vmem:[#allocation3 + $0x30] sm:$0xff] %v317
  %322 = vst [vmem:[#allocation3 + $0x38] sm:$0xff] %v318
  %v323 = vld [vmem:[#allocation2 + $0x4] sm:$0xff]
  %v324 = vld [vmem:[#allocation2 + $0x14] sm:$0xff]
  %326 = vst [vmem:[#allocation1] ss:$2 sm:$0xff] %v323
  %v327 = vld.sshfl [vmem:[#allocation1] sm:$0xff pattern:$0x75316420]
  %v328 = vld.sshfl [vmem:[#allocation1 + $0x8] sm:$0xff pattern:$0x75316420]
  %332 = vst [vmem:[#allocation1] ss:$2 sm:$0xff] %v324
  %v333 = vld.sshfl [vmem:[#allocation1] sm:$0xff pattern:$0x75316420]
  %v334 = vld.sshfl [vmem:[#allocation1 + $0x8] sm:$0xff pattern:$0x75316420]
  %v337 = vld [vmem:[#allocation2 + $0x4] sm:$0xff]
  %v338 = vld [vmem:[#allocation2 + $0xc] sm:$0xf]
  %v339 = vld [vmem:[#allocation2 + $0x14] sm:$0xff]
  %v340 = vld [vmem:[#allocation2 + $0x1c] sm:$0xf]
  %343 = vst [vmem:[#allocation1] ss:$2 sm:$0xff] %v337
  %s344 = scalar_lea.vmem [#allocation1], 16
  %345 = vst [vmem:[%s344] ss:$2 sm:$0xff] %v338
  %v346 = vld.sshfl [vmem:[#allocation1] sm:$0xff pattern:$0x75316420]
  %v347 = vld.sshfl [vmem:[#allocation1 + $0x8] sm:$0xff pattern:$0x75316420]
  %v348 = vld.sshfl [vmem:[#allocation1 + $0x10] sm:$0xff pattern:$0x75316420]
  %349 = vrot.lane.b32.xlu0 %v346, 127
  %v350 = vpop.permute.xlu0 %349
  %351 = vrot.lane.b32.xlu0 %v347, 127
  %v352 = vpop.permute.xlu0 %351
  %353 = vrot.lane.b32.xlu0 %v348, 127
  %v354 = vpop.permute.xlu0 %353
  %vm355 = vcmask 1039360
  %v356 = vsel %vm355, %v350, %v352
  %v357 = vsel %vm355, %v352, %v354
  %362 = vst [vmem:[#allocation1] ss:$2 sm:$0xff] %v339
  %s363 = scalar_lea.vmem [#allocation1], 16
  %364 = vst [vmem:[%s363] ss:$2 sm:$0xff] %v340
  %v365 = vld.sshfl [vmem:[#allocation1] sm:$0xff pattern:$0x75316420]
  %v366 = vld.sshfl [vmem:[#allocation1 + $0x8] sm:$0xff pattern:$0x75316420]
  %v367 = vld.sshfl [vmem:[#allocation1 + $0x10] sm:$0xff pattern:$0x75316420]
  %368 = vrot.lane.b32.xlu0 %v365, 127
  %v369 = vpop.permute.xlu0 %368
  %370 = vrot.lane.b32.xlu0 %v366, 127
  %v371 = vpop.permute.xlu0 %370
  %372 = vrot.lane.b32.xlu0 %v367, 127
  %v373 = vpop.permute.xlu0 %372
  %v374 = vsel %vm355, %v369, %v371
  %v375 = vsel %vm355, %v371, %v373
  %v378 = vsel %vm250, %v356, 0.0
  %v379 = vsel %vm251, %v357, 0.0
  %v380 = vsel %vm252, %v374, 0.0
  %v381 = vsel %vm253, %v375, 0.0
  %v386 = vrot.slane %v378, 4
  %v387 = vrot.slane %v379, 4
  %v388 = vrot.slane %v380, 4
  %v389 = vrot.slane %v381, 4
  %v394 = vsel %vm91, %v327, %v386
  %v395 = vsel %vm91, %v328, %v387
  %v396 = vsel %vm91, %v333, %v388
  %v397 = vsel %vm91, %v334, %v389
  %398 = vst [vmem:[#allocation3 + $0x40] sm:$0xff] %v394
  %399 = vst [vmem:[#allocation3 + $0x48] sm:$0xff] %v395
  %400 = vst [vmem:[#allocation3 + $0x50] sm:$0xff] %v396
  %401 = vst [vmem:[#allocation3 + $0x58] sm:$0xff] %v397
  %v402 = vld [vmem:[#allocation2 + $0x4] sm:$0xff]
  %v403 = vld [vmem:[#allocation2 + $0xc] sm:$0xf]
  %v404 = vld [vmem:[#allocation2 + $0x14] sm:$0xff]
  %v405 = vld [vmem:[#allocation2 + $0x1c] sm:$0xf]
  %408 = vst [vmem:[#allocation1] ss:$2 sm:$0xff] %v402
  %s409 = scalar_lea.vmem [#allocation1], 16
  %410 = vst [vmem:[%s409] ss:$2 sm:$0xff] %v403
  %v411 = vld.sshfl [vmem:[#allocation1] sm:$0xff pattern:$0x75316420]
  %v412 = vld.sshfl [vmem:[#allocation1 + $0x8] sm:$0xff pattern:$0x75316420]
  %v413 = vld.sshfl [vmem:[#allocation1 + $0x10] sm:$0xff pattern:$0x75316420]
  %414 = vrot.lane.b32.xlu0 %v411, 113
  %v415 = vpop.permute.xlu0 %414
  %416 = vrot.lane.b32.xlu0 %v412, 113
  %v417 = vpop.permute.xlu0 %416
  %418 = vrot.lane.b32.xlu0 %v413, 113
  %v419 = vpop.permute.xlu0 %418
  %vm420 = vcmask 924672
  %v421 = vsel %vm420, %v415, %v417
  %v422 = vsel %vm420, %v417, %v419
  %427 = vst [vmem:[#allocation1] ss:$2 sm:$0xff] %v404
  %s428 = scalar_lea.vmem [#allocation1], 16
  %429 = vst [vmem:[%s428] ss:$2 sm:$0xff] %v405
  %v430 = vld.sshfl [vmem:[#allocation1] sm:$0xff pattern:$0x75316420]
  %v431 = vld.sshfl [vmem:[#allocation1 + $0x8] sm:$0xff pattern:$0x75316420]
  %v432 = vld.sshfl [vmem:[#allocation1 + $0x10] sm:$0xff pattern:$0x75316420]
  %433 = vrot.lane.b32.xlu0 %v430, 113
  %v434 = vpop.permute.xlu0 %433
  %435 = vrot.lane.b32.xlu0 %v431, 113
  %v436 = vpop.permute.xlu0 %435
  %437 = vrot.lane.b32.xlu0 %v432, 113
  %v438 = vpop.permute.xlu0 %437
  %v439 = vsel %vm420, %v434, %v436
  %v440 = vsel %vm420, %v436, %v438
  %v443 = vsel %vm144, %v421, 0.0
  %v444 = vsel %vm145, %v422, 0.0
  %v445 = vsel %vm146, %v439, 0.0
  %v446 = vsel %vm147, %v440, 0.0
  %v447 = vld [vmem:[#allocation2 + $0x4] sm:$0xff]
  %v448 = vld [vmem:[#allocation2 + $0xc] sm:$0xf]
  %v449 = vld [vmem:[#allocation2 + $0x14] sm:$0xff]
  %v450 = vld [vmem:[#allocation2 + $0x1c] sm:$0xf]
  %453 = vst [vmem:[#allocation1] ss:$2 sm:$0xff] %v447
  %s454 = scalar_lea.vmem [#allocation1], 16
  %455 = vst [vmem:[%s454] ss:$2 sm:$0xff] %v448
  %v456 = vld.sshfl [vmem:[#allocation1] sm:$0xff pattern:$0x75316420]
  %v457 = vld.sshfl [vmem:[#allocation1 + $0x8] sm:$0xff pattern:$0x75316420]
  %v458 = vld.sshfl [vmem:[#allocation1 + $0x10] sm:$0xff pattern:$0x75316420]
  %459 = vrot.lane.b32.xlu0 %v456, 112
  %v460 = vpop.permute.xlu0 %459
  %461 = vrot.lane.b32.xlu0 %v457, 112
  %v462 = vpop.permute.xlu0 %461
  %463 = vrot.lane.b32.xlu0 %v458, 112
  %v464 = vpop.permute.xlu0 %463
  %vm465 = vcmask 916480
  %v466 = vsel %vm465, %v460, %v462
  %v467 = vsel %vm465, %v462, %v464
  %470 = vst [vmem:[#allocation1] ss:$2 sm:$0xff] %v449
  %s471 = scalar_lea.vmem [#allocation1], 16
  %472 = vst [vmem:[%s471] ss:$2 sm:$0xff] %v450
  %v473 = vld.sshfl [vmem:[#allocation1] sm:$0xff pattern:$0x75316420]
  %v474 = vld.sshfl [vmem:[#allocation1 + $0x8] sm:$0xff pattern:$0x75316420]
  %v475 = vld.sshfl [vmem:[#allocation1 + $0x10] sm:$0xff pattern:$0x75316420]
  %476 = vrot.lane.b32.xlu0 %v473, 112
  %v477 = vpop.permute.xlu0 %476
  %478 = vrot.lane.b32.xlu0 %v474, 112
  %v479 = vpop.permute.xlu0 %478
  %480 = vrot.lane.b32.xlu0 %v475, 112
  %v481 = vpop.permute.xlu0 %480
  %v482 = vsel %vm465, %v477, %v479
  %v483 = vsel %vm465, %v479, %v481
  %v484 = vrot.slane %v466, 4
  %v485 = vrot.slane %v467, 4
  %v486 = vrot.slane %v482, 4
  %v487 = vrot.slane %v483, 4
  %v492 = vsel %vm91, %v443, %v484
  %v493 = vsel %vm91, %v444, %v485
  %v494 = vsel %vm91, %v445, %v486
  %v495 = vsel %vm91, %v446, %v487
  %496 = vst [vmem:[#allocation3 + $0x60] sm:$0xff] %v492
  %497 = vst [vmem:[#allocation3 + $0x68] sm:$0xff] %v493
  %498 = vst [vmem:[#allocation3 + $0x70] sm:$0xff] %v494
  %499 = vst [vmem:[#allocation3 + $0x78] sm:$0xff] %v495
  %v500 = vld [vmem:[#allocation2 + $0x4] sm:$0xff]
  %v501 = vld [vmem:[#allocation2 + $0xc] sm:$0xf]
  %v502 = vld [vmem:[#allocation2 + $0x14] sm:$0xff]
  %v503 = vld [vmem:[#allocation2 + $0x1c] sm:$0xf]
  %506 = vst [vmem:[#allocation1] ss:$2 sm:$0xff] %v500
  %s507 = scalar_lea.vmem [#allocation1], 16
  %508 = vst [vmem:[%s507] ss:$2 sm:$0xff] %v501
  %v509 = vld.sshfl [vmem:[#allocation1] sm:$0xff pattern:$0x75316420]
  %v510 = vld.sshfl [vmem:[#allocation1 + $0x8] sm:$0xff pattern:$0x75316420]
  %v511 = vld.sshfl [vmem:[#allocation1 + $0x10] sm:$0xff pattern:$0x75316420]
  %512 = vrot.lane.b32.xlu0 %v509, 111
  %v513 = vpop.permute.xlu0 %512
  %514 = vrot.lane.b32.xlu0 %v510, 111
  %v515 = vpop.permute.xlu0 %514
  %516 = vrot.lane.b32.xlu0 %v511, 111
  %v517 = vpop.permute.xlu0 %516
  %vm518 = vcmask 908288
  %v519 = vsel %vm518, %v513, %v515
  %v520 = vsel %vm518, %v515, %v517
  %525 = vst [vmem:[#allocation1] ss:$2 sm:$0xff] %v502
  %s526 = scalar_lea.vmem [#allocation1], 16
  %527 = vst [vmem:[%s526] ss:$2 sm:$0xff] %v503
  %v528 = vld.sshfl [vmem:[#allocation1] sm:$0xff pattern:$0x75316420]
  %v529 = vld.sshfl [vmem:[#allocation1 + $0x8] sm:$0xff pattern:$0x75316420]
  %v530 = vld.sshfl [vmem:[#allocation1 + $0x10] sm:$0xff pattern:$0x75316420]
  %531 = vrot.lane.b32.xlu0 %v528, 111
  %v532 = vpop.permute.xlu0 %531
  %533 = vrot.lane.b32.xlu0 %v529, 111
  %v534 = vpop.permute.xlu0 %533
  %535 = vrot.lane.b32.xlu0 %v530, 111
  %v536 = vpop.permute.xlu0 %535
  %v537 = vsel %vm518, %v532, %v534
  %v538 = vsel %vm518, %v534, %v536
  %v541 = vsel %vm250, %v519, 0.0
  %v542 = vsel %vm251, %v520, 0.0
  %v543 = vsel %vm252, %v537, 0.0
  %v544 = vsel %vm253, %v538, 0.0
  %545 = vst [vmem:[#allocation3 + $0x80] sm:$0xf] %v541
  %546 = vst [vmem:[#allocation3 + $0x88] sm:$0xf] %v542
  %547 = vst [vmem:[#allocation3 + $0x90] sm:$0xf] %v543
  %548 = vst [vmem:[#allocation3 + $0x98] sm:$0xf] %v544
  %v549 = vld [vmem:[%s1] sm:$0xf]
  %v550 = vld [vmem:[#allocation3] sm:$0xff]
  %v551 = vld [vmem:[#allocation3 + $0x8] sm:$0xff]
  %v552 = vld [vmem:[#allocation3 + $0x10] sm:$0xff]
  %v553 = vld [vmem:[#allocation3 + $0x18] sm:$0xff]
  %v554 = vld [vmem:[#allocation3 + $0x20] sm:$0xff]
  %v555 = vld [vmem:[#allocation3 + $0x28] sm:$0xff]
  %v556 = vld [vmem:[#allocation3 + $0x30] sm:$0xff]
  %v557 = vld [vmem:[#allocation3 + $0x38] sm:$0xff]
  %v558 = vld [vmem:[#allocation3 + $0x40] sm:$0xff]
  %v559 = vld [vmem:[#allocation3 + $0x48] sm:$0xff]
  %v560 = vld [vmem:[#allocation3 + $0x50] sm:$0xff]
  %v561 = vld [vmem:[#allocation3 + $0x58] sm:$0xff]
  %v562 = vld [vmem:[#allocation3 + $0x60] sm:$0xff]
  %v563 = vld [vmem:[#allocation3 + $0x68] sm:$0xff]
  %v564 = vld [vmem:[#allocation3 + $0x70] sm:$0xff]
  %v565 = vld [vmem:[#allocation3 + $0x78] sm:$0xff]
  %v566 = vld [vmem:[#allocation3 + $0x80] sm:$0xf]
  %v567 = vld [vmem:[#allocation3 + $0x88] sm:$0xf]
  %v568 = vld [vmem:[#allocation3 + $0x90] sm:$0xf]
  %v569 = vld [vmem:[#allocation3 + $0x98] sm:$0xf]
  %v570 = vld [vmem:[%s2] sm:$0xf]
  %572 = vset.pattern.permute.xlu0 0
  %573 = vperm.xlu0 %572, %v570
  %v574 = vpop.permute.xlu0 %573
  %vm576 = vcmask 293888
  %v578 = vsel %vm576, %v549, 0
  %v581 = vsel %vm91, %v566, 0
  %v584 = vsel %vm91, %v567, 0
  %v587 = vsel %vm91, %v568, 0
  %v590 = vsel %vm91, %v569, 0
  %592 = vmatpush.msra.mxu0 0.0
  %593 = vmatpush.msra.mxu0 0.0
  %594 = vmatpush.msra.mxu0 0.0
  %595 = vmatpush.msra.mxu0 0.0
  %596 = vmatpush.msra.mxu0 0.0
  %597 = vmatpush.msra.mxu0 0.0
  %598 = vmatpush.msra.mxu0 0.0
  %599 = vmatpush.msra.mxu0 0.0
  %600 = vmatpush.msra.mxu0 0.0
  %601 = vmatpush.msra.mxu0 0.0
  %602 = vmatpush.msra.mxu0 0.0
  %603 = vmatpush.msra.mxu0 %v581
  %604 = vmatpush.msra.mxu0 %v562
  %605 = vmatpush.msra.mxu0 %v558
  %606 = vmatpush.msra.mxu0 %v554
  %607 = vmatpush.msra.mxu0 %v550
  %608 = vmatmul.f32.gmra.mxu0 %v578
  %v609 = vpop.f32.mrf.mxu0
  %v610 = vadd.f32 %v574, %v609
  %611 = vdwg.mxu0
  %612 = vmatpush.msra.mxu0 0.0
  %613 = vmatpush.msra.mxu0 0.0
  %614 = vmatpush.msra.mxu0 0.0
  %615 = vmatpush.msra.mxu0 0.0
  %616 = vmatpush.msra.mxu0 0.0
  %617 = vmatpush.msra.mxu0 0.0
  %618 = vmatpush.msra.mxu0 0.0
  %619 = vmatpush.msra.mxu0 0.0
  %620 = vmatpush.msra.mxu0 0.0
  %621 = vmatpush.msra.mxu0 0.0
  %622 = vmatpush.msra.mxu0 0.0
  %623 = vmatpush.msra.mxu0 %v584
  %624 = vmatpush.msra.mxu0 %v563
  %625 = vmatpush.msra.mxu0 %v559
  %626 = vmatpush.msra.mxu0 %v555
  %627 = vmatpush.msra.mxu0 %v551
  %628 = vmatmul.f32.gmra.mxu0 %v578
  %v629 = vpop.f32.mrf.mxu0
  %v630 = vadd.f32 %v574, %v629
  %631 = vdwg.mxu0
  %632 = vmatpush.msra.mxu0 0.0
  %633 = vmatpush.msra.mxu0 0.0
  %634 = vmatpush.msra.mxu0 0.0
  %635 = vmatpush.msra.mxu0 0.0
  %636 = vmatpush.msra.mxu0 0.0
  %637 = vmatpush.msra.mxu0 0.0
  %638 = vmatpush.msra.mxu0 0.0
  %639 = vmatpush.msra.mxu0 0.0
  %640 = vmatpush.msra.mxu0 0.0
  %641 = vmatpush.msra.mxu0 0.0
  %642 = vmatpush.msra.mxu0 0.0
  %643 = vmatpush.msra.mxu0 %v587
  %644 = vmatpush.msra.mxu0 %v564
  %645 = vmatpush.msra.mxu0 %v560
  %646 = vmatpush.msra.mxu0 %v556
  %647 = vmatpush.msra.mxu0 %v552
  %648 = vmatmul.f32.gmra.mxu0 %v578
  %v649 = vpop.f32.mrf.mxu0
  %v650 = vadd.f32 %v574, %v649
  %651 = vdwg.mxu0
  %652 = vmatpush.msra.mxu0 0.0
  %653 = vmatpush.msra.mxu0 0.0
  %654 = vmatpush.msra.mxu0 0.0
  %655 = vmatpush.msra.mxu0 0.0
  %656 = vmatpush.msra.mxu0 0.0
  %657 = vmatpush.msra.mxu0 0.0
  %658 = vmatpush.msra.mxu0 0.0
  %659 = vmatpush.msra.mxu0 0.0
  %660 = vmatpush.msra.mxu0 0.0
  %661 = vmatpush.msra.mxu0 0.0
  %662 = vmatpush.msra.mxu0 0.0
  %663 = vmatpush.msra.mxu0 %v590
  %664 = vmatpush.msra.mxu0 %v565
  %665 = vmatpush.msra.mxu0 %v561
  %666 = vmatpush.msra.mxu0 %v557
  %667 = vmatpush.msra.mxu0 %v553
  %668 = vmatmul.f32.gmra.mxu0 %v578
  %v669 = vpop.f32.mrf.mxu0
  %v670 = vadd.f32 %v574, %v669
  %671 = vdwg.mxu0
  %v672 = vmax.f32 %v610, 0.0
  %v673 = vmax.f32 %v630, 0.0
  %v674 = vmax.f32 %v650, 0.0
  %v675 = vmax.f32 %v670, 0.0
  %v676 = vsub.f32 %v80, %v672
  %v677 = vsub.f32 %v81, %v673
  %v678 = vsub.f32 %v86, %v674
  %v679 = vsub.f32 %v87, %v675
  %v682 = vrot.slane %v677, 4
  %v683 = vsel %vm91, %v676, %v682
  %685 = vst [vmem:[#allocation2 + $0x4] sm:$0xff] %v683
  %v688 = vrot.slane %v679, 4
  %v689 = vsel %vm91, %v678, %v688
  %691 = vst [vmem:[#allocation2 + $0x14] sm:$0xff] %v689
  %v692 = vld [vmem:[#allocation2] sm:$0xff]
  %v693 = vld [vmem:[#allocation2 + $0x8] sm:$0xf]
  %v694 = vld [vmem:[#allocation2 + $0x10] sm:$0xff]
  %v695 = vld [vmem:[#allocation2 + $0x18] sm:$0xf]
  %698 = vst [vmem:[#allocation1] ss:$2 sm:$0xff] %v692
  %s699 = scalar_lea.vmem [#allocation1], 16
  %700 = vst [vmem:[%s699] ss:$2 sm:$0xff] %v693
  %v701 = vld.sshfl [vmem:[#allocation1] sm:$0xff pattern:$0x75316420]
  %v702 = vld.sshfl [vmem:[#allocation1 + $0x8] sm:$0xff pattern:$0x75316420]
  %v703 = vld.sshfl [vmem:[#allocation1 + $0x10] sm:$0xff pattern:$0x75316420]
  %704 = vrot.lane.b32.xlu0 %v701, 51
  %v705 = vpop.permute.xlu0 %704
  %706 = vrot.lane.b32.xlu0 %v702, 51
  %v707 = vpop.permute.xlu0 %706
  %708 = vrot.lane.b32.xlu0 %v703, 51
  %v709 = vpop.permute.xlu0 %708
  %vm710 = vcmask 416768
  %v711 = vsel %vm710, %v705, %v707
  %v712 = vsel %vm710, %v707, %v709
  %717 = vst [vmem:[#allocation1] ss:$2 sm:$0xff] %v694
  %s718 = scalar_lea.vmem [#allocation1], 16
  %719 = vst [vmem:[%s718] ss:$2 sm:$0xff] %v695
  %v720 = vld.sshfl [vmem:[#allocation1] sm:$0xff pattern:$0x75316420]
  %v721 = vld.sshfl [vmem:[#allocation1 + $0x8] sm:$0xff pattern:$0x75316420]
  %v722 = vld.sshfl [vmem:[#allocation1 + $0x10] sm:$0xff pattern:$0x75316420]
  %723 = vrot.lane.b32.xlu0 %v720, 51
  %v724 = vpop.permute.xlu0 %723
  %725 = vrot.lane.b32.xlu0 %v721, 51
  %v726 = vpop.permute.xlu0 %725
  %727 = vrot.lane.b32.xlu0 %v722, 51
  %v728 = vpop.permute.xlu0 %727
  %v729 = vsel %vm710, %v724, %v726
  %v730 = vsel %vm710, %v726, %v728
  %v733 = vsel %vm35, 1, 0
  %v734 = vsel %vm36, 1, 0
  %v735 = vsel %vm37, 1, 0
  %v736 = vsel %vm38, 1, 0
  %vm737 = vcmp.eq.s32.totalorder %v733, 1
  %vm738 = vcmp.eq.s32.totalorder %v734, 1
  %vm739 = vcmp.eq.s32.totalorder %v735, 1
  %vm740 = vcmp.eq.s32.totalorder %v736, 1
  %v741 = vsel %vm737, %v711, 0.0
  %v742 = vsel %vm738, %v712, 0.0
  %v743 = vsel %vm739, %v729, 0.0
  %v744 = vsel %vm740, %v730, 0.0
  %v745 = vld [vmem:[#allocation2] sm:$0xff]
  %v746 = vld [vmem:[#allocation2 + $0x8] sm:$0xf]
  %v747 = vld [vmem:[#allocation2 + $0x10] sm:$0xff]
  %v748 = vld [vmem:[#allocation2 + $0x18] sm:$0xf]
  %751 = vst [vmem:[#allocation1] ss:$2 sm:$0xff] %v745
  %s752 = scalar_lea.vmem [#allocation1], 16
  %753 = vst [vmem:[%s752] ss:$2 sm:$0xff] %v746
  %v754 = vld.sshfl [vmem:[#allocation1] sm:$0xff pattern:$0x75316420]
  %v755 = vld.sshfl [vmem:[#allocation1 + $0x8] sm:$0xff pattern:$0x75316420]
  %v756 = vld.sshfl [vmem:[#allocation1 + $0x10] sm:$0xff pattern:$0x75316420]
  %757 = vrot.lane.b32.xlu0 %v754, 48
  %v758 = vpop.permute.xlu0 %757
  %759 = vrot.lane.b32.xlu0 %v755, 48
  %v760 = vpop.permute.xlu0 %759
  %761 = vrot.lane.b32.xlu0 %v756, 48
  %v762 = vpop.permute.xlu0 %761
  %vm763 = vcmask 392192
  %v764 = vsel %vm763, %v758, %v760
  %v765 = vsel %vm763, %v760, %v762
  %768 = vst [vmem:[#allocation1] ss:$2 sm:$0xff] %v747
  %s769 = scalar_lea.vmem [#allocation1], 16
  %770 = vst [vmem:[%s769] ss:$2 sm:$0xff] %v748
  %v771 = vld.sshfl [vmem:[#allocation1] sm:$0xff pattern:$0x75316420]
  %v772 = vld.sshfl [vmem:[#allocation1 + $0x8] sm:$0xff pattern:$0x75316420]
  %v773 = vld.sshfl [vmem:[#allocation1 + $0x10] sm:$0xff pattern:$0x75316420]
  %774 = vrot.lane.b32.xlu0 %v771, 48
  %v775 = vpop.permute.xlu0 %774
  %776 = vrot.lane.b32.xlu0 %v772, 48
  %v777 = vpop.permute.xlu0 %776
  %778 = vrot.lane.b32.xlu0 %v773, 48
  %v779 = vpop.permute.xlu0 %778
  %v780 = vsel %vm763, %v775, %v777
  %v781 = vsel %vm763, %v777, %v779
  %v782 = vrot.slane %v764, 4
  %v783 = vrot.slane %v765, 4
  %v784 = vrot.slane %v780, 4
  %v785 = vrot.slane %v781, 4
  %v790 = vsel %vm91, %v741, %v782
  %v791 = vsel %vm91, %v742, %v783
  %v792 = vsel %vm91, %v743, %v784
  %v793 = vsel %vm91, %v744, %v785
  %794 = vst [vmem:[#allocation3] sm:$0xff] %v790
  %795 = vst [vmem:[#allocation3 + $0x8] sm:$0xff] %v791
  %796 = vst [vmem:[#allocation3 + $0x10] sm:$0xff] %v792
  %797 = vst [vmem:[#allocation3 + $0x18] sm:$0xff] %v793
  %v798 = vld [vmem:[#allocation2] sm:$0xff]
  %v799 = vld [vmem:[#allocation2 + $0x8] sm:$0xf]
  %v800 = vld [vmem:[#allocation2 + $0x10] sm:$0xff]
  %v801 = vld [vmem:[#allocation2 + $0x18] sm:$0xf]
  %804 = vst [vmem:[#allocation1] ss:$2 sm:$0xff] %v798
  %s805 = scalar_lea.vmem [#allocation1], 16
  %806 = vst [vmem:[%s805] ss:$2 sm:$0xff] %v799
  %v807 = vld.sshfl [vmem:[#allocation1] sm:$0xff pattern:$0x75316420]
  %v808 = vld.sshfl [vmem:[#allocation1 + $0x8] sm:$0xff pattern:$0x75316420]
  %v809 = vld.sshfl [vmem:[#allocation1 + $0x10] sm:$0xff pattern:$0x75316420]
  %810 = vrot.lane.b32.xlu0 %v807, 45
  %v811 = vpop.permute.xlu0 %810
  %812 = vrot.lane.b32.xlu0 %v808, 45
  %v813 = vpop.permute.xlu0 %812
  %814 = vrot.lane.b32.xlu0 %v809, 45
  %v815 = vpop.permute.xlu0 %814
  %vm816 = vcmask 367616
  %v817 = vsel %vm816, %v811, %v813
  %v818 = vsel %vm816, %v813, %v815
  %823 = vst [vmem:[#allocation1] ss:$2 sm:$0xff] %v800
  %s824 = scalar_lea.vmem [#allocation1], 16
  %825 = vst [vmem:[%s824] ss:$2 sm:$0xff] %v801
  %v826 = vld.sshfl [vmem:[#allocation1] sm:$0xff pattern:$0x75316420]
  %v827 = vld.sshfl [vmem:[#allocation1 + $0x8] sm:$0xff pattern:$0x75316420]
  %v828 = vld.sshfl [vmem:[#allocation1 + $0x10] sm:$0xff pattern:$0x75316420]
  %829 = vrot.lane.b32.xlu0 %v826, 45
  %v830 = vpop.permute.xlu0 %829
  %831 = vrot.lane.b32.xlu0 %v827, 45
  %v832 = vpop.permute.xlu0 %831
  %833 = vrot.lane.b32.xlu0 %v828, 45
  %v834 = vpop.permute.xlu0 %833
  %v835 = vsel %vm816, %v830, %v832
  %v836 = vsel %vm816, %v832, %v834
  %v839 = vsel %vm71, 1, 0
  %v840 = vsel %vm72, 1, 0
  %v841 = vsel %vm73, 1, 0
  %v842 = vsel %vm74, 1, 0
  %vm843 = vcmp.eq.s32.totalorder %v839, 1
  %vm844 = vcmp.eq.s32.totalorder %v840, 1
  %vm845 = vcmp.eq.s32.totalorder %v841, 1
  %vm846 = vcmp.eq.s32.totalorder %v842, 1
  %v847 = vsel %vm843, %v817, 0.0
  %v848 = vsel %vm844, %v818, 0.0
  %v849 = vsel %vm845, %v835, 0.0
  %v850 = vsel %vm846, %v836, 0.0
  %v851 = vld [vmem:[#allocation2] sm:$0xff]
  %v852 = vld [vmem:[#allocation2 + $0x8] sm:$0xf]
  %v853 = vld [vmem:[#allocation2 + $0x10] sm:$0xff]
  %v854 = vld [vmem:[#allocation2 + $0x18] sm:$0xf]
  %857 = vst [vmem:[#allocation1] ss:$2 sm:$0xff] %v851
  %s858 = scalar_lea.vmem [#allocation1], 16
  %859 = vst [vmem:[%s858] ss:$2 sm:$0xff] %v852
  %v860 = vld.sshfl [vmem:[#allocation1] sm:$0xff pattern:$0x75316420]
  %v861 = vld.sshfl [vmem:[#allocation1 + $0x8] sm:$0xff pattern:$0x75316420]
  %v862 = vld.sshfl [vmem:[#allocation1 + $0x10] sm:$0xff pattern:$0x75316420]
  %863 = vrot.lane.b32.xlu0 %v860, 3
  %v864 = vpop.permute.xlu0 %863
  %865 = vrot.lane.b32.xlu0 %v861, 3
  %v866 = vpop.permute.xlu0 %865
  %867 = vrot.lane.b32.xlu0 %v862, 3
  %v868 = vpop.permute.xlu0 %867
  %vm869 = vcmask 23552
  %v870 = vsel %vm869, %v864, %v866
  %v871 = vsel %vm869, %v866, %v868
  %876 = vst [vmem:[#allocation1] ss:$2 sm:$0xff] %v853
  %s877 = scalar_lea.vmem [#allocation1], 16
  %878 = vst [vmem:[%s877] ss:$2 sm:$0xff] %v854
  %v879 = vld.sshfl [vmem:[#allocation1] sm:$0xff pattern:$0x75316420]
  %v880 = vld.sshfl [vmem:[#allocation1 + $0x8] sm:$0xff pattern:$0x75316420]
  %v881 = vld.sshfl [vmem:[#allocation1 + $0x10] sm:$0xff pattern:$0x75316420]
  %882 = vrot.lane.b32.xlu0 %v879, 3
  %v883 = vpop.permute.xlu0 %882
  %884 = vrot.lane.b32.xlu0 %v880, 3
  %v885 = vpop.permute.xlu0 %884
  %886 = vrot.lane.b32.xlu0 %v881, 3
  %v887 = vpop.permute.xlu0 %886
  %v888 = vsel %vm869, %v883, %v885
  %v889 = vsel %vm869, %v885, %v887
  %v892 = vsel %vm737, %v870, 0.0
  %v893 = vsel %vm738, %v871, 0.0
  %v894 = vsel %vm739, %v888, 0.0
  %v895 = vsel %vm740, %v889, 0.0
  %v900 = vrot.slane %v892, 4
  %v901 = vrot.slane %v893, 4
  %v902 = vrot.slane %v894, 4
  %v903 = vrot.slane %v895, 4
  %v908 = vsel %vm91, %v847, %v900
  %v909 = vsel %vm91, %v848, %v901
  %v910 = vsel %vm91, %v849, %v902
  %v911 = vsel %vm91, %v850, %v903
  %912 = vst [vmem:[#allocation3 + $0x20] sm:$0xff] %v908
  %913 = vst [vmem:[#allocation3 + $0x28] sm:$0xff] %v909
  %914 = vst [vmem:[#allocation3 + $0x30] sm:$0xff] %v910
  %915 = vst [vmem:[#allocation3 + $0x38] sm:$0xff] %v911
  %v916 = vld [vmem:[#allocation2 + $0x4] sm:$0xff]
  %v917 = vld [vmem:[#allocation2 + $0x14] sm:$0xff]
  %919 = vst [vmem:[#allocation1] ss:$2 sm:$0xff] %v916
  %v920 = vld.sshfl [vmem:[#allocation1] sm:$0xff pattern:$0x75316420]
  %v921 = vld.sshfl [vmem:[#allocation1 + $0x8] sm:$0xff pattern:$0x75316420]
  %925 = vst [vmem:[#allocation1] ss:$2 sm:$0xff] %v917
  %v926 = vld.sshfl [vmem:[#allocation1] sm:$0xff pattern:$0x75316420]
  %v927 = vld.sshfl [vmem:[#allocation1 + $0x8] sm:$0xff pattern:$0x75316420]
  %v930 = vld [vmem:[#allocation2 + $0x4] sm:$0xff]
  %v931 = vld [vmem:[#allocation2 + $0xc] sm:$0xf]
  %v932 = vld [vmem:[#allocation2 + $0x14] sm:$0xff]
  %v933 = vld [vmem:[#allocation2 + $0x1c] sm:$0xf]
  %936 = vst [vmem:[#allocation1] ss:$2 sm:$0xff] %v930
  %s937 = scalar_lea.vmem [#allocation1], 16
  %938 = vst [vmem:[%s937] ss:$2 sm:$0xff] %v931
  %v939 = vld.sshfl [vmem:[#allocation1] sm:$0xff pattern:$0x75316420]
  %v940 = vld.sshfl [vmem:[#allocation1 + $0x8] sm:$0xff pattern:$0x75316420]
  %v941 = vld.sshfl [vmem:[#allocation1 + $0x10] sm:$0xff pattern:$0x75316420]
  %942 = vrot.lane.b32.xlu0 %v939, 125
  %v943 = vpop.permute.xlu0 %942
  %944 = vrot.lane.b32.xlu0 %v940, 125
  %v945 = vpop.permute.xlu0 %944
  %946 = vrot.lane.b32.xlu0 %v941, 125
  %v947 = vpop.permute.xlu0 %946
  %vm948 = vcmask 1022976
  %v949 = vsel %vm948, %v943, %v945
  %v950 = vsel %vm948, %v945, %v947
  %955 = vst [vmem:[#allocation1] ss:$2 sm:$0xff] %v932
  %s956 = scalar_lea.vmem [#allocation1], 16
  %957 = vst [vmem:[%s956] ss:$2 sm:$0xff] %v933
  %v958 = vld.sshfl [vmem:[#allocation1] sm:$0xff pattern:$0x75316420]
  %v959 = vld.sshfl [vmem:[#allocation1 + $0x8] sm:$0xff pattern:$0x75316420]
  %v960 = vld.sshfl [vmem:[#allocation1 + $0x10] sm:$0xff pattern:$0x75316420]
  %961 = vrot.lane.b32.xlu0 %v958, 125
  %v962 = vpop.permute.xlu0 %961
  %963 = vrot.lane.b32.xlu0 %v959, 125
  %v964 = vpop.permute.xlu0 %963
  %965 = vrot.lane.b32.xlu0 %v960, 125
  %v966 = vpop.permute.xlu0 %965
  %v967 = vsel %vm948, %v962, %v964
  %v968 = vsel %vm948, %v964, %v966
  %v971 = vsel %vm843, %v949, 0.0
  %v972 = vsel %vm844, %v950, 0.0
  %v973 = vsel %vm845, %v967, 0.0
  %v974 = vsel %vm846, %v968, 0.0
  %v979 = vrot.slane %v971, 4
  %v980 = vrot.slane %v972, 4
  %v981 = vrot.slane %v973, 4
  %v982 = vrot.slane %v974, 4
  %v987 = vsel %vm91, %v920, %v979
  %v988 = vsel %vm91, %v921, %v980
  %v989 = vsel %vm91, %v926, %v981
  %v990 = vsel %vm91, %v927, %v982
  %991 = vst [vmem:[#allocation3 + $0x40] sm:$0xff] %v987
  %992 = vst [vmem:[#allocation3 + $0x48] sm:$0xff] %v988
  %993 = vst [vmem:[#allocation3 + $0x50] sm:$0xff] %v989
  %994 = vst [vmem:[#allocation3 + $0x58] sm:$0xff] %v990
  %v995 = vld [vmem:[#allocation2 + $0x4] sm:$0xff]
  %v996 = vld [vmem:[#allocation2 + $0xc] sm:$0xf]
  %v997 = vld [vmem:[#allocation2 + $0x14] sm:$0xff]
  %v998 = vld [vmem:[#allocation2 + $0x1c] sm:$0xf]
  %1001 = vst [vmem:[#allocation1] ss:$2 sm:$0xff] %v995
  %s1002 = scalar_lea.vmem [#allocation1], 16
  %1003 = vst [vmem:[%s1002] ss:$2 sm:$0xff] %v996
  %v1004 = vld.sshfl [vmem:[#allocation1] sm:$0xff pattern:$0x75316420]
  %v1005 = vld.sshfl [vmem:[#allocation1 + $0x8] sm:$0xff pattern:$0x75316420]
  %v1006 = vld.sshfl [vmem:[#allocation1 + $0x10] sm:$0xff pattern:$0x75316420]
  %1007 = vrot.lane.b32.xlu0 %v1004, 83
  %v1008 = vpop.permute.xlu0 %1007
  %1009 = vrot.lane.b32.xlu0 %v1005, 83
  %v1010 = vpop.permute.xlu0 %1009
  %1011 = vrot.lane.b32.xlu0 %v1006, 83
  %v1012 = vpop.permute.xlu0 %1011
  %vm1013 = vcmask 678912
  %v1014 = vsel %vm1013, %v1008, %v1010
  %v1015 = vsel %vm1013, %v1010, %v1012
  %1020 = vst [vmem:[#allocation1] ss:$2 sm:$0xff] %v997
  %s1021 = scalar_lea.vmem [#allocation1], 16
  %1022 = vst [vmem:[%s1021] ss:$2 sm:$0xff] %v998
  %v1023 = vld.sshfl [vmem:[#allocation1] sm:$0xff pattern:$0x75316420]
  %v1024 = vld.sshfl [vmem:[#allocation1 + $0x8] sm:$0xff pattern:$0x75316420]
  %v1025 = vld.sshfl [vmem:[#allocation1 + $0x10] sm:$0xff pattern:$0x75316420]
  %1026 = vrot.lane.b32.xlu0 %v1023, 83
  %v1027 = vpop.permute.xlu0 %1026
  %1028 = vrot.lane.b32.xlu0 %v1024, 83
  %v1029 = vpop.permute.xlu0 %1028
  %1030 = vrot.lane.b32.xlu0 %v1025, 83
  %v1031 = vpop.permute.xlu0 %1030
  %v1032 = vsel %vm1013, %v1027, %v1029
  %v1033 = vsel %vm1013, %v1029, %v1031
  %v1036 = vsel %vm737, %v1014, 0.0
  %v1037 = vsel %vm738, %v1015, 0.0
  %v1038 = vsel %vm739, %v1032, 0.0
  %v1039 = vsel %vm740, %v1033, 0.0
  %v1040 = vld [vmem:[#allocation2 + $0x4] sm:$0xff]
  %v1041 = vld [vmem:[#allocation2 + $0xc] sm:$0xf]
  %v1042 = vld [vmem:[#allocation2 + $0x14] sm:$0xff]
  %v1043 = vld [vmem:[#allocation2 + $0x1c] sm:$0xf]
  %1046 = vst [vmem:[#allocation1] ss:$2 sm:$0xff] %v1040
  %s1047 = scalar_lea.vmem [#allocation1], 16
  %1048 = vst [vmem:[%s1047] ss:$2 sm:$0xff] %v1041
  %v1049 = vld.sshfl [vmem:[#allocation1] sm:$0xff pattern:$0x75316420]
  %v1050 = vld.sshfl [vmem:[#allocation1 + $0x8] sm:$0xff pattern:$0x75316420]
  %v1051 = vld.sshfl [vmem:[#allocation1 + $0x10] sm:$0xff pattern:$0x75316420]
  %1052 = vrot.lane.b32.xlu0 %v1049, 80
  %v1053 = vpop.permute.xlu0 %1052
  %1054 = vrot.lane.b32.xlu0 %v1050, 80
  %v1055 = vpop.permute.xlu0 %1054
  %1056 = vrot.lane.b32.xlu0 %v1051, 80
  %v1057 = vpop.permute.xlu0 %1056
  %vm1058 = vcmask 654336
  %v1059 = vsel %vm1058, %v1053, %v1055
  %v1060 = vsel %vm1058, %v1055, %v1057
  %1063 = vst [vmem:[#allocation1] ss:$2 sm:$0xff] %v1042
  %s1064 = scalar_lea.vmem [#allocation1], 16
  %1065 = vst [vmem:[%s1064] ss:$2 sm:$0xff] %v1043
  %v1066 = vld.sshfl [vmem:[#allocation1] sm:$0xff pattern:$0x75316420]
  %v1067 = vld.sshfl [vmem:[#allocation1 + $0x8] sm:$0xff pattern:$0x75316420]
  %v1068 = vld.sshfl [vmem:[#allocation1 + $0x10] sm:$0xff pattern:$0x75316420]
  %1069 = vrot.lane.b32.xlu0 %v1066, 80
  %v1070 = vpop.permute.xlu0 %1069
  %1071 = vrot.lane.b32.xlu0 %v1067, 80
  %v1072 = vpop.permute.xlu0 %1071
  %1073 = vrot.lane.b32.xlu0 %v1068, 80
  %v1074 = vpop.permute.xlu0 %1073
  %v1075 = vsel %vm1058, %v1070, %v1072
  %v1076 = vsel %vm1058, %v1072, %v1074
  %v1077 = vrot.slane %v1059, 4
  %v1078 = vrot.slane %v1060, 4
  %v1079 = vrot.slane %v1075, 4
  %v1080 = vrot.slane %v1076, 4
  %v1085 = vsel %vm91, %v1036, %v1077
  %v1086 = vsel %vm91, %v1037, %v1078
  %v1087 = vsel %vm91, %v1038, %v1079
  %v1088 = vsel %vm91, %v1039, %v1080
  %1089 = vst [vmem:[#allocation3 + $0x60] sm:$0xff] %v1085
  %1090 = vst [vmem:[#allocation3 + $0x68] sm:$0xff] %v1086
  %1091 = vst [vmem:[#allocation3 + $0x70] sm:$0xff] %v1087
  %1092 = vst [vmem:[#allocation3 + $0x78] sm:$0xff] %v1088
  %v1093 = vld [vmem:[#allocation2 + $0x4] sm:$0xff]
  %v1094 = vld [vmem:[#allocation2 + $0xc] sm:$0xf]
  %v1095 = vld [vmem:[#allocation2 + $0x14] sm:$0xff]
  %v1096 = vld [vmem:[#allocation2 + $0x1c] sm:$0xf]
  %1099 = vst [vmem:[#allocation1] ss:$2 sm:$0xff] %v1093
  %s1100 = scalar_lea.vmem [#allocation1], 16
  %1101 = vst [vmem:[%s1100] ss:$2 sm:$0xff] %v1094
  %v1102 = vld.sshfl [vmem:[#allocation1] sm:$0xff pattern:$0x75316420]
  %v1103 = vld.sshfl [vmem:[#allocation1 + $0x8] sm:$0xff pattern:$0x75316420]
  %v1104 = vld.sshfl [vmem:[#allocation1 + $0x10] sm:$0xff pattern:$0x75316420]
  %1105 = vrot.lane.b32.xlu0 %v1102, 77
  %v1106 = vpop.permute.xlu0 %1105
  %1107 = vrot.lane.b32.xlu0 %v1103, 77
  %v1108 = vpop.permute.xlu0 %1107
  %1109 = vrot.lane.b32.xlu0 %v1104, 77
  %v1110 = vpop.permute.xlu0 %1109
  %vm1111 = vcmask 629760
  %v1112 = vsel %vm1111, %v1106, %v1108
  %v1113 = vsel %vm1111, %v1108, %v1110
  %1118 = vst [vmem:[#allocation1] ss:$2 sm:$0xff] %v1095
  %s1119 = scalar_lea.vmem [#allocation1], 16
  %1120 = vst [vmem:[%s1119] ss:$2 sm:$0xff] %v1096
  %v1121 = vld.sshfl [vmem:[#allocation1] sm:$0xff pattern:$0x75316420]
  %v1122 = vld.sshfl [vmem:[#allocation1 + $0x8] sm:$0xff pattern:$0x75316420]
  %v1123 = vld.sshfl [vmem:[#allocation1 + $0x10] sm:$0xff pattern:$0x75316420]
  %1124 = vrot.lane.b32.xlu0 %v1121, 77
  %v1125 = vpop.permute.xlu0 %1124
  %1126 = vrot.lane.b32.xlu0 %v1122, 77
  %v1127 = vpop.permute.xlu0 %1126
  %1128 = vrot.lane.b32.xlu0 %v1123, 77
  %v1129 = vpop.permute.xlu0 %1128
  %v1130 = vsel %vm1111, %v1125, %v1127
  %v1131 = vsel %vm1111, %v1127, %v1129
  %v1134 = vsel %vm843, %v1112, 0.0
  %v1135 = vsel %vm844, %v1113, 0.0
  %v1136 = vsel %vm845, %v1130, 0.0
  %v1137 = vsel %vm846, %v1131, 0.0
  %1138 = vst [vmem:[#allocation3 + $0x80] sm:$0xf] %v1134
  %1139 = vst [vmem:[#allocation3 + $0x88] sm:$0xf] %v1135
  %1140 = vst [vmem:[#allocation3 + $0x90] sm:$0xf] %v1136
  %1141 = vst [vmem:[#allocation3 + $0x98] sm:$0xf] %v1137
  %s1142 = scalar_lea.vmem %s1, 8
  %v1143 = vld [vmem:[%s1142] sm:$0xf]
  %v1144 = vld [vmem:[#allocation3] sm:$0xff]
  %v1145 = vld [vmem:[#allocation3 + $0x8] sm:$0xff]
  %v1146 = vld [vmem:[#allocation3 + $0x10] sm:$0xff]
  %v1147 = vld [vmem:[#allocation3 + $0x18] sm:$0xff]
  %v1148 = vld [vmem:[#allocation3 + $0x20] sm:$0xff]
  %v1149 = vld [vmem:[#allocation3 + $0x28] sm:$0xff]
  %v1150 = vld [vmem:[#allocation3 + $0x30] sm:$0xff]
  %v1151 = vld [vmem:[#allocation3 + $0x38] sm:$0xff]
  %v1152 = vld [vmem:[#allocation3 + $0x40] sm:$0xff]
  %v1153 = vld [vmem:[#allocation3 + $0x48] sm:$0xff]
  %v1154 = vld [vmem:[#allocation3 + $0x50] sm:$0xff]
  %v1155 = vld [vmem:[#allocation3 + $0x58] sm:$0xff]
  %v1156 = vld [vmem:[#allocation3 + $0x60] sm:$0xff]
  %v1157 = vld [vmem:[#allocation3 + $0x68] sm:$0xff]
  %v1158 = vld [vmem:[#allocation3 + $0x70] sm:$0xff]
  %v1159 = vld [vmem:[#allocation3 + $0x78] sm:$0xff]
  %v1160 = vld [vmem:[#allocation3 + $0x80] sm:$0xf]
  %v1161 = vld [vmem:[#allocation3 + $0x88] sm:$0xf]
  %v1162 = vld [vmem:[#allocation3 + $0x90] sm:$0xf]
  %v1163 = vld [vmem:[#allocation3 + $0x98] sm:$0xf]
  %s1164 = scalar_lea.vmem %s2, 4
  %v1165 = vld [vmem:[%s1164] sm:$0xf]
  %1167 = vset.pattern.permute.xlu0 0
  %1168 = vperm.xlu0 %1167, %v1165
  %v1169 = vpop.permute.xlu0 %1168
  %v1172 = vsel %vm576, %v1143, 0
  %v1175 = vsel %vm91, %v1160, 0
  %v1178 = vsel %vm91, %v1161, 0
  %v1181 = vsel %vm91, %v1162, 0
  %v1184 = vsel %vm91, %v1163, 0
  %1186 = vmatpush.msra.mxu0 0.0
  %1187 = vmatpush.msra.mxu0 0.0
  %1188 = vmatpush.msra.mxu0 0.0
  %1189 = vmatpush.msra.mxu0 0.0
  %1190 = vmatpush.msra.mxu0 0.0
  %1191 = vmatpush.msra.mxu0 0.0
  %1192 = vmatpush.msra.mxu0 0.0
  %1193 = vmatpush.msra.mxu0 0.0
  %1194 = vmatpush.msra.mxu0 0.0
  %1195 = vmatpush.msra.mxu0 0.0
  %1196 = vmatpush.msra.mxu0 0.0
  %1197 = vmatpush.msra.mxu0 %v1175
  %1198 = vmatpush.msra.mxu0 %v1156
  %1199 = vmatpush.msra.mxu0 %v1152
  %1200 = vmatpush.msra.mxu0 %v1148
  %1201 = vmatpush.msra.mxu0 %v1144
  %1202 = vmatmul.f32.gmra.mxu0 %v1172
  %v1203 = vpop.f32.mrf.mxu0
  %v1204 = vadd.f32 %v1169, %v1203
  %1205 = vdwg.mxu0
  %1206 = vmatpush.msra.mxu0 0.0
  %1207 = vmatpush.msra.mxu0 0.0
  %1208 = vmatpush.msra.mxu0 0.0
  %1209 = vmatpush.msra.mxu0 0.0
  %1210 = vmatpush.msra.mxu0 0.0
  %1211 = vmatpush.msra.mxu0 0.0
  %1212 = vmatpush.msra.mxu0 0.0
  %1213 = vmatpush.msra.mxu0 0.0
  %1214 = vmatpush.msra.mxu0 0.0
  %1215 = vmatpush.msra.mxu0 0.0
  %1216 = vmatpush.msra.mxu0 0.0
  %1217 = vmatpush.msra.mxu0 %v1178
  %1218 = vmatpush.msra.mxu0 %v1157
  %1219 = vmatpush.msra.mxu0 %v1153
  %1220 = vmatpush.msra.mxu0 %v1149
  %1221 = vmatpush.msra.mxu0 %v1145
  %1222 = vmatmul.f32.gmra.mxu0 %v1172
  %v1223 = vpop.f32.mrf.mxu0
  %v1224 = vadd.f32 %v1169, %v1223
  %1225 = vdwg.mxu0
  %1226 = vmatpush.msra.mxu0 0.0
  %1227 = vmatpush.msra.mxu0 0.0
  %1228 = vmatpush.msra.mxu0 0.0
  %1229 = vmatpush.msra.mxu0 0.0
  %1230 = vmatpush.msra.mxu0 0.0
  %1231 = vmatpush.msra.mxu0 0.0
  %1232 = vmatpush.msra.mxu0 0.0
  %1233 = vmatpush.msra.mxu0 0.0
  %1234 = vmatpush.msra.mxu0 0.0
  %1235 = vmatpush.msra.mxu0 0.0
  %1236 = vmatpush.msra.mxu0 0.0
  %1237 = vmatpush.msra.mxu0 %v1181
  %1238 = vmatpush.msra.mxu0 %v1158
  %1239 = vmatpush.msra.mxu0 %v1154
  %1240 = vmatpush.msra.mxu0 %v1150
  %1241 = vmatpush.msra.mxu0 %v1146
  %1242 = vmatmul.f32.gmra.mxu0 %v1172
  %v1243 = vpop.f32.mrf.mxu0
  %v1244 = vadd.f32 %v1169, %v1243
  %1245 = vdwg.mxu0
  %1246 = vmatpush.msra.mxu0 0.0
  %1247 = vmatpush.msra.mxu0 0.0
  %1248 = vmatpush.msra.mxu0 0.0
  %1249 = vmatpush.msra.mxu0 0.0
  %1250 = vmatpush.msra.mxu0 0.0
  %1251 = vmatpush.msra.mxu0 0.0
  %1252 = vmatpush.msra.mxu0 0.0
  %1253 = vmatpush.msra.mxu0 0.0
  %1254 = vmatpush.msra.mxu0 0.0
  %1255 = vmatpush.msra.mxu0 0.0
  %1256 = vmatpush.msra.mxu0 0.0
  %1257 = vmatpush.msra.mxu0 %v1184
  %1258 = vmatpush.msra.mxu0 %v1159
  %1259 = vmatpush.msra.mxu0 %v1155
  %1260 = vmatpush.msra.mxu0 %v1151
  %1261 = vmatpush.msra.mxu0 %v1147
  %1262 = vmatmul.f32.gmra.mxu0 %v1172
  %v1263 = vpop.f32.mrf.mxu0
  %v1264 = vadd.f32 %v1169, %v1263
  %1265 = vdwg.mxu0
  %v1266 = vadd.f32 %v1204, %v672
  %v1267 = vadd.f32 %v1224, %v673
  %v1268 = vadd.f32 %v1244, %v674
  %v1269 = vadd.f32 %v1264, %v675
  %v1270 = vmax.f32 %v1266, 0.0
  %v1271 = vmax.f32 %v1267, 0.0
  %v1272 = vmax.f32 %v1268, 0.0
  %v1273 = vmax.f32 %v1269, 0.0
  %v1276 = vrot.slane %v1271, 4
  %v1277 = vsel %vm91, %v1270, %v1276
  %1279 = vst [vmem:[#allocation2 + $0x4] sm:$0xff] %v1277
  %v1282 = vrot.slane %v1273, 4
  %v1283 = vsel %vm91, %v1272, %v1282
  %1285 = vst [vmem:[#allocation2 + $0x14] sm:$0xff] %v1283
  %v1286 = vld [vmem:[#allocation2] sm:$0xff]
  %v1287 = vld [vmem:[#allocation2 + $0x8] sm:$0xf]
  %v1288 = vld [vmem:[#allocation2 + $0x10] sm:$0xff]
  %v1289 = vld [vmem:[#allocation2 + $0x18] sm:$0xf]
  %1292 = vst [vmem:[#allocation1] ss:$2 sm:$0xff] %v1286
  %s1293 = scalar_lea.vmem [#allocation1], 16
  %1294 = vst [vmem:[%s1293] ss:$2 sm:$0xff] %v1287
  %v1295 = vld.sshfl [vmem:[#allocation1] sm:$0xff pattern:$0x75316420]
  %v1296 = vld.sshfl [vmem:[#allocation1 + $0x8] sm:$0xff pattern:$0x75316420]
  %v1297 = vld.sshfl [vmem:[#allocation1 + $0x10] sm:$0xff pattern:$0x75316420]
  %1298 = vrot.lane.b32.xlu0 %v1295, 17
  %v1299 = vpop.permute.xlu0 %1298
  %1300 = vrot.lane.b32.xlu0 %v1296, 17
  %v1301 = vpop.permute.xlu0 %1300
  %1302 = vrot.lane.b32.xlu0 %v1297, 17
  %v1303 = vpop.permute.xlu0 %1302
  %v1304 = vsel %vm117, %v1299, %v1301
  %v1305 = vsel %vm117, %v1301, %v1303
  %1310 = vst [vmem:[#allocation1] ss:$2 sm:$0xff] %v1288
  %s1311 = scalar_lea.vmem [#allocation1], 16
  %1312 = vst [vmem:[%s1311] ss:$2 sm:$0xff] %v1289
  %v1313 = vld.sshfl [vmem:[#allocation1] sm:$0xff pattern:$0x75316420]
  %v1314 = vld.sshfl [vmem:[#allocation1 + $0x8] sm:$0xff pattern:$0x75316420]
  %v1315 = vld.sshfl [vmem:[#allocation1 + $0x10] sm:$0xff pattern:$0x75316420]
  %1316 = vrot.lane.b32.xlu0 %v1313, 17
  %v1317 = vpop.permute.xlu0 %1316
  %1318 = vrot.lane.b32.xlu0 %v1314, 17
  %v1319 = vpop.permute.xlu0 %1318
  %1320 = vrot.lane.b32.xlu0 %v1315, 17
  %v1321 = vpop.permute.xlu0 %1320
  %v1322 = vsel %vm117, %v1317, %v1319
  %v1323 = vsel %vm117, %v1319, %v1321
  %v1326 = vsel %vm144, %v1304, 0.0
  %v1327 = vsel %vm145, %v1305, 0.0
  %v1328 = vsel %vm146, %v1322, 0.0
  %v1329 = vsel %vm147, %v1323, 0.0
  %v1330 = vld [vmem:[#allocation2] sm:$0xff]
  %v1331 = vld [vmem:[#allocation2 + $0x8] sm:$0xf]
  %v1332 = vld [vmem:[#allocation2 + $0x10] sm:$0xff]
  %v1333 = vld [vmem:[#allocation2 + $0x18] sm:$0xf]
  %1336 = vst [vmem:[#allocation1] ss:$2 sm:$0xff] %v1330
  %s1337 = scalar_lea.vmem [#allocation1], 16
  %1338 = vst [vmem:[%s1337] ss:$2 sm:$0xff] %v1331
  %v1339 = vld.sshfl [vmem:[#allocation1] sm:$0xff pattern:$0x75316420]
  %v1340 = vld.sshfl [vmem:[#allocation1 + $0x8] sm:$0xff pattern:$0x75316420]
  %v1341 = vld.sshfl [vmem:[#allocation1 + $0x10] sm:$0xff pattern:$0x75316420]
  %1342 = vrot.lane.b32.xlu0 %v1339, 16
  %v1343 = vpop.permute.xlu0 %1342
  %1344 = vrot.lane.b32.xlu0 %v1340, 16
  %v1345 = vpop.permute.xlu0 %1344
  %1346 = vrot.lane.b32.xlu0 %v1341, 16
  %v1347 = vpop.permute.xlu0 %1346
  %v1348 = vsel %vm170, %v1343, %v1345
  %v1349 = vsel %vm170, %v1345, %v1347
  %1352 = vst [vmem:[#allocation1] ss:$2 sm:$0xff] %v1332
  %s1353 = scalar_lea.vmem [#allocation1], 16
  %1354 = vst [vmem:[%s1353] ss:$2 sm:$0xff] %v1333
  %v1355 = vld.sshfl [vmem:[#allocation1] sm:$0xff pattern:$0x75316420]
  %v1356 = vld.sshfl [vmem:[#allocation1 + $0x8] sm:$0xff pattern:$0x75316420]
  %v1357 = vld.sshfl [vmem:[#allocation1 + $0x10] sm:$0xff pattern:$0x75316420]
  %1358 = vrot.lane.b32.xlu0 %v1355, 16
  %v1359 = vpop.permute.xlu0 %1358
  %1360 = vrot.lane.b32.xlu0 %v1356, 16
  %v1361 = vpop.permute.xlu0 %1360
  %1362 = vrot.lane.b32.xlu0 %v1357, 16
  %v1363 = vpop.permute.xlu0 %1362
  %v1364 = vsel %vm170, %v1359, %v1361
  %v1365 = vsel %vm170, %v1361, %v1363
  %v1366 = vrot.slane %v1348, 4
  %v1367 = vrot.slane %v1349, 4
  %v1368 = vrot.slane %v1364, 4
  %v1369 = vrot.slane %v1365, 4
  %v1374 = vsel %vm91, %v1326, %v1366
  %v1375 = vsel %vm91, %v1327, %v1367
  %v1376 = vsel %vm91, %v1328, %v1368
  %v1377 = vsel %vm91, %v1329, %v1369
  %1378 = vst [vmem:[#allocation3] sm:$0xff] %v1374
  %1379 = vst [vmem:[#allocation3 + $0x8] sm:$0xff] %v1375
  %1380 = vst [vmem:[#allocation3 + $0x10] sm:$0xff] %v1376
  %1381 = vst [vmem:[#allocation3 + $0x18] sm:$0xff] %v1377
  %v1382 = vld [vmem:[#allocation2] sm:$0xff]
  %v1383 = vld [vmem:[#allocation2 + $0x8] sm:$0xf]
  %v1384 = vld [vmem:[#allocation2 + $0x10] sm:$0xff]
  %v1385 = vld [vmem:[#allocation2 + $0x18] sm:$0xf]
  %1388 = vst [vmem:[#allocation1] ss:$2 sm:$0xff] %v1382
  %s1389 = scalar_lea.vmem [#allocation1], 16
  %1390 = vst [vmem:[%s1389] ss:$2 sm:$0xff] %v1383
  %v1391 = vld.sshfl [vmem:[#allocation1] sm:$0xff pattern:$0x75316420]
  %v1392 = vld.sshfl [vmem:[#allocation1 + $0x8] sm:$0xff pattern:$0x75316420]
  %v1393 = vld.sshfl [vmem:[#allocation1 + $0x10] sm:$0xff pattern:$0x75316420]
  %1394 = vrot.lane.b32.xlu0 %v1391, 15
  %v1395 = vpop.permute.xlu0 %1394
  %1396 = vrot.lane.b32.xlu0 %v1392, 15
  %v1397 = vpop.permute.xlu0 %1396
  %1398 = vrot.lane.b32.xlu0 %v1393, 15
  %v1399 = vpop.permute.xlu0 %1398
  %v1400 = vsel %vm223, %v1395, %v1397
  %v1401 = vsel %vm223, %v1397, %v1399
  %1406 = vst [vmem:[#allocation1] ss:$2 sm:$0xff] %v1384
  %s1407 = scalar_lea.vmem [#allocation1], 16
  %1408 = vst [vmem:[%s1407] ss:$2 sm:$0xff] %v1385
  %v1409 = vld.sshfl [vmem:[#allocation1] sm:$0xff pattern:$0x75316420]
  %v1410 = vld.sshfl [vmem:[#allocation1 + $0x8] sm:$0xff pattern:$0x75316420]
  %v1411 = vld.sshfl [vmem:[#allocation1 + $0x10] sm:$0xff pattern:$0x75316420]
  %1412 = vrot.lane.b32.xlu0 %v1409, 15
  %v1413 = vpop.permute.xlu0 %1412
  %1414 = vrot.lane.b32.xlu0 %v1410, 15
  %v1415 = vpop.permute.xlu0 %1414
  %1416 = vrot.lane.b32.xlu0 %v1411, 15
  %v1417 = vpop.permute.xlu0 %1416
  %v1418 = vsel %vm223, %v1413, %v1415
  %v1419 = vsel %vm223, %v1415, %v1417
  %v1422 = vsel %vm250, %v1400, 0.0
  %v1423 = vsel %vm251, %v1401, 0.0
  %v1424 = vsel %vm252, %v1418, 0.0
  %v1425 = vsel %vm253, %v1419, 0.0
  %v1426 = vld [vmem:[#allocation2] sm:$0xff]
  %v1427 = vld [vmem:[#allocation2 + $0x8] sm:$0xf]
  %v1428 = vld [vmem:[#allocation2 + $0x10] sm:$0xff]
  %v1429 = vld [vmem:[#allocation2 + $0x18] sm:$0xf]
  %1432 = vst [vmem:[#allocation1] ss:$2 sm:$0xff] %v1426
  %s1433 = scalar_lea.vmem [#allocation1], 16
  %1434 = vst [vmem:[%s1433] ss:$2 sm:$0xff] %v1427
  %v1435 = vld.sshfl [vmem:[#allocation1] sm:$0xff pattern:$0x75316420]
  %v1436 = vld.sshfl [vmem:[#allocation1 + $0x8] sm:$0xff pattern:$0x75316420]
  %v1437 = vld.sshfl [vmem:[#allocation1 + $0x10] sm:$0xff pattern:$0x75316420]
  %1438 = vrot.lane.b32.xlu0 %v1435, 1
  %v1439 = vpop.permute.xlu0 %1438
  %1440 = vrot.lane.b32.xlu0 %v1436, 1
  %v1441 = vpop.permute.xlu0 %1440
  %1442 = vrot.lane.b32.xlu0 %v1437, 1
  %v1443 = vpop.permute.xlu0 %1442
  %v1444 = vsel %vm276, %v1439, %v1441
  %v1445 = vsel %vm276, %v1441, %v1443
  %1450 = vst [vmem:[#allocation1] ss:$2 sm:$0xff] %v1428
  %s1451 = scalar_lea.vmem [#allocation1], 16
  %1452 = vst [vmem:[%s1451] ss:$2 sm:$0xff] %v1429
  %v1453 = vld.sshfl [vmem:[#allocation1] sm:$0xff pattern:$0x75316420]
  %v1454 = vld.sshfl [vmem:[#allocation1 + $0x8] sm:$0xff pattern:$0x75316420]
  %v1455 = vld.sshfl [vmem:[#allocation1 + $0x10] sm:$0xff pattern:$0x75316420]
  %1456 = vrot.lane.b32.xlu0 %v1453, 1
  %v1457 = vpop.permute.xlu0 %1456
  %1458 = vrot.lane.b32.xlu0 %v1454, 1
  %v1459 = vpop.permute.xlu0 %1458
  %1460 = vrot.lane.b32.xlu0 %v1455, 1
  %v1461 = vpop.permute.xlu0 %1460
  %v1462 = vsel %vm276, %v1457, %v1459
  %v1463 = vsel %vm276, %v1459, %v1461
  %v1466 = vsel %vm144, %v1444, 0.0
  %v1467 = vsel %vm145, %v1445, 0.0
  %v1468 = vsel %vm146, %v1462, 0.0
  %v1469 = vsel %vm147, %v1463, 0.0
  %v1474 = vrot.slane %v1466, 4
  %v1475 = vrot.slane %v1467, 4
  %v1476 = vrot.slane %v1468, 4
  %v1477 = vrot.slane %v1469, 4
  %v1482 = vsel %vm91, %v1422, %v1474
  %v1483 = vsel %vm91, %v1423, %v1475
  %v1484 = vsel %vm91, %v1424, %v1476
  %v1485 = vsel %vm91, %v1425, %v1477
  %1486 = vst [vmem:[#allocation3 + $0x20] sm:$0xff] %v1482
  %1487 = vst [vmem:[#allocation3 + $0x28] sm:$0xff] %v1483
  %1488 = vst [vmem:[#allocation3 + $0x30] sm:$0xff] %v1484
  %1489 = vst [vmem:[#allocation3 + $0x38] sm:$0xff] %v1485
  %v1490 = vld [vmem:[#allocation2 + $0x4] sm:$0xff]
  %v1491 = vld [vmem:[#allocation2 + $0x14] sm:$0xff]
  %1493 = vst [vmem:[#allocation1] ss:$2 sm:$0xff] %v1490
  %v1494 = vld.sshfl [vmem:[#allocation1] sm:$0xff pattern:$0x75316420]
  %v1495 = vld.sshfl [vmem:[#allocation1 + $0x8] sm:$0xff pattern:$0x75316420]
  %1499 = vst [vmem:[#allocation1] ss:$2 sm:$0xff] %v1491
  %v1500 = vld.sshfl [vmem:[#allocation1] sm:$0xff pattern:$0x75316420]
  %v1501 = vld.sshfl [vmem:[#allocation1 + $0x8] sm:$0xff pattern:$0x75316420]
  %v1504 = vld [vmem:[#allocation2 + $0x4] sm:$0xff]
  %v1505 = vld [vmem:[#allocation2 + $0xc] sm:$0xf]
  %v1506 = vld [vmem:[#allocation2 + $0x14] sm:$0xff]
  %v1507 = vld [vmem:[#allocation2 + $0x1c] sm:$0xf]
  %1510 = vst [vmem:[#allocation1] ss:$2 sm:$0xff] %v1504
  %s1511 = scalar_lea.vmem [#allocation1], 16
  %1512 = vst [vmem:[%s1511] ss:$2 sm:$0xff] %v1505
  %v1513 = vld.sshfl [vmem:[#allocation1] sm:$0xff pattern:$0x75316420]
  %v1514 = vld.sshfl [vmem:[#allocation1 + $0x8] sm:$0xff pattern:$0x75316420]
  %v1515 = vld.sshfl [vmem:[#allocation1 + $0x10] sm:$0xff pattern:$0x75316420]
  %1516 = vrot.lane.b32.xlu0 %v1513, 127
  %v1517 = vpop.permute.xlu0 %1516
  %1518 = vrot.lane.b32.xlu0 %v1514, 127
  %v1519 = vpop.permute.xlu0 %1518
  %1520 = vrot.lane.b32.xlu0 %v1515, 127
  %v1521 = vpop.permute.xlu0 %1520
  %v1522 = vsel %vm355, %v1517, %v1519
  %v1523 = vsel %vm355, %v1519, %v1521
  %1528 = vst [vmem:[#allocation1] ss:$2 sm:$0xff] %v1506
  %s1529 = scalar_lea.vmem [#allocation1], 16
  %1530 = vst [vmem:[%s1529] ss:$2 sm:$0xff] %v1507
  %v1531 = vld.sshfl [vmem:[#allocation1] sm:$0xff pattern:$0x75316420]
  %v1532 = vld.sshfl [vmem:[#allocation1 + $0x8] sm:$0xff pattern:$0x75316420]
  %v1533 = vld.sshfl [vmem:[#allocation1 + $0x10] sm:$0xff pattern:$0x75316420]
  %1534 = vrot.lane.b32.xlu0 %v1531, 127
  %v1535 = vpop.permute.xlu0 %1534
  %1536 = vrot.lane.b32.xlu0 %v1532, 127
  %v1537 = vpop.permute.xlu0 %1536
  %1538 = vrot.lane.b32.xlu0 %v1533, 127
  %v1539 = vpop.permute.xlu0 %1538
  %v1540 = vsel %vm355, %v1535, %v1537
  %v1541 = vsel %vm355, %v1537, %v1539
  %v1544 = vsel %vm250, %v1522, 0.0
  %v1545 = vsel %vm251, %v1523, 0.0
  %v1546 = vsel %vm252, %v1540, 0.0
  %v1547 = vsel %vm253, %v1541, 0.0
  %v1552 = vrot.slane %v1544, 4
  %v1553 = vrot.slane %v1545, 4
  %v1554 = vrot.slane %v1546, 4
  %v1555 = vrot.slane %v1547, 4
  %v1560 = vsel %vm91, %v1494, %v1552
  %v1561 = vsel %vm91, %v1495, %v1553
  %v1562 = vsel %vm91, %v1500, %v1554
  %v1563 = vsel %vm91, %v1501, %v1555
  %1564 = vst [vmem:[#allocation3 + $0x40] sm:$0xff] %v1560
  %1565 = vst [vmem:[#allocation3 + $0x48] sm:$0xff] %v1561
  %1566 = vst [vmem:[#allocation3 + $0x50] sm:$0xff] %v1562
  %1567 = vst [vmem:[#allocation3 + $0x58] sm:$0xff] %v1563
  %v1568 = vld [vmem:[#allocation2 + $0x4] sm:$0xff]
  %v1569 = vld [vmem:[#allocation2 + $0xc] sm:$0xf]
  %v1570 = vld [vmem:[#allocation2 + $0x14] sm:$0xff]
  %v1571 = vld [vmem:[#allocation2 + $0x1c] sm:$0xf]
  %1574 = vst [vmem:[#allocation1] ss:$2 sm:$0xff] %v1568
  %s1575 = scalar_lea.vmem [#allocation1], 16
  %1576 = vst [vmem:[%s1575] ss:$2 sm:$0xff] %v1569
  %v1577 = vld.sshfl [vmem:[#allocation1] sm:$0xff pattern:$0x75316420]
  %v1578 = vld.sshfl [vmem:[#allocation1 + $0x8] sm:$0xff pattern:$0x75316420]
  %v1579 = vld.sshfl [vmem:[#allocation1 + $0x10] sm:$0xff pattern:$0x75316420]
  %1580 = vrot.lane.b32.xlu0 %v1577, 113
  %v1581 = vpop.permute.xlu0 %1580
  %1582 = vrot.lane.b32.xlu0 %v1578, 113
  %v1583 = vpop.permute.xlu0 %1582
  %1584 = vrot.lane.b32.xlu0 %v1579, 113
  %v1585 = vpop.permute.xlu0 %1584
  %v1586 = vsel %vm420, %v1581, %v1583
  %v1587 = vsel %vm420, %v1583, %v1585
  %1592 = vst [vmem:[#allocation1] ss:$2 sm:$0xff] %v1570
  %s1593 = scalar_lea.vmem [#allocation1], 16
  %1594 = vst [vmem:[%s1593] ss:$2 sm:$0xff] %v1571
  %v1595 = vld.sshfl [vmem:[#allocation1] sm:$0xff pattern:$0x75316420]
  %v1596 = vld.sshfl [vmem:[#allocation1 + $0x8] sm:$0xff pattern:$0x75316420]
  %v1597 = vld.sshfl [vmem:[#allocation1 + $0x10] sm:$0xff pattern:$0x75316420]
  %1598 = vrot.lane.b32.xlu0 %v1595, 113
  %v1599 = vpop.permute.xlu0 %1598
  %1600 = vrot.lane.b32.xlu0 %v1596, 113
  %v1601 = vpop.permute.xlu0 %1600
  %1602 = vrot.lane.b32.xlu0 %v1597, 113
  %v1603 = vpop.permute.xlu0 %1602
  %v1604 = vsel %vm420, %v1599, %v1601
  %v1605 = vsel %vm420, %v1601, %v1603
  %v1608 = vsel %vm144, %v1586, 0.0
  %v1609 = vsel %vm145, %v1587, 0.0
  %v1610 = vsel %vm146, %v1604, 0.0
  %v1611 = vsel %vm147, %v1605, 0.0
  %v1612 = vld [vmem:[#allocation2 + $0x4] sm:$0xff]
  %v1613 = vld [vmem:[#allocation2 + $0xc] sm:$0xf]
  %v1614 = vld [vmem:[#allocation2 + $0x14] sm:$0xff]
  %v1615 = vld [vmem:[#allocation2 + $0x1c] sm:$0xf]
  %1618 = vst [vmem:[#allocation1] ss:$2 sm:$0xff] %v1612
  %s1619 = scalar_lea.vmem [#allocation1], 16
  %1620 = vst [vmem:[%s1619] ss:$2 sm:$0xff] %v1613
  %v1621 = vld.sshfl [vmem:[#allocation1] sm:$0xff pattern:$0x75316420]
  %v1622 = vld.sshfl [vmem:[#allocation1 + $0x8] sm:$0xff pattern:$0x75316420]
  %v1623 = vld.sshfl [vmem:[#allocation1 + $0x10] sm:$0xff pattern:$0x75316420]
  %1624 = vrot.lane.b32.xlu0 %v1621, 112
  %v1625 = vpop.permute.xlu0 %1624
  %1626 = vrot.lane.b32.xlu0 %v1622, 112
  %v1627 = vpop.permute.xlu0 %1626
  %1628 = vrot.lane.b32.xlu0 %v1623, 112
  %v1629 = vpop.permute.xlu0 %1628
  %v1630 = vsel %vm465, %v1625, %v1627
  %v1631 = vsel %vm465, %v1627, %v1629
  %1634 = vst [vmem:[#allocation1] ss:$2 sm:$0xff] %v1614
  %s1635 = scalar_lea.vmem [#allocation1], 16
  %1636 = vst [vmem:[%s1635] ss:$2 sm:$0xff] %v1615
  %v1637 = vld.sshfl [vmem:[#allocation1] sm:$0xff pattern:$0x75316420]
  %v1638 = vld.sshfl [vmem:[#allocation1 + $0x8] sm:$0xff pattern:$0x75316420]
  %v1639 = vld.sshfl [vmem:[#allocation1 + $0x10] sm:$0xff pattern:$0x75316420]
  %1640 = vrot.lane.b32.xlu0 %v1637, 112
  %v1641 = vpop.permute.xlu0 %1640
  %1642 = vrot.lane.b32.xlu0 %v1638, 112
  %v1643 = vpop.permute.xlu0 %1642
  %1644 = vrot.lane.b32.xlu0 %v1639, 112
  %v1645 = vpop.permute.xlu0 %1644
  %v1646 = vsel %vm465, %v1641, %v1643
  %v1647 = vsel %vm465, %v1643, %v1645
  %v1648 = vrot.slane %v1630, 4
  %v1649 = vrot.slane %v1631, 4
  %v1650 = vrot.slane %v1646, 4
  %v1651 = vrot.slane %v1647, 4
  %v1656 = vsel %vm91, %v1608, %v1648
  %v1657 = vsel %vm91, %v1609, %v1649
  %v1658 = vsel %vm91, %v1610, %v1650
  %v1659 = vsel %vm91, %v1611, %v1651
  %1660 = vst [vmem:[#allocation3 + $0x60] sm:$0xff] %v1656
  %1661 = vst [vmem:[#allocation3 + $0x68] sm:$0xff] %v1657
  %1662 = vst [vmem:[#allocation3 + $0x70] sm:$0xff] %v1658
  %1663 = vst [vmem:[#allocation3 + $0x78] sm:$0xff] %v1659
  %v1664 = vld [vmem:[#allocation2 + $0x4] sm:$0xff]
  %v1665 = vld [vmem:[#allocation2 + $0xc] sm:$0xf]
  %v1666 = vld [vmem:[#allocation2 + $0x14] sm:$0xff]
  %v1667 = vld [vmem:[#allocation2 + $0x1c] sm:$0xf]
  %1670 = vst [vmem:[#allocation1] ss:$2 sm:$0xff] %v1664
  %s1671 = scalar_lea.vmem [#allocation1], 16
  %1672 = vst [vmem:[%s1671] ss:$2 sm:$0xff] %v1665
  %v1673 = vld.sshfl [vmem:[#allocation1] sm:$0xff pattern:$0x75316420]
  %v1674 = vld.sshfl [vmem:[#allocation1 + $0x8] sm:$0xff pattern:$0x75316420]
  %v1675 = vld.sshfl [vmem:[#allocation1 + $0x10] sm:$0xff pattern:$0x75316420]
  %1676 = vrot.lane.b32.xlu0 %v1673, 111
  %v1677 = vpop.permute.xlu0 %1676
  %1678 = vrot.lane.b32.xlu0 %v1674, 111
  %v1679 = vpop.permute.xlu0 %1678
  %1680 = vrot.lane.b32.xlu0 %v1675, 111
  %v1681 = vpop.permute.xlu0 %1680
  %v1682 = vsel %vm518, %v1677, %v1679
  %v1683 = vsel %vm518, %v1679, %v1681
  %1688 = vst [vmem:[#allocation1] ss:$2 sm:$0xff] %v1666
  %s1689 = scalar_lea.vmem [#allocation1], 16
  %1690 = vst [vmem:[%s1689] ss:$2 sm:$0xff] %v1667
  %v1691 = vld.sshfl [vmem:[#allocation1] sm:$0xff pattern:$0x75316420]
  %v1692 = vld.sshfl [vmem:[#allocation1 + $0x8] sm:$0xff pattern:$0x75316420]
  %v1693 = vld.sshfl [vmem:[#allocation1 + $0x10] sm:$0xff pattern:$0x75316420]
  %1694 = vrot.lane.b32.xlu0 %v1691, 111
  %v1695 = vpop.permute.xlu0 %1694
  %1696 = vrot.lane.b32.xlu0 %v1692, 111
  %v1697 = vpop.permute.xlu0 %1696
  %1698 = vrot.lane.b32.xlu0 %v1693, 111
  %v1699 = vpop.permute.xlu0 %1698
  %v1700 = vsel %vm518, %v1695, %v1697
  %v1701 = vsel %vm518, %v1697, %v1699
  %v1704 = vsel %vm250, %v1682, 0.0
  %v1705 = vsel %vm251, %v1683, 0.0
  %v1706 = vsel %vm252, %v1700, 0.0
  %v1707 = vsel %vm253, %v1701, 0.0
  %1708 = vst [vmem:[#allocation3 + $0x80] sm:$0xf] %v1704
  %1709 = vst [vmem:[#allocation3 + $0x88] sm:$0xf] %v1705
  %1710 = vst [vmem:[#allocation3 + $0x90] sm:$0xf] %v1706
  %1711 = vst [vmem:[#allocation3 + $0x98] sm:$0xf] %v1707
  %s1712 = scalar_lea.vmem %s1, 16
  %v1713 = vld [vmem:[%s1712] sm:$0xff]
  %v1714 = vld [vmem:[#allocation3] sm:$0xff]
  %v1715 = vld [vmem:[#allocation3 + $0x8] sm:$0xff]
  %v1716 = vld [vmem:[#allocation3 + $0x10] sm:$0xff]
  %v1717 = vld [vmem:[#allocation3 + $0x18] sm:$0xff]
  %v1718 = vld [vmem:[#allocation3 + $0x20] sm:$0xff]
  %v1719 = vld [vmem:[#allocation3 + $0x28] sm:$0xff]
  %v1720 = vld [vmem:[#allocation3 + $0x30] sm:$0xff]
  %v1721 = vld [vmem:[#allocation3 + $0x38] sm:$0xff]
  %v1722 = vld [vmem:[#allocation3 + $0x40] sm:$0xff]
  %v1723 = vld [vmem:[#allocation3 + $0x48] sm:$0xff]
  %v1724 = vld [vmem:[#allocation3 + $0x50] sm:$0xff]
  %v1725 = vld [vmem:[#allocation3 + $0x58] sm:$0xff]
  %v1726 = vld [vmem:[#allocation3 + $0x60] sm:$0xff]
  %v1727 = vld [vmem:[#allocation3 + $0x68] sm:$0xff]
  %v1728 = vld [vmem:[#allocation3 + $0x70] sm:$0xff]
  %v1729 = vld [vmem:[#allocation3 + $0x78] sm:$0xff]
  %v1730 = vld [vmem:[#allocation3 + $0x80] sm:$0xf]
  %v1731 = vld [vmem:[#allocation3 + $0x88] sm:$0xf]
  %v1732 = vld [vmem:[#allocation3 + $0x90] sm:$0xf]
  %v1733 = vld [vmem:[#allocation3 + $0x98] sm:$0xf]
  %v1735 = vsel %vm576, %v1713, 0
  %v1738 = vsel %vm91, %v1730, 0
  %v1741 = vsel %vm91, %v1731, 0
  %v1744 = vsel %vm91, %v1732, 0
  %v1747 = vsel %vm91, %v1733, 0
  %1749 = vmatpush.msra.mxu0 0.0
  %1750 = vmatpush.msra.mxu0 0.0
  %1751 = vmatpush.msra.mxu0 0.0
  %1752 = vmatpush.msra.mxu0 0.0
  %1753 = vmatpush.msra.mxu0 0.0
  %1754 = vmatpush.msra.mxu0 0.0
  %1755 = vmatpush.msra.mxu0 0.0
  %1756 = vmatpush.msra.mxu0 0.0
  %1757 = vmatpush.msra.mxu0 0.0
  %1758 = vmatpush.msra.mxu0 0.0
  %1759 = vmatpush.msra.mxu0 0.0
  %1760 = vmatpush.msra.mxu0 %v1738
  %1761 = vmatpush.msra.mxu0 %v1726
  %1762 = vmatpush.msra.mxu0 %v1722
  %1763 = vmatpush.msra.mxu0 %v1718
  %1764 = vmatpush.msra.mxu0 %v1714
  %1765 = vmatmul.f32.gmra.mxu0 %v1735
  %v1766 = vpop.f32.mrf.mxu0
  %v1767 = vadd.f32 0.0, %v1766
  %1768 = vdwg.mxu0
  %1769 = vmatpush.msra.mxu0 0.0
  %1770 = vmatpush.msra.mxu0 0.0
  %1771 = vmatpush.msra.mxu0 0.0
  %1772 = vmatpush.msra.mxu0 0.0
  %1773 = vmatpush.msra.mxu0 0.0
  %1774 = vmatpush.msra.mxu0 0.0
  %1775 = vmatpush.msra.mxu0 0.0
  %1776 = vmatpush.msra.mxu0 0.0
  %1777 = vmatpush.msra.mxu0 0.0
  %1778 = vmatpush.msra.mxu0 0.0
  %1779 = vmatpush.msra.mxu0 0.0
  %1780 = vmatpush.msra.mxu0 %v1741
  %1781 = vmatpush.msra.mxu0 %v1727
  %1782 = vmatpush.msra.mxu0 %v1723
  %1783 = vmatpush.msra.mxu0 %v1719
  %1784 = vmatpush.msra.mxu0 %v1715
  %1785 = vmatmul.f32.gmra.mxu0 %v1735
  %v1786 = vpop.f32.mrf.mxu0
  %v1787 = vadd.f32 0.0, %v1786
  %1788 = vdwg.mxu0
  %1789 = vmatpush.msra.mxu0 0.0
  %1790 = vmatpush.msra.mxu0 0.0
  %1791 = vmatpush.msra.mxu0 0.0
  %1792 = vmatpush.msra.mxu0 0.0
  %1793 = vmatpush.msra.mxu0 0.0
  %1794 = vmatpush.msra.mxu0 0.0
  %1795 = vmatpush.msra.mxu0 0.0
  %1796 = vmatpush.msra.mxu0 0.0
  %1797 = vmatpush.msra.mxu0 0.0
  %1798 = vmatpush.msra.mxu0 0.0
  %1799 = vmatpush.msra.mxu0 0.0
  %1800 = vmatpush.msra.mxu0 %v1744
  %1801 = vmatpush.msra.mxu0 %v1728
  %1802 = vmatpush.msra.mxu0 %v1724
  %1803 = vmatpush.msra.mxu0 %v1720
  %1804 = vmatpush.msra.mxu0 %v1716
  %1805 = vmatmul.f32.gmra.mxu0 %v1735
  %v1806 = vpop.f32.mrf.mxu0
  %v1807 = vadd.f32 0.0, %v1806
  %1808 = vdwg.mxu0
  %1809 = vmatpush.msra.mxu0 0.0
  %1810 = vmatpush.msra.mxu0 0.0
  %1811 = vmatpush.msra.mxu0 0.0
  %1812 = vmatpush.msra.mxu0 0.0
  %1813 = vmatpush.msra.mxu0 0.0
  %1814 = vmatpush.msra.mxu0 0.0
  %1815 = vmatpush.msra.mxu0 0.0
  %1816 = vmatpush.msra.mxu0 0.0
  %1817 = vmatpush.msra.mxu0 0.0
  %1818 = vmatpush.msra.mxu0 0.0
  %1819 = vmatpush.msra.mxu0 0.0
  %1820 = vmatpush.msra.mxu0 %v1747
  %1821 = vmatpush.msra.mxu0 %v1729
  %1822 = vmatpush.msra.mxu0 %v1725
  %1823 = vmatpush.msra.mxu0 %v1721
  %1824 = vmatpush.msra.mxu0 %v1717
  %1825 = vmatmul.f32.gmra.mxu0 %v1735
  %v1826 = vpop.f32.mrf.mxu0
  %v1827 = vadd.f32 0.0, %v1826
  %1828 = vdwg.mxu0
  %s1829 = scalar_lea.vmem %s2, 8
  %v1830 = vld [vmem:[%s1829] sm:$0xf]
  %1832 = vset.pattern.permute.xlu0 0
  %1833 = vperm.xlu0 %1832, %v1830
  %v1834 = vpop.permute.xlu0 %1833
  %v1836 = vadd.f32 %v1767, %v1834
  %v1837 = vadd.f32 %v1787, %v1834
  %v1838 = vadd.f32 %v1807, %v1834
  %v1839 = vadd.f32 %v1827, %v1834
  %v1840 = vmax.f32 %v1836, 0.0
  %v1841 = vmax.f32 %v1837, 0.0
  %v1842 = vmax.f32 %v1838, 0.0
  %v1843 = vmax.f32 %v1839, 0.0
  %v1844 = vsub.f32 %v1270, %v1840
  %v1845 = vsub.f32 %v1271, %v1841
  %v1846 = vsub.f32 %v1272, %v1842
  %v1847 = vsub.f32 %v1273, %v1843
  %v1850 = vrot.slane %v1845, 4
  %v1851 = vsel %vm91, %v1844, %v1850
  %1853 = vst [vmem:[#allocation2 + $0x4] sm:$0xff] %v1851
  %v1856 = vrot.slane %v1847, 4
  %v1857 = vsel %vm91, %v1846, %v1856
  %1859 = vst [vmem:[#allocation2 + $0x14] sm:$0xff] %v1857
  %v1860 = vld [vmem:[#allocation2] sm:$0xff]
  %v1861 = vld [vmem:[#allocation2 + $0x8] sm:$0xf]
  %v1862 = vld [vmem:[#allocation2 + $0x10] sm:$0xff]
  %v1863 = vld [vmem:[#allocation2 + $0x18] sm:$0xf]
  %1866 = vst [vmem:[#allocation1] ss:$2 sm:$0xff] %v1860
  %s1867 = scalar_lea.vmem [#allocation1], 16
  %1868 = vst [vmem:[%s1867] ss:$2 sm:$0xff] %v1861
  %v1869 = vld.sshfl [vmem:[#allocation1] sm:$0xff pattern:$0x75316420]
  %v1870 = vld.sshfl [vmem:[#allocation1 + $0x8] sm:$0xff pattern:$0x75316420]
  %v1871 = vld.sshfl [vmem:[#allocation1 + $0x10] sm:$0xff pattern:$0x75316420]
  %1872 = vrot.lane.b32.xlu0 %v1869, 51
  %v1873 = vpop.permute.xlu0 %1872
  %1874 = vrot.lane.b32.xlu0 %v1870, 51
  %v1875 = vpop.permute.xlu0 %1874
  %1876 = vrot.lane.b32.xlu0 %v1871, 51
  %v1877 = vpop.permute.xlu0 %1876
  %v1878 = vsel %vm710, %v1873, %v1875
  %v1879 = vsel %vm710, %v1875, %v1877
  %1884 = vst [vmem:[#allocation1] ss:$2 sm:$0xff] %v1862
  %s1885 = scalar_lea.vmem [#allocation1], 16
  %1886 = vst [vmem:[%s1885] ss:$2 sm:$0xff] %v1863
  %v1887 = vld.sshfl [vmem:[#allocation1] sm:$0xff pattern:$0x75316420]
  %v1888 = vld.sshfl [vmem:[#allocation1 + $0x8] sm:$0xff pattern:$0x75316420]
  %v1889 = vld.sshfl [vmem:[#allocation1 + $0x10] sm:$0xff pattern:$0x75316420]
  %1890 = vrot.lane.b32.xlu0 %v1887, 51
  %v1891 = vpop.permute.xlu0 %1890
  %1892 = vrot.lane.b32.xlu0 %v1888, 51
  %v1893 = vpop.permute.xlu0 %1892
  %1894 = vrot.lane.b32.xlu0 %v1889, 51
  %v1895 = vpop.permute.xlu0 %1894
  %v1896 = vsel %vm710, %v1891, %v1893
  %v1897 = vsel %vm710, %v1893, %v1895
  %v1900 = vsel %vm737, %v1878, 0.0
  %v1901 = vsel %vm738, %v1879, 0.0
  %v1902 = vsel %vm739, %v1896, 0.0
  %v1903 = vsel %vm740, %v1897, 0.0
  %v1904 = vld [vmem:[#allocation2] sm:$0xff]
  %v1905 = vld [vmem:[#allocation2 + $0x8] sm:$0xf]
  %v1906 = vld [vmem:[#allocation2 + $0x10] sm:$0xff]
  %v1907 = vld [vmem:[#allocation2 + $0x18] sm:$0xf]
  %1910 = vst [vmem:[#allocation1] ss:$2 sm:$0xff] %v1904
  %s1911 = scalar_lea.vmem [#allocation1], 16
  %1912 = vst [vmem:[%s1911] ss:$2 sm:$0xff] %v1905
  %v1913 = vld.sshfl [vmem:[#allocation1] sm:$0xff pattern:$0x75316420]
  %v1914 = vld.sshfl [vmem:[#allocation1 + $0x8] sm:$0xff pattern:$0x75316420]
  %v1915 = vld.sshfl [vmem:[#allocation1 + $0x10] sm:$0xff pattern:$0x75316420]
  %1916 = vrot.lane.b32.xlu0 %v1913, 48
  %v1917 = vpop.permute.xlu0 %1916
  %1918 = vrot.lane.b32.xlu0 %v1914, 48
  %v1919 = vpop.permute.xlu0 %1918
  %1920 = vrot.lane.b32.xlu0 %v1915, 48
  %v1921 = vpop.permute.xlu0 %1920
  %v1922 = vsel %vm763, %v1917, %v1919
  %v1923 = vsel %vm763, %v1919, %v1921
  %1926 = vst [vmem:[#allocation1] ss:$2 sm:$0xff] %v1906
  %s1927 = scalar_lea.vmem [#allocation1], 16
  %1928 = vst [vmem:[%s1927] ss:$2 sm:$0xff] %v1907
  %v1929 = vld.sshfl [vmem:[#allocation1] sm:$0xff pattern:$0x75316420]
  %v1930 = vld.sshfl [vmem:[#allocation1 + $0x8] sm:$0xff pattern:$0x75316420]
  %v1931 = vld.sshfl [vmem:[#allocation1 + $0x10] sm:$0xff pattern:$0x75316420]
  %1932 = vrot.lane.b32.xlu0 %v1929, 48
  %v1933 = vpop.permute.xlu0 %1932
  %1934 = vrot.lane.b32.xlu0 %v1930, 48
  %v1935 = vpop.permute.xlu0 %1934
  %1936 = vrot.lane.b32.xlu0 %v1931, 48
  %v1937 = vpop.permute.xlu0 %1936
  %v1938 = vsel %vm763, %v1933, %v1935
  %v1939 = vsel %vm763, %v1935, %v1937
  %v1940 = vrot.slane %v1922, 4
  %v1941 = vrot.slane %v1923, 4
  %v1942 = vrot.slane %v1938, 4
  %v1943 = vrot.slane %v1939, 4
  %v1948 = vsel %vm91, %v1900, %v1940
  %v1949 = vsel %vm91, %v1901, %v1941
  %v1950 = vsel %vm91, %v1902, %v1942
  %v1951 = vsel %vm91, %v1903, %v1943
  %1952 = vst [vmem:[#allocation3] sm:$0xff] %v1948
  %1953 = vst [vmem:[#allocation3 + $0x8] sm:$0xff] %v1949
  %1954 = vst [vmem:[#allocation3 + $0x10] sm:$0xff] %v1950
  %1955 = vst [vmem:[#allocation3 + $0x18] sm:$0xff] %v1951
  %v1956 = vld [vmem:[#allocation2] sm:$0xff]
  %v1957 = vld [vmem:[#allocation2 + $0x8] sm:$0xf]
  %v1958 = vld [vmem:[#allocation2 + $0x10] sm:$0xff]
  %v1959 = vld [vmem:[#allocation2 + $0x18] sm:$0xf]
  %1962 = vst [vmem:[#allocation1] ss:$2 sm:$0xff] %v1956
  %s1963 = scalar_lea.vmem [#allocation1], 16
  %1964 = vst [vmem:[%s1963] ss:$2 sm:$0xff] %v1957
  %v1965 = vld.sshfl [vmem:[#allocation1] sm:$0xff pattern:$0x75316420]
  %v1966 = vld.sshfl [vmem:[#allocation1 + $0x8] sm:$0xff pattern:$0x75316420]
  %v1967 = vld.sshfl [vmem:[#allocation1 + $0x10] sm:$0xff pattern:$0x75316420]
  %1968 = vrot.lane.b32.xlu0 %v1965, 45
  %v1969 = vpop.permute.xlu0 %1968
  %1970 = vrot.lane.b32.xlu0 %v1966, 45
  %v1971 = vpop.permute.xlu0 %1970
  %1972 = vrot.lane.b32.xlu0 %v1967, 45
  %v1973 = vpop.permute.xlu0 %1972
  %v1974 = vsel %vm816, %v1969, %v1971
  %v1975 = vsel %vm816, %v1971, %v1973
  %1980 = vst [vmem:[#allocation1] ss:$2 sm:$0xff] %v1958
  %s1981 = scalar_lea.vmem [#allocation1], 16
  %1982 = vst [vmem:[%s1981] ss:$2 sm:$0xff] %v1959
  %v1983 = vld.sshfl [vmem:[#allocation1] sm:$0xff pattern:$0x75316420]
  %v1984 = vld.sshfl [vmem:[#allocation1 + $0x8] sm:$0xff pattern:$0x75316420]
  %v1985 = vld.sshfl [vmem:[#allocation1 + $0x10] sm:$0xff pattern:$0x75316420]
  %1986 = vrot.lane.b32.xlu0 %v1983, 45
  %v1987 = vpop.permute.xlu0 %1986
  %1988 = vrot.lane.b32.xlu0 %v1984, 45
  %v1989 = vpop.permute.xlu0 %1988
  %1990 = vrot.lane.b32.xlu0 %v1985, 45
  %v1991 = vpop.permute.xlu0 %1990
  %v1992 = vsel %vm816, %v1987, %v1989
  %v1993 = vsel %vm816, %v1989, %v1991
  %v1996 = vsel %vm843, %v1974, 0.0
  %v1997 = vsel %vm844, %v1975, 0.0
  %v1998 = vsel %vm845, %v1992, 0.0
  %v1999 = vsel %vm846, %v1993, 0.0
  %v2000 = vld [vmem:[#allocation2] sm:$0xff]
  %v2001 = vld [vmem:[#allocation2 + $0x8] sm:$0xf]
  %v2002 = vld [vmem:[#allocation2 + $0x10] sm:$0xff]
  %v2003 = vld [vmem:[#allocation2 + $0x18] sm:$0xf]
  %2006 = vst [vmem:[#allocation1] ss:$2 sm:$0xff] %v2000
  %s2007 = scalar_lea.vmem [#allocation1], 16
  %2008 = vst [vmem:[%s2007] ss:$2 sm:$0xff] %v2001
  %v2009 = vld.sshfl [vmem:[#allocation1] sm:$0xff pattern:$0x75316420]
  %v2010 = vld.sshfl [vmem:[#allocation1 + $0x8] sm:$0xff pattern:$0x75316420]
  %v2011 = vld.sshfl [vmem:[#allocation1 + $0x10] sm:$0xff pattern:$0x75316420]
  %2012 = vrot.lane.b32.xlu0 %v2009, 3
  %v2013 = vpop.permute.xlu0 %2012
  %2014 = vrot.lane.b32.xlu0 %v2010, 3
  %v2015 = vpop.permute.xlu0 %2014
  %2016 = vrot.lane.b32.xlu0 %v2011, 3
  %v2017 = vpop.permute.xlu0 %2016
  %v2018 = vsel %vm869, %v2013, %v2015
  %v2019 = vsel %vm869, %v2015, %v2017
  %2024 = vst [vmem:[#allocation1] ss:$2 sm:$0xff] %v2002
  %s2025 = scalar_lea.vmem [#allocation1], 16
  %2026 = vst [vmem:[%s2025] ss:$2 sm:$0xff] %v2003
  %v2027 = vld.sshfl [vmem:[#allocation1] sm:$0xff pattern:$0x75316420]
  %v2028 = vld.sshfl [vmem:[#allocation1 + $0x8] sm:$0xff pattern:$0x75316420]
  %v2029 = vld.sshfl [vmem:[#allocation1 + $0x10] sm:$0xff pattern:$0x75316420]
  %2030 = vrot.lane.b32.xlu0 %v2027, 3
  %v2031 = vpop.permute.xlu0 %2030
  %2032 = vrot.lane.b32.xlu0 %v2028, 3
  %v2033 = vpop.permute.xlu0 %2032
  %2034 = vrot.lane.b32.xlu0 %v2029, 3
  %v2035 = vpop.permute.xlu0 %2034
  %v2036 = vsel %vm869, %v2031, %v2033
  %v2037 = vsel %vm869, %v2033, %v2035
  %v2040 = vsel %vm737, %v2018, 0.0
  %v2041 = vsel %vm738, %v2019, 0.0
  %v2042 = vsel %vm739, %v2036, 0.0
  %v2043 = vsel %vm740, %v2037, 0.0
  %v2048 = vrot.slane %v2040, 4
  %v2049 = vrot.slane %v2041, 4
  %v2050 = vrot.slane %v2042, 4
  %v2051 = vrot.slane %v2043, 4
  %v2056 = vsel %vm91, %v1996, %v2048
  %v2057 = vsel %vm91, %v1997, %v2049
  %v2058 = vsel %vm91, %v1998, %v2050
  %v2059 = vsel %vm91, %v1999, %v2051
  %2060 = vst [vmem:[#allocation3 + $0x20] sm:$0xff] %v2056
  %2061 = vst [vmem:[#allocation3 + $0x28] sm:$0xff] %v2057
  %2062 = vst [vmem:[#allocation3 + $0x30] sm:$0xff] %v2058
  %2063 = vst [vmem:[#allocation3 + $0x38] sm:$0xff] %v2059
  %v2064 = vld [vmem:[#allocation2 + $0x4] sm:$0xff]
  %v2065 = vld [vmem:[#allocation2 + $0x14] sm:$0xff]
  %2067 = vst [vmem:[#allocation1] ss:$2 sm:$0xff] %v2064
  %v2068 = vld.sshfl [vmem:[#allocation1] sm:$0xff pattern:$0x75316420]
  %v2069 = vld.sshfl [vmem:[#allocation1 + $0x8] sm:$0xff pattern:$0x75316420]
  %2073 = vst [vmem:[#allocation1] ss:$2 sm:$0xff] %v2065
  %v2074 = vld.sshfl [vmem:[#allocation1] sm:$0xff pattern:$0x75316420]
  %v2075 = vld.sshfl [vmem:[#allocation1 + $0x8] sm:$0xff pattern:$0x75316420]
  %v2078 = vld [vmem:[#allocation2 + $0x4] sm:$0xff]
  %v2079 = vld [vmem:[#allocation2 + $0xc] sm:$0xf]
  %v2080 = vld [vmem:[#allocation2 + $0x14] sm:$0xff]
  %v2081 = vld [vmem:[#allocation2 + $0x1c] sm:$0xf]
  %2084 = vst [vmem:[#allocation1] ss:$2 sm:$0xff] %v2078
  %s2085 = scalar_lea.vmem [#allocation1], 16
  %2086 = vst [vmem:[%s2085] ss:$2 sm:$0xff] %v2079
  %v2087 = vld.sshfl [vmem:[#allocation1] sm:$0xff pattern:$0x75316420]
  %v2088 = vld.sshfl [vmem:[#allocation1 + $0x8] sm:$0xff pattern:$0x75316420]
  %v2089 = vld.sshfl [vmem:[#allocation1 + $0x10] sm:$0xff pattern:$0x75316420]
  %2090 = vrot.lane.b32.xlu0 %v2087, 125
  %v2091 = vpop.permute.xlu0 %2090
  %2092 = vrot.lane.b32.xlu0 %v2088, 125
  %v2093 = vpop.permute.xlu0 %2092
  %2094 = vrot.lane.b32.xlu0 %v2089, 125
  %v2095 = vpop.permute.xlu0 %2094
  %v2096 = vsel %vm948, %v2091, %v2093
  %v2097 = vsel %vm948, %v2093, %v2095
  %2102 = vst [vmem:[#allocation1] ss:$2 sm:$0xff] %v2080
  %s2103 = scalar_lea.vmem [#allocation1], 16
  %2104 = vst [vmem:[%s2103] ss:$2 sm:$0xff] %v2081
  %v2105 = vld.sshfl [vmem:[#allocation1] sm:$0xff pattern:$0x75316420]
  %v2106 = vld.sshfl [vmem:[#allocation1 + $0x8] sm:$0xff pattern:$0x75316420]
  %v2107 = vld.sshfl [vmem:[#allocation1 + $0x10] sm:$0xff pattern:$0x75316420]
  %2108 = vrot.lane.b32.xlu0 %v2105, 125
  %v2109 = vpop.permute.xlu0 %2108
  %2110 = vrot.lane.b32.xlu0 %v2106, 125
  %v2111 = vpop.permute.xlu0 %2110
  %2112 = vrot.lane.b32.xlu0 %v2107, 125
  %v2113 = vpop.permute.xlu0 %2112
  %v2114 = vsel %vm948, %v2109, %v2111
  %v2115 = vsel %vm948, %v2111, %v2113
  %v2118 = vsel %vm843, %v2096, 0.0
  %v2119 = vsel %vm844, %v2097, 0.0
  %v2120 = vsel %vm845, %v2114, 0.0
  %v2121 = vsel %vm846, %v2115, 0.0
  %v2126 = vrot.slane %v2118, 4
  %v2127 = vrot.slane %v2119, 4
  %v2128 = vrot.slane %v2120, 4
  %v2129 = vrot.slane %v2121, 4
  %v2134 = vsel %vm91, %v2068, %v2126
  %v2135 = vsel %vm91, %v2069, %v2127
  %v2136 = vsel %vm91, %v2074, %v2128
  %v2137 = vsel %vm91, %v2075, %v2129
  %2138 = vst [vmem:[#allocation3 + $0x40] sm:$0xff] %v2134
  %2139 = vst [vmem:[#allocation3 + $0x48] sm:$0xff] %v2135
  %2140 = vst [vmem:[#allocation3 + $0x50] sm:$0xff] %v2136
  %2141 = vst [vmem:[#allocation3 + $0x58] sm:$0xff] %v2137
  %v2142 = vld [vmem:[#allocation2 + $0x4] sm:$0xff]
  %v2143 = vld [vmem:[#allocation2 + $0xc] sm:$0xf]
  %v2144 = vld [vmem:[#allocation2 + $0x14] sm:$0xff]
  %v2145 = vld [vmem:[#allocation2 + $0x1c] sm:$0xf]
  %2148 = vst [vmem:[#allocation1] ss:$2 sm:$0xff] %v2142
  %s2149 = scalar_lea.vmem [#allocation1], 16
  %2150 = vst [vmem:[%s2149] ss:$2 sm:$0xff] %v2143
  %v2151 = vld.sshfl [vmem:[#allocation1] sm:$0xff pattern:$0x75316420]
  %v2152 = vld.sshfl [vmem:[#allocation1 + $0x8] sm:$0xff pattern:$0x75316420]
  %v2153 = vld.sshfl [vmem:[#allocation1 + $0x10] sm:$0xff pattern:$0x75316420]
  %2154 = vrot.lane.b32.xlu0 %v2151, 83
  %v2155 = vpop.permute.xlu0 %2154
  %2156 = vrot.lane.b32.xlu0 %v2152, 83
  %v2157 = vpop.permute.xlu0 %2156
  %2158 = vrot.lane.b32.xlu0 %v2153, 83
  %v2159 = vpop.permute.xlu0 %2158
  %v2160 = vsel %vm1013, %v2155, %v2157
  %v2161 = vsel %vm1013, %v2157, %v2159
  %2166 = vst [vmem:[#allocation1] ss:$2 sm:$0xff] %v2144
  %s2167 = scalar_lea.vmem [#allocation1], 16
  %2168 = vst [vmem:[%s2167] ss:$2 sm:$0xff] %v2145
  %v2169 = vld.sshfl [vmem:[#allocation1] sm:$0xff pattern:$0x75316420]
  %v2170 = vld.sshfl [vmem:[#allocation1 + $0x8] sm:$0xff pattern:$0x75316420]
  %v2171 = vld.sshfl [vmem:[#allocation1 + $0x10] sm:$0xff pattern:$0x75316420]
  %2172 = vrot.lane.b32.xlu0 %v2169, 83
  %v2173 = vpop.permute.xlu0 %2172
  %2174 = vrot.lane.b32.xlu0 %v2170, 83
  %v2175 = vpop.permute.xlu0 %2174
  %2176 = vrot.lane.b32.xlu0 %v2171, 83
  %v2177 = vpop.permute.xlu0 %2176
  %v2178 = vsel %vm1013, %v2173, %v2175
  %v2179 = vsel %vm1013, %v2175, %v2177
  %v2182 = vsel %vm737, %v2160, 0.0
  %v2183 = vsel %vm738, %v2161, 0.0
  %v2184 = vsel %vm739, %v2178, 0.0
  %v2185 = vsel %vm740, %v2179, 0.0
  %v2186 = vld [vmem:[#allocation2 + $0x4] sm:$0xff]
  %v2187 = vld [vmem:[#allocation2 + $0xc] sm:$0xf]
  %v2188 = vld [vmem:[#allocation2 + $0x14] sm:$0xff]
  %v2189 = vld [vmem:[#allocation2 + $0x1c] sm:$0xf]
  %2192 = vst [vmem:[#allocation1] ss:$2 sm:$0xff] %v2186
  %s2193 = scalar_lea.vmem [#allocation1], 16
  %2194 = vst [vmem:[%s2193] ss:$2 sm:$0xff] %v2187
  %v2195 = vld.sshfl [vmem:[#allocation1] sm:$0xff pattern:$0x75316420]
  %v2196 = vld.sshfl [vmem:[#allocation1 + $0x8] sm:$0xff pattern:$0x75316420]
  %v2197 = vld.sshfl [vmem:[#allocation1 + $0x10] sm:$0xff pattern:$0x75316420]
  %2198 = vrot.lane.b32.xlu0 %v2195, 80
  %v2199 = vpop.permute.xlu0 %2198
  %2200 = vrot.lane.b32.xlu0 %v2196, 80
  %v2201 = vpop.permute.xlu0 %2200
  %2202 = vrot.lane.b32.xlu0 %v2197, 80
  %v2203 = vpop.permute.xlu0 %2202
  %v2204 = vsel %vm1058, %v2199, %v2201
  %v2205 = vsel %vm1058, %v2201, %v2203
  %2208 = vst [vmem:[#allocation1] ss:$2 sm:$0xff] %v2188
  %s2209 = scalar_lea.vmem [#allocation1], 16
  %2210 = vst [vmem:[%s2209] ss:$2 sm:$0xff] %v2189
  %v2211 = vld.sshfl [vmem:[#allocation1] sm:$0xff pattern:$0x75316420]
  %v2212 = vld.sshfl [vmem:[#allocation1 + $0x8] sm:$0xff pattern:$0x75316420]
  %v2213 = vld.sshfl [vmem:[#allocation1 + $0x10] sm:$0xff pattern:$0x75316420]
  %2214 = vrot.lane.b32.xlu0 %v2211, 80
  %v2215 = vpop.permute.xlu0 %2214
  %2216 = vrot.lane.b32.xlu0 %v2212, 80
  %v2217 = vpop.permute.xlu0 %2216
  %2218 = vrot.lane.b32.xlu0 %v2213, 80
  %v2219 = vpop.permute.xlu0 %2218
  %v2220 = vsel %vm1058, %v2215, %v2217
  %v2221 = vsel %vm1058, %v2217, %v2219
  %v2222 = vrot.slane %v2204, 4
  %v2223 = vrot.slane %v2205, 4
  %v2224 = vrot.slane %v2220, 4
  %v2225 = vrot.slane %v2221, 4
  %v2230 = vsel %vm91, %v2182, %v2222
  %v2231 = vsel %vm91, %v2183, %v2223
  %v2232 = vsel %vm91, %v2184, %v2224
  %v2233 = vsel %vm91, %v2185, %v2225
  %2234 = vst [vmem:[#allocation3 + $0x60] sm:$0xff] %v2230
  %2235 = vst [vmem:[#allocation3 + $0x68] sm:$0xff] %v2231
  %2236 = vst [vmem:[#allocation3 + $0x70] sm:$0xff] %v2232
  %2237 = vst [vmem:[#allocation3 + $0x78] sm:$0xff] %v2233
  %v2238 = vld [vmem:[#allocation2 + $0x4] sm:$0xff]
  %v2239 = vld [vmem:[#allocation2 + $0xc] sm:$0xf]
  %v2240 = vld [vmem:[#allocation2 + $0x14] sm:$0xff]
  %v2241 = vld [vmem:[#allocation2 + $0x1c] sm:$0xf]
  %2244 = vst [vmem:[#allocation1] ss:$2 sm:$0xff] %v2238
  %s2245 = scalar_lea.vmem [#allocation1], 16
  %2246 = vst [vmem:[%s2245] ss:$2 sm:$0xff] %v2239
  %v2247 = vld.sshfl [vmem:[#allocation1] sm:$0xff pattern:$0x75316420]
  %v2248 = vld.sshfl [vmem:[#allocation1 + $0x8] sm:$0xff pattern:$0x75316420]
  %v2249 = vld.sshfl [vmem:[#allocation1 + $0x10] sm:$0xff pattern:$0x75316420]
  %2250 = vrot.lane.b32.xlu0 %v2247, 77
  %v2251 = vpop.permute.xlu0 %2250
  %2252 = vrot.lane.b32.xlu0 %v2248, 77
  %v2253 = vpop.permute.xlu0 %2252
  %2254 = vrot.lane.b32.xlu0 %v2249, 77
  %v2255 = vpop.permute.xlu0 %2254
  %v2256 = vsel %vm1111, %v2251, %v2253
  %v2257 = vsel %vm1111, %v2253, %v2255
  %2262 = vst [vmem:[#allocation1] ss:$2 sm:$0xff] %v2240
  %s2263 = scalar_lea.vmem [#allocation1], 16
  %2264 = vst [vmem:[%s2263] ss:$2 sm:$0xff] %v2241
  %v2265 = vld.sshfl [vmem:[#allocation1] sm:$0xff pattern:$0x75316420]
  %v2266 = vld.sshfl [vmem:[#allocation1 + $0x8] sm:$0xff pattern:$0x75316420]
  %v2267 = vld.sshfl [vmem:[#allocation1 + $0x10] sm:$0xff pattern:$0x75316420]
  %2268 = vrot.lane.b32.xlu0 %v2265, 77
  %v2269 = vpop.permute.xlu0 %2268
  %2270 = vrot.lane.b32.xlu0 %v2266, 77
  %v2271 = vpop.permute.xlu0 %2270
  %2272 = vrot.lane.b32.xlu0 %v2267, 77
  %v2273 = vpop.permute.xlu0 %2272
  %v2274 = vsel %vm1111, %v2269, %v2271
  %v2275 = vsel %vm1111, %v2271, %v2273
  %v2278 = vsel %vm843, %v2256, 0.0
  %v2279 = vsel %vm844, %v2257, 0.0
  %v2280 = vsel %vm845, %v2274, 0.0
  %v2281 = vsel %vm846, %v2275, 0.0
  %2282 = vst [vmem:[#allocation3 + $0x80] sm:$0xf] %v2278
  %2283 = vst [vmem:[#allocation3 + $0x88] sm:$0xf] %v2279
  %2284 = vst [vmem:[#allocation3 + $0x90] sm:$0xf] %v2280
  %2285 = vst [vmem:[#allocation3 + $0x98] sm:$0xf] %v2281
  %s2286 = scalar_lea.vmem %s1, 24
  %v2287 = vld [vmem:[%s2286] sm:$0xf]
  %v2288 = vld [vmem:[#allocation3] sm:$0xff]
  %v2289 = vld [vmem:[#allocation3 + $0x8] sm:$0xff]
  %v2290 = vld [vmem:[#allocation3 + $0x10] sm:$0xff]
  %v2291 = vld [vmem:[#allocation3 + $0x18] sm:$0xff]
  %v2292 = vld [vmem:[#allocation3 + $0x20] sm:$0xff]
  %v2293 = vld [vmem:[#allocation3 + $0x28] sm:$0xff]
  %v2294 = vld [vmem:[#allocation3 + $0x30] sm:$0xff]
  %v2295 = vld [vmem:[#allocation3 + $0x38] sm:$0xff]
  %v2296 = vld [vmem:[#allocation3 + $0x40] sm:$0xff]
  %v2297 = vld [vmem:[#allocation3 + $0x48] sm:$0xff]
  %v2298 = vld [vmem:[#allocation3 + $0x50] sm:$0xff]
  %v2299 = vld [vmem:[#allocation3 + $0x58] sm:$0xff]
  %v2300 = vld [vmem:[#allocation3 + $0x60] sm:$0xff]
  %v2301 = vld [vmem:[#allocation3 + $0x68] sm:$0xff]
  %v2302 = vld [vmem:[#allocation3 + $0x70] sm:$0xff]
  %v2303 = vld [vmem:[#allocation3 + $0x78] sm:$0xff]
  %v2304 = vld [vmem:[#allocation3 + $0x80] sm:$0xf]
  %v2305 = vld [vmem:[#allocation3 + $0x88] sm:$0xf]
  %v2306 = vld [vmem:[#allocation3 + $0x90] sm:$0xf]
  %v2307 = vld [vmem:[#allocation3 + $0x98] sm:$0xf]
  %s2308 = scalar_lea.vmem %s2, 12
  %v2309 = vld [vmem:[%s2308] sm:$0xf]
  %2311 = vset.pattern.permute.xlu0 0
  %2312 = vperm.xlu0 %2311, %v2309
  %v2313 = vpop.permute.xlu0 %2312
  %v2316 = vsel %vm576, %v2287, 0
  %v2319 = vsel %vm91, %v2304, 0
  %v2322 = vsel %vm91, %v2305, 0
  %v2325 = vsel %vm91, %v2306, 0
  %v2328 = vsel %vm91, %v2307, 0
  %2330 = vmatpush.msra.mxu0 0.0
  %2331 = vmatpush.msra.mxu0 0.0
  %2332 = vmatpush.msra.mxu0 0.0
  %2333 = vmatpush.msra.mxu0 0.0
  %2334 = vmatpush.msra.mxu0 0.0
  %2335 = vmatpush.msra.mxu0 0.0
  %2336 = vmatpush.msra.mxu0 0.0
  %2337 = vmatpush.msra.mxu0 0.0
  %2338 = vmatpush.msra.mxu0 0.0
  %2339 = vmatpush.msra.mxu0 0.0
  %2340 = vmatpush.msra.mxu0 0.0
  %2341 = vmatpush.msra.mxu0 %v2319
  %2342 = vmatpush.msra.mxu0 %v2300
  %2343 = vmatpush.msra.mxu0 %v2296
  %2344 = vmatpush.msra.mxu0 %v2292
  %2345 = vmatpush.msra.mxu0 %v2288
  %2346 = vmatmul.f32.gmra.mxu0 %v2316
  %v2347 = vpop.f32.mrf.mxu0
  %v2348 = vadd.f32 %v2313, %v2347
  %2349 = vdwg.mxu0
  %2350 = vmatpush.msra.mxu0 0.0
  %2351 = vmatpush.msra.mxu0 0.0
  %2352 = vmatpush.msra.mxu0 0.0
  %2353 = vmatpush.msra.mxu0 0.0
  %2354 = vmatpush.msra.mxu0 0.0
  %2355 = vmatpush.msra.mxu0 0.0
  %2356 = vmatpush.msra.mxu0 0.0
  %2357 = vmatpush.msra.mxu0 0.0
  %2358 = vmatpush.msra.mxu0 0.0
  %2359 = vmatpush.msra.mxu0 0.0
  %2360 = vmatpush.msra.mxu0 0.0
  %2361 = vmatpush.msra.mxu0 %v2322
  %2362 = vmatpush.msra.mxu0 %v2301
  %2363 = vmatpush.msra.mxu0 %v2297
  %2364 = vmatpush.msra.mxu0 %v2293
  %2365 = vmatpush.msra.mxu0 %v2289
  %2366 = vmatmul.f32.gmra.mxu0 %v2316
  %v2367 = vpop.f32.mrf.mxu0
  %v2368 = vadd.f32 %v2313, %v2367
  %2369 = vdwg.mxu0
  %2370 = vmatpush.msra.mxu0 0.0
  %2371 = vmatpush.msra.mxu0 0.0
  %2372 = vmatpush.msra.mxu0 0.0
  %2373 = vmatpush.msra.mxu0 0.0
  %2374 = vmatpush.msra.mxu0 0.0
  %2375 = vmatpush.msra.mxu0 0.0
  %2376 = vmatpush.msra.mxu0 0.0
  %2377 = vmatpush.msra.mxu0 0.0
  %2378 = vmatpush.msra.mxu0 0.0
  %2379 = vmatpush.msra.mxu0 0.0
  %2380 = vmatpush.msra.mxu0 0.0
  %2381 = vmatpush.msra.mxu0 %v2325
  %2382 = vmatpush.msra.mxu0 %v2302
  %2383 = vmatpush.msra.mxu0 %v2298
  %2384 = vmatpush.msra.mxu0 %v2294
  %2385 = vmatpush.msra.mxu0 %v2290
  %2386 = vmatmul.f32.gmra.mxu0 %v2316
  %v2387 = vpop.f32.mrf.mxu0
  %v2388 = vadd.f32 %v2313, %v2387
  %2389 = vdwg.mxu0
  %2390 = vmatpush.msra.mxu0 0.0
  %2391 = vmatpush.msra.mxu0 0.0
  %2392 = vmatpush.msra.mxu0 0.0
  %2393 = vmatpush.msra.mxu0 0.0
  %2394 = vmatpush.msra.mxu0 0.0
  %2395 = vmatpush.msra.mxu0 0.0
  %2396 = vmatpush.msra.mxu0 0.0
  %2397 = vmatpush.msra.mxu0 0.0
  %2398 = vmatpush.msra.mxu0 0.0
  %2399 = vmatpush.msra.mxu0 0.0
  %2400 = vmatpush.msra.mxu0 0.0
  %2401 = vmatpush.msra.mxu0 %v2328
  %2402 = vmatpush.msra.mxu0 %v2303
  %2403 = vmatpush.msra.mxu0 %v2299
  %2404 = vmatpush.msra.mxu0 %v2295
  %2405 = vmatpush.msra.mxu0 %v2291
  %2406 = vmatmul.f32.gmra.mxu0 %v2316
  %v2407 = vpop.f32.mrf.mxu0
  %v2408 = vadd.f32 %v2313, %v2407
  %2409 = vdwg.mxu0
  %v2410 = vadd.f32 %v2348, %v1840
  %v2411 = vadd.f32 %v2368, %v1841
  %v2412 = vadd.f32 %v2388, %v1842
  %v2413 = vadd.f32 %v2408, %v1843
  %v2414 = vmax.f32 %v2410, 0.0
  %v2415 = vmax.f32 %v2411, 0.0
  %v2416 = vmax.f32 %v2412, 0.0
  %v2417 = vmax.f32 %v2413, 0.0
  %v2420 = vrot.slane %v2415, 4
  %v2421 = vsel %vm91, %v2414, %v2420
  %2423 = vst [vmem:[#allocation2 + $0x4] sm:$0xff] %v2421
  %v2426 = vrot.slane %v2417, 4
  %v2427 = vsel %vm91, %v2416, %v2426
  %2429 = vst [vmem:[#allocation2 + $0x14] sm:$0xff] %v2427
  %v2430 = vld [vmem:[#allocation2] sm:$0xff]
  %v2431 = vld [vmem:[#allocation2 + $0x8] sm:$0xf]
  %v2432 = vld [vmem:[#allocation2 + $0x10] sm:$0xff]
  %v2433 = vld [vmem:[#allocation2 + $0x18] sm:$0xf]
  %2436 = vst [vmem:[#allocation1] ss:$2 sm:$0xff] %v2430
  %s2437 = scalar_lea.vmem [#allocation1], 16
  %2438 = vst [vmem:[%s2437] ss:$2 sm:$0xff] %v2431
  %v2439 = vld.sshfl [vmem:[#allocation1] sm:$0xff pattern:$0x75316420]
  %v2440 = vld.sshfl [vmem:[#allocation1 + $0x8] sm:$0xff pattern:$0x75316420]
  %v2441 = vld.sshfl [vmem:[#allocation1 + $0x10] sm:$0xff pattern:$0x75316420]
  %2442 = vrot.lane.b32.xlu0 %v2439, 17
  %v2443 = vpop.permute.xlu0 %2442
  %2444 = vrot.lane.b32.xlu0 %v2440, 17
  %v2445 = vpop.permute.xlu0 %2444
  %2446 = vrot.lane.b32.xlu0 %v2441, 17
  %v2447 = vpop.permute.xlu0 %2446
  %v2448 = vsel %vm117, %v2443, %v2445
  %v2449 = vsel %vm117, %v2445, %v2447
  %2454 = vst [vmem:[#allocation1] ss:$2 sm:$0xff] %v2432
  %s2455 = scalar_lea.vmem [#allocation1], 16
  %2456 = vst [vmem:[%s2455] ss:$2 sm:$0xff] %v2433
  %v2457 = vld.sshfl [vmem:[#allocation1] sm:$0xff pattern:$0x75316420]
  %v2458 = vld.sshfl [vmem:[#allocation1 + $0x8] sm:$0xff pattern:$0x75316420]
  %v2459 = vld.sshfl [vmem:[#allocation1 + $0x10] sm:$0xff pattern:$0x75316420]
  %2460 = vrot.lane.b32.xlu0 %v2457, 17
  %v2461 = vpop.permute.xlu0 %2460
  %2462 = vrot.lane.b32.xlu0 %v2458, 17
  %v2463 = vpop.permute.xlu0 %2462
  %2464 = vrot.lane.b32.xlu0 %v2459, 17
  %v2465 = vpop.permute.xlu0 %2464
  %v2466 = vsel %vm117, %v2461, %v2463
  %v2467 = vsel %vm117, %v2463, %v2465
  %v2470 = vsel %vm144, %v2448, 0.0
  %v2471 = vsel %vm145, %v2449, 0.0
  %v2472 = vsel %vm146, %v2466, 0.0
  %v2473 = vsel %vm147, %v2467, 0.0
  %v2474 = vld [vmem:[#allocation2] sm:$0xff]
  %v2475 = vld [vmem:[#allocation2 + $0x8] sm:$0xf]
  %v2476 = vld [vmem:[#allocation2 + $0x10] sm:$0xff]
  %v2477 = vld [vmem:[#allocation2 + $0x18] sm:$0xf]
  %2480 = vst [vmem:[#allocation1] ss:$2 sm:$0xff] %v2474
  %s2481 = scalar_lea.vmem [#allocation1], 16
  %2482 = vst [vmem:[%s2481] ss:$2 sm:$0xff] %v2475
  %v2483 = vld.sshfl [vmem:[#allocation1] sm:$0xff pattern:$0x75316420]
  %v2484 = vld.sshfl [vmem:[#allocation1 + $0x8] sm:$0xff pattern:$0x75316420]
  %v2485 = vld.sshfl [vmem:[#allocation1 + $0x10] sm:$0xff pattern:$0x75316420]
  %2486 = vrot.lane.b32.xlu0 %v2483, 16
  %v2487 = vpop.permute.xlu0 %2486
  %2488 = vrot.lane.b32.xlu0 %v2484, 16
  %v2489 = vpop.permute.xlu0 %2488
  %2490 = vrot.lane.b32.xlu0 %v2485, 16
  %v2491 = vpop.permute.xlu0 %2490
  %v2492 = vsel %vm170, %v2487, %v2489
  %v2493 = vsel %vm170, %v2489, %v2491
  %2496 = vst [vmem:[#allocation1] ss:$2 sm:$0xff] %v2476
  %s2497 = scalar_lea.vmem [#allocation1], 16
  %2498 = vst [vmem:[%s2497] ss:$2 sm:$0xff] %v2477
  %v2499 = vld.sshfl [vmem:[#allocation1] sm:$0xff pattern:$0x75316420]
  %v2500 = vld.sshfl [vmem:[#allocation1 + $0x8] sm:$0xff pattern:$0x75316420]
  %v2501 = vld.sshfl [vmem:[#allocation1 + $0x10] sm:$0xff pattern:$0x75316420]
  %2502 = vrot.lane.b32.xlu0 %v2499, 16
  %v2503 = vpop.permute.xlu0 %2502
  %2504 = vrot.lane.b32.xlu0 %v2500, 16
  %v2505 = vpop.permute.xlu0 %2504
  %2506 = vrot.lane.b32.xlu0 %v2501, 16
  %v2507 = vpop.permute.xlu0 %2506
  %v2508 = vsel %vm170, %v2503, %v2505
  %v2509 = vsel %vm170, %v2505, %v2507
  %v2510 = vrot.slane %v2492, 4
  %v2511 = vrot.slane %v2493, 4
  %v2512 = vrot.slane %v2508, 4
  %v2513 = vrot.slane %v2509, 4
  %v2518 = vsel %vm91, %v2470, %v2510
  %v2519 = vsel %vm91, %v2471, %v2511
  %v2520 = vsel %vm91, %v2472, %v2512
  %v2521 = vsel %vm91, %v2473, %v2513
  %2522 = vst [vmem:[#allocation3] sm:$0xff] %v2518
  %2523 = vst [vmem:[#allocation3 + $0x8] sm:$0xff] %v2519
  %2524 = vst [vmem:[#allocation3 + $0x10] sm:$0xff] %v2520
  %2525 = vst [vmem:[#allocation3 + $0x18] sm:$0xff] %v2521
  %v2526 = vld [vmem:[#allocation2] sm:$0xff]
  %v2527 = vld [vmem:[#allocation2 + $0x8] sm:$0xf]
  %v2528 = vld [vmem:[#allocation2 + $0x10] sm:$0xff]
  %v2529 = vld [vmem:[#allocation2 + $0x18] sm:$0xf]
  %2532 = vst [vmem:[#allocation1] ss:$2 sm:$0xff] %v2526
  %s2533 = scalar_lea.vmem [#allocation1], 16
  %2534 = vst [vmem:[%s2533] ss:$2 sm:$0xff] %v2527
  %v2535 = vld.sshfl [vmem:[#allocation1] sm:$0xff pattern:$0x75316420]
  %v2536 = vld.sshfl [vmem:[#allocation1 + $0x8] sm:$0xff pattern:$0x75316420]
  %v2537 = vld.sshfl [vmem:[#allocation1 + $0x10] sm:$0xff pattern:$0x75316420]
  %2538 = vrot.lane.b32.xlu0 %v2535, 15
  %v2539 = vpop.permute.xlu0 %2538
  %2540 = vrot.lane.b32.xlu0 %v2536, 15
  %v2541 = vpop.permute.xlu0 %2540
  %2542 = vrot.lane.b32.xlu0 %v2537, 15
  %v2543 = vpop.permute.xlu0 %2542
  %v2544 = vsel %vm223, %v2539, %v2541
  %v2545 = vsel %vm223, %v2541, %v2543
  %2550 = vst [vmem:[#allocation1] ss:$2 sm:$0xff] %v2528
  %s2551 = scalar_lea.vmem [#allocation1], 16
  %2552 = vst [vmem:[%s2551] ss:$2 sm:$0xff] %v2529
  %v2553 = vld.sshfl [vmem:[#allocation1] sm:$0xff pattern:$0x75316420]
  %v2554 = vld.sshfl [vmem:[#allocation1 + $0x8] sm:$0xff pattern:$0x75316420]
  %v2555 = vld.sshfl [vmem:[#allocation1 + $0x10] sm:$0xff pattern:$0x75316420]
  %2556 = vrot.lane.b32.xlu0 %v2553, 15
  %v2557 = vpop.permute.xlu0 %2556
  %2558 = vrot.lane.b32.xlu0 %v2554, 15
  %v2559 = vpop.permute.xlu0 %2558
  %2560 = vrot.lane.b32.xlu0 %v2555, 15
  %v2561 = vpop.permute.xlu0 %2560
  %v2562 = vsel %vm223, %v2557, %v2559
  %v2563 = vsel %vm223, %v2559, %v2561
  %v2566 = vsel %vm250, %v2544, 0.0
  %v2567 = vsel %vm251, %v2545, 0.0
  %v2568 = vsel %vm252, %v2562, 0.0
  %v2569 = vsel %vm253, %v2563, 0.0
  %v2570 = vld [vmem:[#allocation2] sm:$0xff]
  %v2571 = vld [vmem:[#allocation2 + $0x8] sm:$0xf]
  %v2572 = vld [vmem:[#allocation2 + $0x10] sm:$0xff]
  %v2573 = vld [vmem:[#allocation2 + $0x18] sm:$0xf]
  %2576 = vst [vmem:[#allocation1] ss:$2 sm:$0xff] %v2570
  %s2577 = scalar_lea.vmem [#allocation1], 16
  %2578 = vst [vmem:[%s2577] ss:$2 sm:$0xff] %v2571
  %v2579 = vld.sshfl [vmem:[#allocation1] sm:$0xff pattern:$0x75316420]
  %v2580 = vld.sshfl [vmem:[#allocation1 + $0x8] sm:$0xff pattern:$0x75316420]
  %v2581 = vld.sshfl [vmem:[#allocation1 + $0x10] sm:$0xff pattern:$0x75316420]
  %2582 = vrot.lane.b32.xlu0 %v2579, 1
  %v2583 = vpop.permute.xlu0 %2582
  %2584 = vrot.lane.b32.xlu0 %v2580, 1
  %v2585 = vpop.permute.xlu0 %2584
  %2586 = vrot.lane.b32.xlu0 %v2581, 1
  %v2587 = vpop.permute.xlu0 %2586
  %v2588 = vsel %vm276, %v2583, %v2585
  %v2589 = vsel %vm276, %v2585, %v2587
  %2594 = vst [vmem:[#allocation1] ss:$2 sm:$0xff] %v2572
  %s2595 = scalar_lea.vmem [#allocation1], 16
  %2596 = vst [vmem:[%s2595] ss:$2 sm:$0xff] %v2573
  %v2597 = vld.sshfl [vmem:[#allocation1] sm:$0xff pattern:$0x75316420]
  %v2598 = vld.sshfl [vmem:[#allocation1 + $0x8] sm:$0xff pattern:$0x75316420]
  %v2599 = vld.sshfl [vmem:[#allocation1 + $0x10] sm:$0xff pattern:$0x75316420]
  %2600 = vrot.lane.b32.xlu0 %v2597, 1
  %v2601 = vpop.permute.xlu0 %2600
  %2602 = vrot.lane.b32.xlu0 %v2598, 1
  %v2603 = vpop.permute.xlu0 %2602
  %2604 = vrot.lane.b32.xlu0 %v2599, 1
  %v2605 = vpop.permute.xlu0 %2604
  %v2606 = vsel %vm276, %v2601, %v2603
  %v2607 = vsel %vm276, %v2603, %v2605
  %v2610 = vsel %vm144, %v2588, 0.0
  %v2611 = vsel %vm145, %v2589, 0.0
  %v2612 = vsel %vm146, %v2606, 0.0
  %v2613 = vsel %vm147, %v2607, 0.0
  %v2618 = vrot.slane %v2610, 4
  %v2619 = vrot.slane %v2611, 4
  %v2620 = vrot.slane %v2612, 4
  %v2621 = vrot.slane %v2613, 4
  %v2626 = vsel %vm91, %v2566, %v2618
  %v2627 = vsel %vm91, %v2567, %v2619
  %v2628 = vsel %vm91, %v2568, %v2620
  %v2629 = vsel %vm91, %v2569, %v2621
  %2630 = vst [vmem:[#allocation3 + $0x20] sm:$0xff] %v2626
  %2631 = vst [vmem:[#allocation3 + $0x28] sm:$0xff] %v2627
  %2632 = vst [vmem:[#allocation3 + $0x30] sm:$0xff] %v2628
  %2633 = vst [vmem:[#allocation3 + $0x38] sm:$0xff] %v2629
  %v2634 = vld [vmem:[#allocation2 + $0x4] sm:$0xff]
  %v2635 = vld [vmem:[#allocation2 + $0x14] sm:$0xff]
  %2637 = vst [vmem:[#allocation1] ss:$2 sm:$0xff] %v2634
  %v2638 = vld.sshfl [vmem:[#allocation1] sm:$0xff pattern:$0x75316420]
  %v2639 = vld.sshfl [vmem:[#allocation1 + $0x8] sm:$0xff pattern:$0x75316420]
  %2643 = vst [vmem:[#allocation1] ss:$2 sm:$0xff] %v2635
  %v2644 = vld.sshfl [vmem:[#allocation1] sm:$0xff pattern:$0x75316420]
  %v2645 = vld.sshfl [vmem:[#allocation1 + $0x8] sm:$0xff pattern:$0x75316420]
  %v2648 = vld [vmem:[#allocation2 + $0x4] sm:$0xff]
  %v2649 = vld [vmem:[#allocation2 + $0xc] sm:$0xf]
  %v2650 = vld [vmem:[#allocation2 + $0x14] sm:$0xff]
  %v2651 = vld [vmem:[#allocation2 + $0x1c] sm:$0xf]
  %2654 = vst [vmem:[#allocation1] ss:$2 sm:$0xff] %v2648
  %s2655 = scalar_lea.vmem [#allocation1], 16
  %2656 = vst [vmem:[%s2655] ss:$2 sm:$0xff] %v2649
  %v2657 = vld.sshfl [vmem:[#allocation1] sm:$0xff pattern:$0x75316420]
  %v2658 = vld.sshfl [vmem:[#allocation1 + $0x8] sm:$0xff pattern:$0x75316420]
  %v2659 = vld.sshfl [vmem:[#allocation1 + $0x10] sm:$0xff pattern:$0x75316420]
  %2660 = vrot.lane.b32.xlu0 %v2657, 127
  %v2661 = vpop.permute.xlu0 %2660
  %2662 = vrot.lane.b32.xlu0 %v2658, 127
  %v2663 = vpop.permute.xlu0 %2662
  %2664 = vrot.lane.b32.xlu0 %v2659, 127
  %v2665 = vpop.permute.xlu0 %2664
  %v2666 = vsel %vm355, %v2661, %v2663
  %v2667 = vsel %vm355, %v2663, %v2665
  %2672 = vst [vmem:[#allocation1] ss:$2 sm:$0xff] %v2650
  %s2673 = scalar_lea.vmem [#allocation1], 16
  %2674 = vst [vmem:[%s2673] ss:$2 sm:$0xff] %v2651
  %v2675 = vld.sshfl [vmem:[#allocation1] sm:$0xff pattern:$0x75316420]
  %v2676 = vld.sshfl [vmem:[#allocation1 + $0x8] sm:$0xff pattern:$0x75316420]
  %v2677 = vld.sshfl [vmem:[#allocation1 + $0x10] sm:$0xff pattern:$0x75316420]
  %2678 = vrot.lane.b32.xlu0 %v2675, 127
  %v2679 = vpop.permute.xlu0 %2678
  %2680 = vrot.lane.b32.xlu0 %v2676, 127
  %v2681 = vpop.permute.xlu0 %2680
  %2682 = vrot.lane.b32.xlu0 %v2677, 127
  %v2683 = vpop.permute.xlu0 %2682
  %v2684 = vsel %vm355, %v2679, %v2681
  %v2685 = vsel %vm355, %v2681, %v2683
  %v2688 = vsel %vm250, %v2666, 0.0
  %v2689 = vsel %vm251, %v2667, 0.0
  %v2690 = vsel %vm252, %v2684, 0.0
  %v2691 = vsel %vm253, %v2685, 0.0
  %v2696 = vrot.slane %v2688, 4
  %v2697 = vrot.slane %v2689, 4
  %v2698 = vrot.slane %v2690, 4
  %v2699 = vrot.slane %v2691, 4
  %v2704 = vsel %vm91, %v2638, %v2696
  %v2705 = vsel %vm91, %v2639, %v2697
  %v2706 = vsel %vm91, %v2644, %v2698
  %v2707 = vsel %vm91, %v2645, %v2699
  %2708 = vst [vmem:[#allocation3 + $0x40] sm:$0xff] %v2704
  %2709 = vst [vmem:[#allocation3 + $0x48] sm:$0xff] %v2705
  %2710 = vst [vmem:[#allocation3 + $0x50] sm:$0xff] %v2706
  %2711 = vst [vmem:[#allocation3 + $0x58] sm:$0xff] %v2707
  %v2712 = vld [vmem:[#allocation2 + $0x4] sm:$0xff]
  %v2713 = vld [vmem:[#allocation2 + $0xc] sm:$0xf]
  %v2714 = vld [vmem:[#allocation2 + $0x14] sm:$0xff]
  %v2715 = vld [vmem:[#allocation2 + $0x1c] sm:$0xf]
  %2718 = vst [vmem:[#allocation1] ss:$2 sm:$0xff] %v2712
  %s2719 = scalar_lea.vmem [#allocation1], 16
  %2720 = vst [vmem:[%s2719] ss:$2 sm:$0xff] %v2713
  %v2721 = vld.sshfl [vmem:[#allocation1] sm:$0xff pattern:$0x75316420]
  %v2722 = vld.sshfl [vmem:[#allocation1 + $0x8] sm:$0xff pattern:$0x75316420]
  %v2723 = vld.sshfl [vmem:[#allocation1 + $0x10] sm:$0xff pattern:$0x75316420]
  %2724 = vrot.lane.b32.xlu0 %v2721, 113
  %v2725 = vpop.permute.xlu0 %2724
  %2726 = vrot.lane.b32.xlu0 %v2722, 113
  %v2727 = vpop.permute.xlu0 %2726
  %2728 = vrot.lane.b32.xlu0 %v2723, 113
  %v2729 = vpop.permute.xlu0 %2728
  %v2730 = vsel %vm420, %v2725, %v2727
  %v2731 = vsel %vm420, %v2727, %v2729
  %2736 = vst [vmem:[#allocation1] ss:$2 sm:$0xff] %v2714
  %s2737 = scalar_lea.vmem [#allocation1], 16
  %2738 = vst [vmem:[%s2737] ss:$2 sm:$0xff] %v2715
  %v2739 = vld.sshfl [vmem:[#allocation1] sm:$0xff pattern:$0x75316420]
  %v2740 = vld.sshfl [vmem:[#allocation1 + $0x8] sm:$0xff pattern:$0x75316420]
  %v2741 = vld.sshfl [vmem:[#allocation1 + $0x10] sm:$0xff pattern:$0x75316420]
  %2742 = vrot.lane.b32.xlu0 %v2739, 113
  %v2743 = vpop.permute.xlu0 %2742
  %2744 = vrot.lane.b32.xlu0 %v2740, 113
  %v2745 = vpop.permute.xlu0 %2744
  %2746 = vrot.lane.b32.xlu0 %v2741, 113
  %v2747 = vpop.permute.xlu0 %2746
  %v2748 = vsel %vm420, %v2743, %v2745
  %v2749 = vsel %vm420, %v2745, %v2747
  %v2752 = vsel %vm144, %v2730, 0.0
  %v2753 = vsel %vm145, %v2731, 0.0
  %v2754 = vsel %vm146, %v2748, 0.0
  %v2755 = vsel %vm147, %v2749, 0.0
  %v2756 = vld [vmem:[#allocation2 + $0x4] sm:$0xff]
  %v2757 = vld [vmem:[#allocation2 + $0xc] sm:$0xf]
  %v2758 = vld [vmem:[#allocation2 + $0x14] sm:$0xff]
  %v2759 = vld [vmem:[#allocation2 + $0x1c] sm:$0xf]
  %2762 = vst [vmem:[#allocation1] ss:$2 sm:$0xff] %v2756
  %s2763 = scalar_lea.vmem [#allocation1], 16
  %2764 = vst [vmem:[%s2763] ss:$2 sm:$0xff] %v2757
  %v2765 = vld.sshfl [vmem:[#allocation1] sm:$0xff pattern:$0x75316420]
  %v2766 = vld.sshfl [vmem:[#allocation1 + $0x8] sm:$0xff pattern:$0x75316420]
  %v2767 = vld.sshfl [vmem:[#allocation1 + $0x10] sm:$0xff pattern:$0x75316420]
  %2768 = vrot.lane.b32.xlu0 %v2765, 112
  %v2769 = vpop.permute.xlu0 %2768
  %2770 = vrot.lane.b32.xlu0 %v2766, 112
  %v2771 = vpop.permute.xlu0 %2770
  %2772 = vrot.lane.b32.xlu0 %v2767, 112
  %v2773 = vpop.permute.xlu0 %2772
  %v2774 = vsel %vm465, %v2769, %v2771
  %v2775 = vsel %vm465, %v2771, %v2773
  %2778 = vst [vmem:[#allocation1] ss:$2 sm:$0xff] %v2758
  %s2779 = scalar_lea.vmem [#allocation1], 16
  %2780 = vst [vmem:[%s2779] ss:$2 sm:$0xff] %v2759
  %v2781 = vld.sshfl [vmem:[#allocation1] sm:$0xff pattern:$0x75316420]
  %v2782 = vld.sshfl [vmem:[#allocation1 + $0x8] sm:$0xff pattern:$0x75316420]
  %v2783 = vld.sshfl [vmem:[#allocation1 + $0x10] sm:$0xff pattern:$0x75316420]
  %2784 = vrot.lane.b32.xlu0 %v2781, 112
  %v2785 = vpop.permute.xlu0 %2784
  %2786 = vrot.lane.b32.xlu0 %v2782, 112
  %v2787 = vpop.permute.xlu0 %2786
  %2788 = vrot.lane.b32.xlu0 %v2783, 112
  %v2789 = vpop.permute.xlu0 %2788
  %v2790 = vsel %vm465, %v2785, %v2787
  %v2791 = vsel %vm465, %v2787, %v2789
  %v2792 = vrot.slane %v2774, 4
  %v2793 = vrot.slane %v2775, 4
  %v2794 = vrot.slane %v2790, 4
  %v2795 = vrot.slane %v2791, 4
  %v2800 = vsel %vm91, %v2752, %v2792
  %v2801 = vsel %vm91, %v2753, %v2793
  %v2802 = vsel %vm91, %v2754, %v2794
  %v2803 = vsel %vm91, %v2755, %v2795
  %2804 = vst [vmem:[#allocation3 + $0x60] sm:$0xff] %v2800
  %2805 = vst [vmem:[#allocation3 + $0x68] sm:$0xff] %v2801
  %2806 = vst [vmem:[#allocation3 + $0x70] sm:$0xff] %v2802
  %2807 = vst [vmem:[#allocation3 + $0x78] sm:$0xff] %v2803
  %v2808 = vld [vmem:[#allocation2 + $0x4] sm:$0xff]
  %v2809 = vld [vmem:[#allocation2 + $0xc] sm:$0xf]
  %v2810 = vld [vmem:[#allocation2 + $0x14] sm:$0xff]
  %v2811 = vld [vmem:[#allocation2 + $0x1c] sm:$0xf]
  %2814 = vst [vmem:[#allocation1] ss:$2 sm:$0xff] %v2808
  %s2815 = scalar_lea.vmem [#allocation1], 16
  %2816 = vst [vmem:[%s2815] ss:$2 sm:$0xff] %v2809
  %v2817 = vld.sshfl [vmem:[#allocation1] sm:$0xff pattern:$0x75316420]
  %v2818 = vld.sshfl [vmem:[#allocation1 + $0x8] sm:$0xff pattern:$0x75316420]
  %v2819 = vld.sshfl [vmem:[#allocation1 + $0x10] sm:$0xff pattern:$0x75316420]
  %2820 = vrot.lane.b32.xlu0 %v2817, 111
  %v2821 = vpop.permute.xlu0 %2820
  %2822 = vrot.lane.b32.xlu0 %v2818, 111
  %v2823 = vpop.permute.xlu0 %2822
  %2824 = vrot.lane.b32.xlu0 %v2819, 111
  %v2825 = vpop.permute.xlu0 %2824
  %v2826 = vsel %vm518, %v2821, %v2823
  %v2827 = vsel %vm518, %v2823, %v2825
  %2832 = vst [vmem:[#allocation1] ss:$2 sm:$0xff] %v2810
  %s2833 = scalar_lea.vmem [#allocation1], 16
  %2834 = vst [vmem:[%s2833] ss:$2 sm:$0xff] %v2811
  %v2835 = vld.sshfl [vmem:[#allocation1] sm:$0xff pattern:$0x75316420]
  %v2836 = vld.sshfl [vmem:[#allocation1 + $0x8] sm:$0xff pattern:$0x75316420]
  %v2837 = vld.sshfl [vmem:[#allocation1 + $0x10] sm:$0xff pattern:$0x75316420]
  %2838 = vrot.lane.b32.xlu0 %v2835, 111
  %v2839 = vpop.permute.xlu0 %2838
  %2840 = vrot.lane.b32.xlu0 %v2836, 111
  %v2841 = vpop.permute.xlu0 %2840
  %2842 = vrot.lane.b32.xlu0 %v2837, 111
  %v2843 = vpop.permute.xlu0 %2842
  %v2844 = vsel %vm518, %v2839, %v2841
  %v2845 = vsel %vm518, %v2841, %v2843
  %v2848 = vsel %vm250, %v2826, 0.0
  %v2849 = vsel %vm251, %v2827, 0.0
  %v2850 = vsel %vm252, %v2844, 0.0
  %v2851 = vsel %vm253, %v2845, 0.0
  %2852 = vst [vmem:[#allocation3 + $0x80] sm:$0xf] %v2848
  %2853 = vst [vmem:[#allocation3 + $0x88] sm:$0xf] %v2849
  %2854 = vst [vmem:[#allocation3 + $0x90] sm:$0xf] %v2850
  %2855 = vst [vmem:[#allocation3 + $0x98] sm:$0xf] %v2851
  %s2856 = scalar_lea.vmem %s1, 32
  %v2857 = vld [vmem:[%s2856] sm:$0xf]
  %v2858 = vld [vmem:[#allocation3] sm:$0xff]
  %v2859 = vld [vmem:[#allocation3 + $0x8] sm:$0xff]
  %v2860 = vld [vmem:[#allocation3 + $0x10] sm:$0xff]
  %v2861 = vld [vmem:[#allocation3 + $0x18] sm:$0xff]
  %v2862 = vld [vmem:[#allocation3 + $0x20] sm:$0xff]
  %v2863 = vld [vmem:[#allocation3 + $0x28] sm:$0xff]
  %v2864 = vld [vmem:[#allocation3 + $0x30] sm:$0xff]
  %v2865 = vld [vmem:[#allocation3 + $0x38] sm:$0xff]
  %v2866 = vld [vmem:[#allocation3 + $0x40] sm:$0xff]
  %v2867 = vld [vmem:[#allocation3 + $0x48] sm:$0xff]
  %v2868 = vld [vmem:[#allocation3 + $0x50] sm:$0xff]
  %v2869 = vld [vmem:[#allocation3 + $0x58] sm:$0xff]
  %v2870 = vld [vmem:[#allocation3 + $0x60] sm:$0xff]
  %v2871 = vld [vmem:[#allocation3 + $0x68] sm:$0xff]
  %v2872 = vld [vmem:[#allocation3 + $0x70] sm:$0xff]
  %v2873 = vld [vmem:[#allocation3 + $0x78] sm:$0xff]
  %v2874 = vld [vmem:[#allocation3 + $0x80] sm:$0xf]
  %v2875 = vld [vmem:[#allocation3 + $0x88] sm:$0xf]
  %v2876 = vld [vmem:[#allocation3 + $0x90] sm:$0xf]
  %v2877 = vld [vmem:[#allocation3 + $0x98] sm:$0xf]
  %v2879 = vsel %vm576, %v2857, 0
  %v2882 = vsel %vm91, %v2874, 0
  %v2885 = vsel %vm91, %v2875, 0
  %v2888 = vsel %vm91, %v2876, 0
  %v2891 = vsel %vm91, %v2877, 0
  %2893 = vmatpush.msra.mxu0 0.0
  %2894 = vmatpush.msra.mxu0 0.0
  %2895 = vmatpush.msra.mxu0 0.0
  %2896 = vmatpush.msra.mxu0 0.0
  %2897 = vmatpush.msra.mxu0 0.0
  %2898 = vmatpush.msra.mxu0 0.0
  %2899 = vmatpush.msra.mxu0 0.0
  %2900 = vmatpush.msra.mxu0 0.0
  %2901 = vmatpush.msra.mxu0 0.0
  %2902 = vmatpush.msra.mxu0 0.0
  %2903 = vmatpush.msra.mxu0 0.0
  %2904 = vmatpush.msra.mxu0 %v2882
  %2905 = vmatpush.msra.mxu0 %v2870
  %2906 = vmatpush.msra.mxu0 %v2866
  %2907 = vmatpush.msra.mxu0 %v2862
  %2908 = vmatpush.msra.mxu0 %v2858
  %2909 = vmatmul.f32.gmra.mxu0 %v2879
  %v2910 = vpop.f32.mrf.mxu0
  %v2911 = vadd.f32 0.0, %v2910
  %2912 = vdwg.mxu0
  %2913 = vmatpush.msra.mxu0 0.0
  %2914 = vmatpush.msra.mxu0 0.0
  %2915 = vmatpush.msra.mxu0 0.0
  %2916 = vmatpush.msra.mxu0 0.0
  %2917 = vmatpush.msra.mxu0 0.0
  %2918 = vmatpush.msra.mxu0 0.0
  %2919 = vmatpush.msra.mxu0 0.0
  %2920 = vmatpush.msra.mxu0 0.0
  %2921 = vmatpush.msra.mxu0 0.0
  %2922 = vmatpush.msra.mxu0 0.0
  %2923 = vmatpush.msra.mxu0 0.0
  %2924 = vmatpush.msra.mxu0 %v2885
  %2925 = vmatpush.msra.mxu0 %v2871
  %2926 = vmatpush.msra.mxu0 %v2867
  %2927 = vmatpush.msra.mxu0 %v2863
  %2928 = vmatpush.msra.mxu0 %v2859
  %2929 = vmatmul.f32.gmra.mxu0 %v2879
  %v2930 = vpop.f32.mrf.mxu0
  %v2931 = vadd.f32 0.0, %v2930
  %2932 = vdwg.mxu0
  %2933 = vmatpush.msra.mxu0 0.0
  %2934 = vmatpush.msra.mxu0 0.0
  %2935 = vmatpush.msra.mxu0 0.0
  %2936 = vmatpush.msra.mxu0 0.0
  %2937 = vmatpush.msra.mxu0 0.0
  %2938 = vmatpush.msra.mxu0 0.0
  %2939 = vmatpush.msra.mxu0 0.0
  %2940 = vmatpush.msra.mxu0 0.0
  %2941 = vmatpush.msra.mxu0 0.0
  %2942 = vmatpush.msra.mxu0 0.0
  %2943 = vmatpush.msra.mxu0 0.0
  %2944 = vmatpush.msra.mxu0 %v2888
  %2945 = vmatpush.msra.mxu0 %v2872
  %2946 = vmatpush.msra.mxu0 %v2868
  %2947 = vmatpush.msra.mxu0 %v2864
  %2948 = vmatpush.msra.mxu0 %v2860
  %2949 = vmatmul.f32.gmra.mxu0 %v2879
  %v2950 = vpop.f32.mrf.mxu0
  %v2951 = vadd.f32 0.0, %v2950
  %2952 = vdwg.mxu0
  %2953 = vmatpush.msra.mxu0 0.0
  %2954 = vmatpush.msra.mxu0 0.0
  %2955 = vmatpush.msra.mxu0 0.0
  %2956 = vmatpush.msra.mxu0 0.0
  %2957 = vmatpush.msra.mxu0 0.0
  %2958 = vmatpush.msra.mxu0 0.0
  %2959 = vmatpush.msra.mxu0 0.0
  %2960 = vmatpush.msra.mxu0 0.0
  %2961 = vmatpush.msra.mxu0 0.0
  %2962 = vmatpush.msra.mxu0 0.0
  %2963 = vmatpush.msra.mxu0 0.0
  %2964 = vmatpush.msra.mxu0 %v2891
  %2965 = vmatpush.msra.mxu0 %v2873
  %2966 = vmatpush.msra.mxu0 %v2869
  %2967 = vmatpush.msra.mxu0 %v2865
  %2968 = vmatpush.msra.mxu0 %v2861
  %2969 = vmatmul.f32.gmra.mxu0 %v2879
  %v2970 = vpop.f32.mrf.mxu0
  %v2971 = vadd.f32 0.0, %v2970
  %2972 = vdwg.mxu0
  %v2977 = vrot.slane %v2911, 4
  %v2978 = vrot.slane %v2931, 4
  %v2979 = vrot.slane %v2951, 4
  %v2980 = vrot.slane %v2971, 4
  %v2985 = vadd.f32 %v1767, %v2977
  %v2986 = vadd.f32 %v1787, %v2978
  %v2987 = vadd.f32 %v1807, %v2979
  %v2988 = vadd.f32 %v1827, %v2980
  %s2989 = scalar_lea.vmem %s2, 16
  %v2990 = vld [vmem:[%s2989] sm:$0xf]
  %2992 = vset.pattern.permute.xlu0 0
  %2993 = vperm.xlu0 %2992, %v2990
  %v2994 = vpop.permute.xlu0 %2993
  %v2995 = vrot.slane %v2994, 4
  %v2997 = vadd.f32 %v2985, %v2995
  %v2998 = vadd.f32 %v2986, %v2995
  %v2999 = vadd.f32 %v2987, %v2995
  %v3000 = vadd.f32 %v2988, %v2995
  %v3001 = vmax.f32 %v2997, 0.0
  %v3002 = vmax.f32 %v2998, 0.0
  %v3003 = vmax.f32 %v2999, 0.0
  %v3004 = vmax.f32 %v3000, 0.0
  %3007 = vst.sshfl [vmem:[#allocation1] sm:$0xff pattern:$0x75316420] %v3001
  %3008 = vst.sshfl [vmem:[#allocation1 + $0x8] sm:$0xff pattern:$0x75316420] %v3002
  %s3009 = scalar_lea.vmem [#allocation1], 1
  %v3010 = vld [vmem:[%s3009] ss:$2 sm:$0xff]
  %3012 = vst [vmem:[%s3] sm:$0xff] %v3010
  %3015 = vst.sshfl [vmem:[#allocation1] sm:$0xff pattern:$0x75316420] %v3003
  %3016 = vst.sshfl [vmem:[#allocation1 + $0x8] sm:$0xff pattern:$0x75316420] %v3004
  %s3017 = scalar_lea.vmem [#allocation1], 1
  %v3018 = vld [vmem:[%s3017] ss:$2 sm:$0xff]
  %s3020 = scalar_lea.vmem %s3, 8
  %3021 = vst [vmem:[%s3020] sm:$0xff] %v3018
  // Predicated region
  $region14: #{_lambda_.1} parent=0 // pred_check
    _
  $region15: #{_lambda_.1} parent=0 // pred_check_branch
    %3023 = sbr.rel (0) target = $region17
  $region16: #{_lambda_.1} parent=0 // pred_region
    _
  $region17: #{_lambda_.1} parent=0 // pred_fallthru
    _
  // Predicated region
  $region18: #{_lambda_.1} parent=0 // pred_check
    _
  $region19: #{_lambda_.1} parent=0 // pred_check_branch
    %3025 = sbr.rel (0) target = $region21
  $region20: #{_lambda_.1} parent=0 // pred_region
    _
  $region21: #{_lambda_.1} parent=0 // pred_fallthru
    _

</llo_original>
